<compile_context>
chip_gen: v6e
topology: v6e:2x2x1
jax: 0.10.0
libtpu: 0.0.40
codegen_flags: <defaults>
</compile_context>

<pallas_src>
import functools

import jax
import jax.numpy as jnp
import numpy as np
from jax import lax
from jax.experimental import pallas as pl
from jax.experimental.pallas import tpu as pltpu

LANE = 128


def _basic_block_kernel(x_ref, w1_ref, w2_ref, b1_ref, b2_ref, out_ref,
                        mid_ref, *, H, W):
    """One batch element per grid step, flat spatial layout.

    x_ref   : (1, S, Cp) bf16    S = (H+2)*(W+2); zero-halo padded input
    w1_ref  : (3, 3*Cp, Cp) bf16 conv1 weights, [kw][kh*Cp + ci, co], BN1 folded
    w2_ref  : (3, 3*Cp, Cp) bf16 conv2 weights, BN2 folded
    b1_ref  : (1, Cp) f32        folded BN1 bias
    b2_ref  : (1, Cp) f32        folded BN2 bias
    out_ref : (1, S, Cp) bf16    zero-halo padded output (chains into next block)
    mid_ref : VMEM scratch (S, Cp) bf16 — padded conv2 input
    """
    Wp = W + 2
    S = (H + 2) * Wp
    L = H * Wp                       # full-padded-width matmul M dimension
    Lv = L - 2                       # length after kw shift-alignment
    Cp = x_ref.shape[-1]
    off = W + 3                      # flat index of output pixel (0,0) in padded layout

    # Valid-column mask in the flat padded-width domain: accumulated row m is
    # output pixel (m // Wp, m % Wp); columns W, W+1 are shift-wrap junk that
    # maps onto halo cells of mid/out, so they are forced to zero.
    mi = lax.broadcasted_iota(jnp.int32, (Lv, 1), 0).astype(jnp.float32)
    row = jnp.floor((mi + 0.5) * (1.0 / Wp))
    col = mi - row * Wp
    valid = col < (W - 0.5)          # (Lv, 1) bool

    def conv3x3(load_rows, w_ref):
        # kh-concatenated MXU operand over the full padded width: K = 3*Cp.
        xcat = jnp.concatenate(
            [load_rows(0), load_rows(Wp), load_rows(2 * Wp)], axis=-1)  # (L, 3*Cp)
        acc = None
        for kw in range(3):          # 3 matmuls per conv, pure SSA accumulation
            d = jnp.dot(xcat, w_ref[kw], preferred_element_type=jnp.float32)  # (L, Cp)
            part = d[kw:kw + Lv, :]  # kw alignment applied to the f32 result
            acc = part if acc is None else acc + part
        return acc                   # (Lv, Cp) f32

    def finalize(v):                 # zero junk columns, cast for the flat store
        return jnp.where(valid, v, 0.0).astype(jnp.bfloat16)

    zeros_edge = jnp.zeros((W + 3, Cp), jnp.bfloat16)

    # ---- conv1 (+ folded BN1) + ReLU ----
    a1 = conv3x3(lambda r: x_ref[0, r:r + L, :], w1_ref)
    o1 = jnp.maximum(a1 + b1_ref[0], 0.0)

    # ---- padded intermediate: masked interior store + two small edge stores ----
    mid_ref[0:off, :] = zeros_edge
    mid_ref[off + Lv:S, :] = zeros_edge
    mid_ref[off:off + Lv, :] = finalize(o1)

    # ---- conv2 (+ folded BN2) + residual + ReLU ----
    a2 = conv3x3(lambda r: mid_ref[r:r + L, :], w2_ref)
    identity = x_ref[0, off:off + Lv, :].astype(jnp.float32)
    o2 = jnp.maximum(a2 + b2_ref[0] + identity, 0.0)

    # ---- zero-halo padded bf16 output block (chains into the next block) ----
    out_ref[0, 0:off, :] = zeros_edge
    out_ref[0, off + Lv:S, :] = zeros_edge
    out_ref[0, off:off + Lv, :] = finalize(o2)


# ----------------------------- layout helpers (one-time entry / exit) ---------


def nchw_to_block(x_nchw, c_padded=None):
    """NCHW f32 -> flat padded block layout (N, (H+2)*(W+2), Cp) bf16."""
    N, C, H, W = x_nchw.shape
    Cp = c_padded or ((C + LANE - 1) // LANE) * LANE
    x = jnp.transpose(x_nchw, (0, 2, 3, 1)).astype(jnp.float32)
    x = jnp.pad(x, ((0, 0), (1, 1), (1, 1), (0, Cp - C)))
    return x.astype(jnp.bfloat16).reshape(N, (H + 2) * (W + 2), Cp)


def block_to_nchw(xb, C, H, W):
    """Flat padded block layout -> NCHW f32."""
    N, _, Cp = xb.shape
    x = xb.reshape(N, H + 2, W + 2, Cp)[:, 1:H + 1, 1:W + 1, :C]
    return jnp.transpose(x, (0, 3, 1, 2)).astype(jnp.float32)


def fold_bn(bn, eps=1e-5):
    scale = bn["gamma"] / jnp.sqrt(bn["var"] + eps)
    return scale, bn["beta"] - bn["mean"] * scale


def prepare_block_params(w1, w2, bn1, bn2, Cp, eps=1e-5):
    """Fold BN into conv weights; lay weights out as (3, 3*Cp, Cp) = [kw][kh*Cp+ci, co]."""
    C = w1.shape[0]

    def wcat(w, scale):
        wt = jnp.transpose(w, (3, 2, 1, 0)) * scale                  # (kw, kh, ci, co)
        wt = jnp.pad(wt, ((0, 0), (0, 0), (0, Cp - C), (0, Cp - C)))  # pad per-kh K block
        return wt.reshape(3, 3 * Cp, Cp).astype(jnp.bfloat16)

    s1, b1 = fold_bn(bn1, eps)
    s2, b2 = fold_bn(bn2, eps)
    return (wcat(w1, s1), wcat(w2, s2),
            jnp.pad(b1, (0, Cp - C)).reshape(1, Cp).astype(jnp.float32),
            jnp.pad(b2, (0, Cp - C)).reshape(1, Cp).astype(jnp.float32))


def basic_block_apply(xb, params, *, H, W):
    """One stride-1 BasicBlock in block layout: (N, (H+2)*(W+2), Cp) bf16 -> same."""
    N, S, Cp = xb.shape
    assert S == (H + 2) * (W + 2)
    w1c, w2c, b1, b2 = params

    # scheduler hint (counts padded MXU work, incl. the (W+2)/W full-width overhead)
    flops = int(N) * 2 * 2 * 9 * H * (W + 2) * Cp * Cp
    bytes_accessed = (2 * N * S * Cp * 2      # activations in + out (bf16)
                      + 2 * 9 * Cp * Cp * 2   # weights (bf16)
                      + 2 * Cp * 4)           # biases (f32)

    return pl.pallas_call(
        functools.partial(_basic_block_kernel, H=H, W=W),
        out_shape=jax.ShapeDtypeStruct((N, S, Cp), jnp.bfloat16),
        grid_spec=pltpu.PrefetchScalarGridSpec(
            num_scalar_prefetch=0,
            grid=(N,),
            in_specs=[
                pl.BlockSpec((1, S, Cp), lambda n: (n, 0, 0)),
                pl.BlockSpec((3, 3 * Cp, Cp), lambda n: (0, 0, 0)),
                pl.BlockSpec((3, 3 * Cp, Cp), lambda n: (0, 0, 0)),
                pl.BlockSpec((1, Cp), lambda n: (0, 0)),
                pl.BlockSpec((1, Cp), lambda n: (0, 0)),
            ],
            out_specs=pl.BlockSpec((1, S, Cp), lambda n: (n, 0, 0)),
            scratch_shapes=[pltpu.VMEM((S, Cp), jnp.bfloat16)],
        ),
        compiler_params=pltpu.CompilerParams(
            dimension_semantics=("parallel",),
            vmem_limit_bytes=64 * 1024 * 1024),
        cost_estimate=pl.CostEstimate(flops=flops, transcendentals=0,
                                      bytes_accessed=bytes_accessed),
    )(xb, w1c, w2c, b1, b2)


# ----------------------------- pure-JAX reference ------------------------------


def _reference_forward(x_nchw, w1, w2, bn1, bn2, eps=1e-5):
    """f32 NCHW reference mirroring the PyTorch BasicBlock forward (eval-mode BN)."""
    def conv(x, w):
        return lax.conv_general_dilated(
            x, w, window_strides=(1, 1), padding=((1, 1), (1, 1)),
            dimension_numbers=("NCHW", "OIHW", "NCHW"))

    def bn(x, p):
        s = p["gamma"] / jnp.sqrt(p["var"] + eps)
        b = p["beta"] - p["mean"] * s
        return x * s.reshape(1, -1, 1, 1) + b.reshape(1, -1, 1, 1)

    out = jax.nn.relu(bn(conv(x_nchw, w1), bn1))
    out = bn(conv(out, w2), bn2)
    return jax.nn.relu(out + x_nchw)


if __name__ == "__main__":
    key = jax.random.PRNGKey(0)
    N, C, H, W = 2, 8, 16, 16          # stride-1 BasicBlock: in_channels == out_channels
    Cp = ((C + LANE - 1) // LANE) * LANE

    ks = jax.random.split(key, 17)

    def rand_bn(k0, k1, k2, k3):
        return dict(gamma=1.0 + 0.1 * jax.random.normal(k0, (C,), jnp.float32),
                    beta=0.1 * jax.random.normal(k1, (C,), jnp.float32),
                    mean=0.1 * jax.random.normal(k2, (C,), jnp.float32),
                    var=jnp.abs(jax.random.normal(k3, (C,), jnp.float32)) + 0.5)

    x = jax.random.normal(ks[0], (N, C, H, W), jnp.float32)
    # two chained BasicBlocks worth of parameters
    w1a = jax.random.normal(ks[1], (C, C, 3, 3), jnp.float32) * 0.1
    w2a = jax.random.normal(ks[2], (C, C, 3, 3), jnp.float32) * 0.1
    bn1a = rand_bn(ks[3], ks[4], ks[5], ks[6])
    bn2a = rand_bn(ks[7], ks[8], ks[9], ks[10])
    w1b = jax.random.normal(ks[11], (C, C, 3, 3), jnp.float32) * 0.1
    w2b = jax.random.normal(ks[12], (C, C, 3, 3), jnp.float32) * 0.1
    bn1b = rand_bn(ks[13], ks[14], ks[15], ks[16])
    bn2b = dict(gamma=jnp.ones((C,), jnp.float32), beta=jnp.zeros((C,), jnp.float32),
                mean=jnp.zeros((C,), jnp.float32), var=jnp.ones((C,), jnp.float32))

    pA = prepare_block_params(w1a, w2a, bn1a, bn2a, Cp)
    pB = prepare_block_params(w1b, w2b, bn1b, bn2b, Cp)

    # Entry layout conversion happens once; the two blocks chain in the padded
    # bf16 block layout with zero XLA glue in between.
    xb = nchw_to_block(x)
    yb1 = basic_block_apply(xb, pA, H=H, W=W)
    yb2 = basic_block_apply(yb1, pB, H=H, W=W)
    y1 = jax.block_until_ready(block_to_nchw(yb1, C, H, W))
    y2 = jax.block_until_ready(block_to_nchw(yb2, C, H, W))

    r1 = _reference_forward(x, w1a, w2a, bn1a, bn2a)
    r2 = _reference_forward(r1, w1b, w2b, bn1b, bn2b)

    np.testing.assert_allclose(np.asarray(y1), np.asarray(r1), rtol=3e-2, atol=3e-2)
    np.testing.assert_allclose(np.asarray(y2), np.asarray(r2), rtol=5e-2, atol=5e-2)
    assert y1.shape == (N, C, H, W) and y2.shape == (N, C, H, W)
    assert bool(jnp.all(jnp.isfinite(y1))) and bool(jnp.all(jnp.isfinite(y2)))
    print("KERNEL_OK")
</pallas_src>

<mosaic_0001>
module attributes {stable_mosaic.version = 11 : i64} {
  func.func @_basic_block_kernel(%arg0: i32, %arg1: memref<1x324x128xbf16, #tpu.memory_space<vmem>>, %arg2: memref<3x384x128xbf16, #tpu.memory_space<vmem>>, %arg3: memref<3x384x128xbf16, #tpu.memory_space<vmem>>, %arg4: memref<1x128xf32, #tpu.memory_space<vmem>>, %arg5: memref<1x128xf32, #tpu.memory_space<vmem>>, %arg6: memref<1x324x128xbf16, #tpu.memory_space<vmem>>, %arg7: memref<324x128xbf16, #tpu.memory_space<vmem>>) attributes {dimension_semantics = [#tpu.dimension_semantics<parallel>], iteration_bounds = array<i64: 2>, scalar_prefetch = 0 : i64, scratch_operands = 1 : i64, tpu.core_type = #tpu.core_type<tc>, window_params = [{transform_indices = @transform_0, window_bounds = array<i64: 1, 324, 128>}, {pipeline_mode = #tpu.pipeline_mode<synchronous>, transform_indices = @transform_1, window_bounds = array<i64: 3, 384, 128>}, {pipeline_mode = #tpu.pipeline_mode<synchronous>, transform_indices = @transform_2, window_bounds = array<i64: 3, 384, 128>}, {pipeline_mode = #tpu.pipeline_mode<synchronous>, transform_indices = @transform_3, window_bounds = array<i64: 1, 128>}, {pipeline_mode = #tpu.pipeline_mode<synchronous>, transform_indices = @transform_4, window_bounds = array<i64: 1, 128>}, {transform_indices = @transform_5, window_bounds = array<i64: 1, 324, 128>}]} {
    %0 = tpu.iota {dimensions = array<i32: 0>} : vector<286x1xi32>
    %1 = arith.sitofp %0 : vector<286x1xi32> to vector<286x1xf32>
    %cst = arith.constant 5.000000e-01 : f32
    %2 = vector.broadcast %cst : f32 to vector<286x1xf32>
    %3 = arith.addf %1, %2 : vector<286x1xf32>
    %cst_0 = arith.constant 0.055555556 : f32
    %4 = vector.broadcast %cst_0 : f32 to vector<286x1xf32>
    %5 = arith.mulf %3, %4 : vector<286x1xf32>
    %6 = math.floor %5 : vector<286x1xf32>
    %cst_1 = arith.constant 1.800000e+01 : f32
    %7 = vector.broadcast %cst_1 : f32 to vector<286x1xf32>
    %8 = arith.mulf %6, %7 : vector<286x1xf32>
    %9 = arith.subf %1, %8 : vector<286x1xf32>
    %cst_2 = arith.constant 1.550000e+01 : f32
    %10 = vector.broadcast %cst_2 : f32 to vector<286x1xf32>
    %11 = arith.cmpf olt, %9, %10 : vector<286x1xf32>
    %cst_3 = arith.constant 0.000000e+00 : bf16
    %12 = vector.broadcast %cst_3 : bf16 to vector<19x128xbf16>
    %c0 = arith.constant 0 : index
    %c0_4 = arith.constant 0 : index
    %c0_5 = arith.constant 0 : index
    %13 = vector.load %arg1[%c0, %c0_4, %c0_5] : memref<1x324x128xbf16, #tpu.memory_space<vmem>>, vector<1x288x128xbf16>
    %14 = vector.shape_cast %13 : vector<1x288x128xbf16> to vector<288x128xbf16>
    %c0_6 = arith.constant 0 : index
    %c18 = arith.constant 18 : index
    %c0_7 = arith.constant 0 : index
    %15 = vector.load %arg1[%c0_6, %c18, %c0_7] : memref<1x324x128xbf16, #tpu.memory_space<vmem>>, vector<1x288x128xbf16>
    %16 = vector.shape_cast %15 : vector<1x288x128xbf16> to vector<288x128xbf16>
    %c0_8 = arith.constant 0 : index
    %c36 = arith.constant 36 : index
    %c0_9 = arith.constant 0 : index
    %17 = vector.load %arg1[%c0_8, %c36, %c0_9] : memref<1x324x128xbf16, #tpu.memory_space<vmem>>, vector<1x288x128xbf16>
    %18 = vector.shape_cast %17 : vector<1x288x128xbf16> to vector<288x128xbf16>
    %19 = tpu.concatenate %14, %16, %18 in 1 : vector<288x128xbf16>, vector<288x128xbf16>, vector<288x128xbf16> -> vector<288x384xbf16>
    %c0_10 = arith.constant 0 : index
    %c0_11 = arith.constant 0 : index
    %c0_12 = arith.constant 0 : index
    %20 = vector.load %arg2[%c0_10, %c0_11, %c0_12] : memref<3x384x128xbf16, #tpu.memory_space<vmem>>, vector<1x384x128xbf16>
    %21 = vector.shape_cast %20 : vector<1x384x128xbf16> to vector<384x128xbf16>
    %cst_13 = arith.constant dense<0.000000e+00> : vector<288x128xf32>
    %22 = tpu.matmul %19, %21, %cst_13 {dimension_numbers = #tpu.dot_dimension_numbers<[1], [0], [0], [1], [0, 0, 1, 1], [], []>} : vector<288x384xbf16>, vector<384x128xbf16>, vector<288x128xf32> -> vector<288x128xf32>
    %23 = vector.extract_strided_slice %22 {offsets = [0, 0], sizes = [286, 128], strides = [1, 1]} : vector<288x128xf32> to vector<286x128xf32>
    %c1 = arith.constant 1 : index
    %c0_14 = arith.constant 0 : index
    %c0_15 = arith.constant 0 : index
    %24 = vector.load %arg2[%c1, %c0_14, %c0_15] : memref<3x384x128xbf16, #tpu.memory_space<vmem>>, vector<1x384x128xbf16>
    %25 = vector.shape_cast %24 : vector<1x384x128xbf16> to vector<384x128xbf16>
    %cst_16 = arith.constant dense<0.000000e+00> : vector<288x128xf32>
    %26 = tpu.matmul %19, %25, %cst_16 {dimension_numbers = #tpu.dot_dimension_numbers<[1], [0], [0], [1], [0, 0, 1, 1], [], []>} : vector<288x384xbf16>, vector<384x128xbf16>, vector<288x128xf32> -> vector<288x128xf32>
    %27 = vector.extract_strided_slice %26 {offsets = [1, 0], sizes = [286, 128], strides = [1, 1]} : vector<288x128xf32> to vector<286x128xf32>
    %28 = arith.addf %23, %27 : vector<286x128xf32>
    %c2 = arith.constant 2 : index
    %c0_17 = arith.constant 0 : index
    %c0_18 = arith.constant 0 : index
    %29 = vector.load %arg2[%c2, %c0_17, %c0_18] : memref<3x384x128xbf16, #tpu.memory_space<vmem>>, vector<1x384x128xbf16>
    %30 = vector.shape_cast %29 : vector<1x384x128xbf16> to vector<384x128xbf16>
    %cst_19 = arith.constant dense<0.000000e+00> : vector<288x128xf32>
    %31 = tpu.matmul %19, %30, %cst_19 {dimension_numbers = #tpu.dot_dimension_numbers<[1], [0], [0], [1], [0, 0, 1, 1], [], []>} : vector<288x384xbf16>, vector<384x128xbf16>, vector<288x128xf32> -> vector<288x128xf32>
    %32 = vector.extract_strided_slice %31 {offsets = [2, 0], sizes = [286, 128], strides = [1, 1]} : vector<288x128xf32> to vector<286x128xf32>
    %33 = arith.addf %28, %32 : vector<286x128xf32>
    %c0_20 = arith.constant 0 : index
    %c0_21 = arith.constant 0 : index
    %34 = vector.load %arg4[%c0_20, %c0_21] : memref<1x128xf32, #tpu.memory_space<vmem>>, vector<1x128xf32>
    %35 = vector.shape_cast %34 : vector<1x128xf32> to vector<128xf32>
    %36 = vector.shape_cast %35 : vector<128xf32> to vector<1x128xf32>
    %37 = vector.broadcast %36 : vector<1x128xf32> to vector<286x128xf32>
    %38 = arith.addf %33, %37 : vector<286x128xf32>
    %cst_22 = arith.constant 0.000000e+00 : f32
    %39 = vector.broadcast %cst_22 : f32 to vector<286x128xf32>
    %40 = arith.maximumf %38, %39 : vector<286x128xf32>
    %c0_23 = arith.constant 0 : index
    %c0_24 = arith.constant 0 : index
    %41 = vector.load %arg7[%c0_23, %c0_24] : memref<324x128xbf16, #tpu.memory_space<vmem>>, vector<19x128xbf16>
    tpu.vector_store %arg7[%c0_23, %c0_24], %12 {strides = array<i32>} : memref<324x128xbf16, #tpu.memory_space<vmem>>, vector<19x128xbf16>,
    %c305 = arith.constant 305 : index
    %c0_25 = arith.constant 0 : index
    %42 = vector.load %arg7[%c305, %c0_25] : memref<324x128xbf16, #tpu.memory_space<vmem>>, vector<19x128xbf16>
    tpu.vector_store %arg7[%c305, %c0_25], %12 {strides = array<i32>} : memref<324x128xbf16, #tpu.memory_space<vmem>>, vector<19x128xbf16>,
    %cst_26 = arith.constant 0.000000e+00 : f32
    %43 = vector.shape_cast %11 : vector<286x1xi1> to vector<286x1xi1>
    %44 = vector.broadcast %43 : vector<286x1xi1> to vector<286x128xi1>
    %45 = vector.broadcast %cst_26 : f32 to vector<286x128xf32>
    %46 = arith.select %44, %40, %45 : vector<286x128xi1>, vector<286x128xf32>
    %47 = arith.truncf %46 : vector<286x128xf32> to vector<286x128xbf16>
    %c19 = arith.constant 19 : index
    %c0_27 = arith.constant 0 : index
    %48 = vector.load %arg7[%c19, %c0_27] : memref<324x128xbf16, #tpu.memory_space<vmem>>, vector<286x128xbf16>
    tpu.vector_store %arg7[%c19, %c0_27], %47 {strides = array<i32>} : memref<324x128xbf16, #tpu.memory_space<vmem>>, vector<286x128xbf16>,
    %c0_28 = arith.constant 0 : index
    %c0_29 = arith.constant 0 : index
    %49 = vector.load %arg7[%c0_28, %c0_29] : memref<324x128xbf16, #tpu.memory_space<vmem>>, vector<288x128xbf16>
    %c18_30 = arith.constant 18 : index
    %c0_31 = arith.constant 0 : index
    %50 = vector.load %arg7[%c18_30, %c0_31] : memref<324x128xbf16, #tpu.memory_space<vmem>>, vector<288x128xbf16>
    %c36_32 = arith.constant 36 : index
    %c0_33 = arith.constant 0 : index
    %51 = vector.load %arg7[%c36_32, %c0_33] : memref<324x128xbf16, #tpu.memory_space<vmem>>, vector<288x128xbf16>
    %52 = tpu.concatenate %49, %50, %51 in 1 : vector<288x128xbf16>, vector<288x128xbf16>, vector<288x128xbf16> -> vector<288x384xbf16>
    %c0_34 = arith.constant 0 : index
    %c0_35 = arith.constant 0 : index
    %c0_36 = arith.constant 0 : index
    %53 = vector.load %arg3[%c0_34, %c0_35, %c0_36] : memref<3x384x128xbf16, #tpu.memory_space<vmem>>, vector<1x384x128xbf16>
    %54 = vector.shape_cast %53 : vector<1x384x128xbf16> to vector<384x128xbf16>
    %cst_37 = arith.constant dense<0.000000e+00> : vector<288x128xf32>
    %55 = tpu.matmul %52, %54, %cst_37 {dimension_numbers = #tpu.dot_dimension_numbers<[1], [0], [0], [1], [0, 0, 1, 1], [], []>} : vector<288x384xbf16>, vector<384x128xbf16>, vector<288x128xf32> -> vector<288x128xf32>
    %56 = vector.extract_strided_slice %55 {offsets = [0, 0], sizes = [286, 128], strides = [1, 1]} : vector<288x128xf32> to vector<286x128xf32>
    %c1_38 = arith.constant 1 : index
    %c0_39 = arith.constant 0 : index
    %c0_40 = arith.constant 0 : index
    %57 = vector.load %arg3[%c1_38, %c0_39, %c0_40] : memref<3x384x128xbf16, #tpu.memory_space<vmem>>, vector<1x384x128xbf16>
    %58 = vector.shape_cast %57 : vector<1x384x128xbf16> to vector<384x128xbf16>
    %cst_41 = arith.constant dense<0.000000e+00> : vector<288x128xf32>
    %59 = tpu.matmul %52, %58, %cst_41 {dimension_numbers = #tpu.dot_dimension_numbers<[1], [0], [0], [1], [0, 0, 1, 1], [], []>} : vector<288x384xbf16>, vector<384x128xbf16>, vector<288x128xf32> -> vector<288x128xf32>
    %60 = vector.extract_strided_slice %59 {offsets = [1, 0], sizes = [286, 128], strides = [1, 1]} : vector<288x128xf32> to vector<286x128xf32>
    %61 = arith.addf %56, %60 : vector<286x128xf32>
    %c2_42 = arith.constant 2 : index
    %c0_43 = arith.constant 0 : index
    %c0_44 = arith.constant 0 : index
    %62 = vector.load %arg3[%c2_42, %c0_43, %c0_44] : memref<3x384x128xbf16, #tpu.memory_space<vmem>>, vector<1x384x128xbf16>
    %63 = vector.shape_cast %62 : vector<1x384x128xbf16> to vector<384x128xbf16>
    %cst_45 = arith.constant dense<0.000000e+00> : vector<288x128xf32>
    %64 = tpu.matmul %52, %63, %cst_45 {dimension_numbers = #tpu.dot_dimension_numbers<[1], [0], [0], [1], [0, 0, 1, 1], [], []>} : vector<288x384xbf16>, vector<384x128xbf16>, vector<288x128xf32> -> vector<288x128xf32>
    %65 = vector.extract_strided_slice %64 {offsets = [2, 0], sizes = [286, 128], strides = [1, 1]} : vector<288x128xf32> to vector<286x128xf32>
    %66 = arith.addf %61, %65 : vector<286x128xf32>
    %c0_46 = arith.constant 0 : index
    %c19_47 = arith.constant 19 : index
    %c0_48 = arith.constant 0 : index
    %67 = vector.load %arg1[%c0_46, %c19_47, %c0_48] : memref<1x324x128xbf16, #tpu.memory_space<vmem>>, vector<1x286x128xbf16>
    %68 = vector.shape_cast %67 : vector<1x286x128xbf16> to vector<286x128xbf16>
    %69 = arith.extf %68 : vector<286x128xbf16> to vector<286x128xf32>
    %c0_49 = arith.constant 0 : index
    %c0_50 = arith.constant 0 : index
    %70 = vector.load %arg5[%c0_49, %c0_50] : memref<1x128xf32, #tpu.memory_space<vmem>>, vector<1x128xf32>
    %71 = vector.shape_cast %70 : vector<1x128xf32> to vector<128xf32>
    %72 = vector.shape_cast %71 : vector<128xf32> to vector<1x128xf32>
    %73 = vector.broadcast %72 : vector<1x128xf32> to vector<286x128xf32>
    %74 = arith.addf %66, %73 : vector<286x128xf32>
    %75 = arith.addf %74, %69 : vector<286x128xf32>
    %cst_51 = arith.constant 0.000000e+00 : f32
    %76 = vector.broadcast %cst_51 : f32 to vector<286x128xf32>
    %77 = arith.maximumf %75, %76 : vector<286x128xf32>
    %c0_52 = arith.constant 0 : index
    %c0_53 = arith.constant 0 : index
    %c0_54 = arith.constant 0 : index
    %78 = vector.load %arg6[%c0_52, %c0_53, %c0_54] : memref<1x324x128xbf16, #tpu.memory_space<vmem>>, vector<1x19x128xbf16>
    %79 = vector.shape_cast %78 : vector<1x19x128xbf16> to vector<19x128xbf16>
    %80 = vector.shape_cast %12 : vector<19x128xbf16> to vector<1x19x128xbf16>
    tpu.vector_store %arg6[%c0_52, %c0_53, %c0_54], %80 {strides = array<i32>} : memref<1x324x128xbf16, #tpu.memory_space<vmem>>, vector<1x19x128xbf16>,
    %c0_55 = arith.constant 0 : index
    %c305_56 = arith.constant 305 : index
    %c0_57 = arith.constant 0 : index
    %81 = vector.load %arg6[%c0_55, %c305_56, %c0_57] : memref<1x324x128xbf16, #tpu.memory_space<vmem>>, vector<1x19x128xbf16>
    %82 = vector.shape_cast %81 : vector<1x19x128xbf16> to vector<19x128xbf16>
    %83 = vector.shape_cast %12 : vector<19x128xbf16> to vector<1x19x128xbf16>
    tpu.vector_store %arg6[%c0_55, %c305_56, %c0_57], %83 {strides = array<i32>} : memref<1x324x128xbf16, #tpu.memory_space<vmem>>, vector<1x19x128xbf16>,
    %cst_58 = arith.constant 0.000000e+00 : f32
    %84 = vector.shape_cast %11 : vector<286x1xi1> to vector<286x1xi1>
    %85 = vector.broadcast %84 : vector<286x1xi1> to vector<286x128xi1>
    %86 = vector.broadcast %cst_58 : f32 to vector<286x128xf32>
    %87 = arith.select %85, %77, %86 : vector<286x128xi1>, vector<286x128xf32>
    %88 = arith.truncf %87 : vector<286x128xf32> to vector<286x128xbf16>
    %c0_59 = arith.constant 0 : index
    %c19_60 = arith.constant 19 : index
    %c0_61 = arith.constant 0 : index
    %89 = vector.load %arg6[%c0_59, %c19_60, %c0_61] : memref<1x324x128xbf16, #tpu.memory_space<vmem>>, vector<1x286x128xbf16>
    %90 = vector.shape_cast %89 : vector<1x286x128xbf16> to vector<286x128xbf16>
    %91 = vector.shape_cast %88 : vector<286x128xbf16> to vector<1x286x128xbf16>
    tpu.vector_store %arg6[%c0_59, %c19_60, %c0_61], %91 {strides = array<i32>} : memref<1x324x128xbf16, #tpu.memory_space<vmem>>, vector<1x286x128xbf16>,
    return
  }
  func.func @transform_0(%arg0: i32) -> (i32, i32, i32) {
    %c0_i32 = arith.constant 0 : i32
    %c0_i32_0 = arith.constant 0 : i32
    %c0_i32_1 = arith.constant 0 : i32
    return %arg0, %c0_i32, %c0_i32_0 : i32, i32, i32
  }
  func.func @transform_1(%arg0: i32) -> (i32, i32, i32) {
    %c0_i32 = arith.constant 0 : i32
    %c0_i32_0 = arith.constant 0 : i32
    %c0_i32_1 = arith.constant 0 : i32
    %c0_i32_2 = arith.constant 0 : i32
    return %c0_i32, %c0_i32_0, %c0_i32_1 : i32, i32, i32
  }
  func.func @transform_2(%arg0: i32) -> (i32, i32, i32) {
    %c0_i32 = arith.constant 0 : i32
    %c0_i32_0 = arith.constant 0 : i32
    %c0_i32_1 = arith.constant 0 : i32
    %c0_i32_2 = arith.constant 0 : i32
    return %c0_i32, %c0_i32_0, %c0_i32_1 : i32, i32, i32
  }
  func.func @transform_3(%arg0: i32) -> (i32, i32) {
    %c0_i32 = arith.constant 0 : i32
    %c0_i32_0 = arith.constant 0 : i32
    %c0_i32_1 = arith.constant 0 : i32
    return %c0_i32, %c0_i32_0 : i32, i32
  }
  func.func @transform_4(%arg0: i32) -> (i32, i32) {
    %c0_i32 = arith.constant 0 : i32
    %c0_i32_0 = arith.constant 0 : i32
    %c0_i32_1 = arith.constant 0 : i32
    return %c0_i32, %c0_i32_0 : i32, i32
  }
  func.func @transform_5(%arg0: i32) -> (i32, i32, i32) {
    %c0_i32 = arith.constant 0 : i32
    %c0_i32_0 = arith.constant 0 : i32
    %c0_i32_1 = arith.constant 0 : i32
    return %arg0, %c0_i32, %c0_i32_0 : i32, i32, i32
  }
}

</mosaic_0001>

<llo_original>
// kernel: tpu_custom_call.1
$region0: #{tpu_custom_call.1}
  #allocation0 [shape = 'u32[]', space=smem, size = 0x4, offset = 0x4, fixed_abs, tag = 'smem constant byte address 0x4 - core index']
  #allocation1 [shape = 'u32[144,128]{1,0:T(1,128)}', space=vmem, size = 0x12000, scoped, tag = 'internal scratch']
  #allocation2 [shape = 'bf16[324,128]{1,0:T(8,128)(2,1)}', space=vmem, size = 0x14800, scoped, tag = 'scratch operand']
  %s0 = inlined_call_operand.vmem [shape: bf16[2,324,128], index: 0, kind: input, shape index: {}]
  %s1 = inlined_call_operand.vmem [shape: bf16[3,384,128], index: 1, kind: input, shape index: {}]
  %s2 = inlined_call_operand.hbm [shape: bf16[3,384,128], index: 2, kind: input, shape index: {}]
  %s3 = inlined_call_operand.vmem [shape: f32[1,128], index: 3, kind: input, shape index: {}]
  %s4 = inlined_call_operand.vmem [shape: f32[1,128], index: 4, kind: input, shape index: {}]
  %s5 = inlined_call_operand.vmem [shape: bf16[2,324,128], index: 5, kind: output, shape index: {}]
  %s6 = sld [smem:[#allocation0]]
  $region57: #{tpu_custom_call.1} parent=0
    _
  %s8 = ssub.s32 1, %s6
  %s9 = scalar_select 0, %s8, %s6
  $region1: #{tpu_custom_call.1} parent=0
    #allocation3 [shape = 'u8[294912]{0}', space=vmem, size = 0x48000, scoped, tag = 'input window, operand 2, single buffered']
    #allocation4 [shape = 's32[2]{0}', space=sflag, size = 0x8, scoped, tag = 'scoped memory for tpu_custom_call.1']
    %10 = vsyncpa [#allocation4], 0
    loop: start=0, step=1, limit=4
    $region2: #{tpu_custom_call.1} parent=1 // loop_pre_header
      _
    $region3: #{tpu_custom_call.1} parent=1 // loop_header
      %s12 = sphi 0, %s16
      %p13 = scmp.ge.s32.totalorder %s12, 4
      %s22 = sphi 0, %s24
      %s25 = sphi 0, %s22
      %s26 = sphi 0, %s25
      %s42 = sphi 0, %s26
      %s46 = sphi 0, %s46
      %s48 = sphi 0, %s46
      %s49 = sphi 0, %s48
      %s63 = sphi 0, %s49
      %s67 = sphi 0, %s67
      %s69 = sphi 0, %s67
      %s70 = sphi 0, %s69
      %s84 = sphi 0, %s70
      %s88 = sphi 0, %s88
      %s90 = sphi 0, %s88
      %s91 = sphi 0, %s90
      %s105 = sphi 0, %s91
      %s109 = sphi 0, %s109
      %s111 = sphi 0, %s109
      %s112 = sphi 0, %s111
      %s126 = sphi 0, %s112
      %s132 = sphi 0, %s134
      %s135 = sphi 0, %s132
      %s136 = sphi 0, %s135
      %s152 = sphi 0, %s136
    $region4: #{tpu_custom_call.1} parent=1 // loop_header_branch
      %15 = sbr.rel (%p13) target = $region8
    $region5: #{tpu_custom_call.1} parent=1 // loop_body
      %s17 = ssub.s32 %s12, 1
      %s18 = ssub.s32 %s12, 2
      %s19 = sadd.s32 %s12, 1
      %s20 = ssub.s32 %s12, %s19
      %p21 = scmp.eq.s32.totalorder %s20, 0
      %s23 = sadd.s32 %s22, 1
      %s24 = scalar_select %p21, %s22, %s23
      %p27 = pneg %p21
      %p28 = scmp.eq.s32.totalorder %s12, 1
      %p29 = por %p27, %p28
      %p30 = scmp.ne.s32.totalorder %s22, %s25
      %p31 = scmp.eq.s32.totalorder %s12, 0
      %p32 = por %p30, %p31
      %p33 = scmp.ne.s32.totalorder %s22, %s25
      %p34 = scmp.eq.s32.totalorder %s17, 1
      %p35 = por %p33, %p34
      %p36 = scmp.ne.s32.totalorder %s25, %s26
      %p37 = scmp.eq.s32.totalorder %s17, 0
      %p38 = por %p36, %p37
      %p39 = scmp.ne.s32.totalorder %s25, %s26
      %p40 = scmp.eq.s32.totalorder %s18, 1
      %p41 = por %p39, %p40
      %p43 = scmp.ne.s32.totalorder %s26, %s42
      %p44 = scmp.eq.s32.totalorder %s18, 0
      %p45 = por %p43, %p44
      %s47 = sadd.s32 %s46, 1
      %p50 = scmp.eq.s32.totalorder %s12, 1
      %p51 = scmp.ne.s32.totalorder %s46, %s48
      %p52 = scmp.eq.s32.totalorder %s12, 0
      %p53 = por %p51, %p52
      %p54 = scmp.ne.s32.totalorder %s46, %s48
      %p55 = scmp.eq.s32.totalorder %s17, 1
      %p56 = por %p54, %p55
      %p57 = scmp.ne.s32.totalorder %s48, %s49
      %p58 = scmp.eq.s32.totalorder %s17, 0
      %p59 = por %p57, %p58
      %p60 = scmp.ne.s32.totalorder %s48, %s49
      %p61 = scmp.eq.s32.totalorder %s18, 1
      %p62 = por %p60, %p61
      %p64 = scmp.ne.s32.totalorder %s49, %s63
      %p65 = scmp.eq.s32.totalorder %s18, 0
      %p66 = por %p64, %p65
      %s68 = sadd.s32 %s67, 1
      %p71 = scmp.eq.s32.totalorder %s12, 1
      %p72 = scmp.ne.s32.totalorder %s67, %s69
      %p73 = scmp.eq.s32.totalorder %s12, 0
      %p74 = por %p72, %p73
      %p75 = scmp.ne.s32.totalorder %s67, %s69
      %p76 = scmp.eq.s32.totalorder %s17, 1
      %p77 = por %p75, %p76
      %p78 = scmp.ne.s32.totalorder %s69, %s70
      %p79 = scmp.eq.s32.totalorder %s17, 0
      %p80 = por %p78, %p79
      %p81 = scmp.ne.s32.totalorder %s69, %s70
      %p82 = scmp.eq.s32.totalorder %s18, 1
      %p83 = por %p81, %p82
      %p85 = scmp.ne.s32.totalorder %s70, %s84
      %p86 = scmp.eq.s32.totalorder %s18, 0
      %p87 = por %p85, %p86
      %s89 = sadd.s32 %s88, 1
      %p92 = scmp.eq.s32.totalorder %s12, 1
      %p93 = scmp.ne.s32.totalorder %s88, %s90
      %p94 = scmp.eq.s32.totalorder %s12, 0
      %p95 = por %p93, %p94
      %p96 = scmp.ne.s32.totalorder %s88, %s90
      %p97 = scmp.eq.s32.totalorder %s17, 1
      %p98 = por %p96, %p97
      %p99 = scmp.ne.s32.totalorder %s90, %s91
      %p100 = scmp.eq.s32.totalorder %s17, 0
      %p101 = por %p99, %p100
      %p102 = scmp.ne.s32.totalorder %s90, %s91
      %p103 = scmp.eq.s32.totalorder %s18, 1
      %p104 = por %p102, %p103
      %p106 = scmp.ne.s32.totalorder %s91, %s105
      %p107 = scmp.eq.s32.totalorder %s18, 0
      %p108 = por %p106, %p107
      %s110 = sadd.s32 %s109, 1
      %p113 = scmp.eq.s32.totalorder %s12, 1
      %p114 = scmp.ne.s32.totalorder %s109, %s111
      %p115 = scmp.eq.s32.totalorder %s12, 0
      %p116 = por %p114, %p115
      %p117 = scmp.ne.s32.totalorder %s109, %s111
      %p118 = scmp.eq.s32.totalorder %s17, 1
      %p119 = por %p117, %p118
      %p120 = scmp.ne.s32.totalorder %s111, %s112
      %p121 = scmp.eq.s32.totalorder %s17, 0
      %p122 = por %p120, %p121
      %p123 = scmp.ne.s32.totalorder %s111, %s112
      %p124 = scmp.eq.s32.totalorder %s18, 1
      %p125 = por %p123, %p124
      %p127 = scmp.ne.s32.totalorder %s112, %s126
      %p128 = scmp.eq.s32.totalorder %s18, 0
      %p129 = por %p127, %p128
      %s130 = ssub.s32 %s12, %s19
      %p131 = scmp.eq.s32.totalorder %s130, 0
      %s133 = sadd.s32 %s132, 1
      %s134 = scalar_select %p131, %s132, %s133
      %p137 = pneg %p131
      %p138 = scmp.eq.s32.totalorder %s12, 1
      %p139 = por %p137, %p138
      %p140 = scmp.ne.s32.totalorder %s132, %s135
      %p141 = scmp.eq.s32.totalorder %s12, 0
      %p142 = por %p140, %p141
      %p143 = scmp.ne.s32.totalorder %s132, %s135
      %p144 = scmp.eq.s32.totalorder %s17, 1
      %p145 = por %p143, %p144
      %p146 = scmp.ne.s32.totalorder %s135, %s136
      %p147 = scmp.eq.s32.totalorder %s17, 0
      %p148 = por %p146, %p147
      %p149 = scmp.ne.s32.totalorder %s135, %s136
      %p150 = scmp.eq.s32.totalorder %s18, 1
      %p151 = por %p149, %p150
      %p153 = scmp.ne.s32.totalorder %s136, %s152
      %p154 = scmp.eq.s32.totalorder %s18, 0
      %p155 = por %p153, %p154
      %p156 = scmp.le.s32.totalorder 1, %s12
      %p157 = scmp.lt.s32.totalorder %s12, 3
      %p158 = pnand %p156, %p157
      %p159 = pneg %p158
      // Predicated region
      $region9: #{tpu_custom_call.1} parent=5 // pred_check
        _
      $region10: #{tpu_custom_call.1} parent=5 // pred_check_branch
        %161 = sbr.rel (%p158) target = $region12
      $region11: #{tpu_custom_call.1} parent=5 // pred_region
        %s162 = ssub.s32 %s12, 1
        // Predicated region
        $region13: #{tpu_custom_call.1} parent=11 // pred_check
          %p163 = pneg %p59
        $region14: #{tpu_custom_call.1} parent=11 // pred_check_branch
          %165 = sbr.rel (%p163) target = $region16
        $region15: #{tpu_custom_call.1} parent=11 // pred_region
          _
        $region16: #{tpu_custom_call.1} parent=11 // pred_fallthru
          _
        // Predicated region
        $region17: #{tpu_custom_call.1} parent=11 // pred_check
          %p166 = pneg %p80
        $region18: #{tpu_custom_call.1} parent=11 // pred_check_branch
          %168 = sbr.rel (%p166) target = $region20
        $region19: #{tpu_custom_call.1} parent=11 // pred_region
          %s170 = ssub.s32 9216, 9216
          %171 = vsyncadd [#allocation4], %s170
          %s172 = sshll.u32 [#allocation3], 4
          %s173 = int_to_ptr.vmem [resolvable:$true] %s172
          %178 = dma.hbm_to_vmem [thread:$0]  %s2, 9216, %s173, [#allocation4], 64, 64, 4
        $region20: #{tpu_custom_call.1} parent=11 // pred_fallthru
          _
        // Predicated region
        $region21: #{tpu_custom_call.1} parent=11 // pred_check
          %p179 = pneg %p101
        $region22: #{tpu_custom_call.1} parent=11 // pred_check_branch
          %181 = sbr.rel (%p179) target = $region24
        $region23: #{tpu_custom_call.1} parent=11 // pred_region
          _
        $region24: #{tpu_custom_call.1} parent=11 // pred_fallthru
          _
        // Predicated region
        $region25: #{tpu_custom_call.1} parent=11 // pred_check
          %p182 = pneg %p122
        $region26: #{tpu_custom_call.1} parent=11 // pred_check_branch
          %184 = sbr.rel (%p182) target = $region28
        $region27: #{tpu_custom_call.1} parent=11 // pred_region
          _
        $region28: #{tpu_custom_call.1} parent=11 // pred_fallthru
          _
      $region12: #{tpu_custom_call.1} parent=5 // pred_fallthru
        _
      %p185 = scmp.lt.s32.totalorder %s12, 2
      // Predicated region
      $region29: #{tpu_custom_call.1} parent=5 // pred_check
        %p186 = pneg %p185
      $region30: #{tpu_custom_call.1} parent=5 // pred_check_branch
        %188 = sbr.rel (%p186) target = $region32
      $region31: #{tpu_custom_call.1} parent=5 // pred_region
        // Predicated region
        $region33: #{tpu_custom_call.1} parent=31 // pred_check
          %p189 = pneg %p32
        $region34: #{tpu_custom_call.1} parent=31 // pred_check_branch
          %191 = sbr.rel (%p189) target = $region36
        $region35: #{tpu_custom_call.1} parent=31 // pred_region
          %p192 = scmp.lt.s32.totalorder %s12, 1
          %s193 = scalar_select %p192, %s12, 1
          %s194 = smul.addr %s193, 41
          %s195 = smul.addr %s194, 4
          %s196 = scalar_lea.vmem %s0, %s195
        $region36: #{tpu_custom_call.1} parent=31 // pred_fallthru
          _
      $region32: #{tpu_custom_call.1} parent=5 // pred_fallthru
        _
      %p197 = scmp.le.s32.totalorder 1, %s12
      %p198 = scmp.lt.s32.totalorder %s12, 3
      %p199 = pnand %p197, %p198
      %p200 = pneg %p199
      // Predicated region
      $region37: #{tpu_custom_call.1} parent=5 // pred_check
        _
      $region38: #{tpu_custom_call.1} parent=5 // pred_check_branch
        %202 = sbr.rel (%p199) target = $region40
      $region39: #{tpu_custom_call.1} parent=5 // pred_region
        %s203 = ssub.s32 %s12, 1
        // Predicated region
        $region41: #{tpu_custom_call.1} parent=39 // pred_check
          %p204 = pneg %p80
        $region42: #{tpu_custom_call.1} parent=39 // pred_check_branch
          %206 = sbr.rel (%p204) target = $region44
        $region43: #{tpu_custom_call.1} parent=39 // pred_region
          %207 = dma.done [#allocation4], 9216
        $region44: #{tpu_custom_call.1} parent=39 // pred_fallthru
          _
        %p208 = scmp.lt.s32.totalorder %s17, 1
        %s209 = scalar_select %p208, %s17, 1
        %s210 = smul.addr %s209, 41
        %s211 = smul.addr %s210, 4
        %s212 = scalar_lea.vmem %s0, %s211
        %p213 = pneg %p38
        %p214 = pneg %p35
        %p215 = pneg %p59
        %p216 = pneg %p56
        %p217 = pneg %p80
        %p218 = pneg %p77
        %p219 = pneg %p101
        %p220 = pneg %p98
        %p221 = pneg %p122
        %p222 = pneg %p119
        %p223 = pneg %p148
        %p224 = pneg %p145
        %p225 = scmp.lt.s32.totalorder %s17, 1
        %s226 = scalar_select %p225, %s17, 1
        %s227 = smul.addr %s226, 41
        %s228 = smul.addr %s227, 4
        %s229 = scalar_lea.vmem %s5, %s228
        %p230 = scmp.lt.s32.totalorder %s17, 1
        %s231 = scalar_select %p230, %s17, 1
        %s232 = smul.addr %s231, 41
        %s233 = smul.addr %s232, 4
        %s234 = scalar_lea.vmem %s0, %s233
        %p235 = scmp.lt.s32.totalorder %s17, 1
        %s236 = scalar_select %p235, %s17, 1
        %s237 = smul.addr %s236, 41
        %s238 = smul.addr %s237, 4
        %s239 = scalar_lea.vmem %s5, %s238
        %v241 = vlaneseq
        %v242 = vshrl.u32 %v241, 7
        %v243 = vadd.s32 %v242, 8
        %v244 = vadd.s32 %v242, 16
        %v245 = vadd.s32 %v242, 24
        %v246 = vadd.s32 %v242, 32
        %v247 = vadd.s32 %v242, 40
        %v248 = vadd.s32 %v242, 48
        %v249 = vadd.s32 %v242, 56
        %v250 = vadd.s32 %v242, 64
        %v251 = vadd.s32 %v242, 72
        %v252 = vadd.s32 %v242, 80
        %v253 = vadd.s32 %v242, 88
        %v254 = vadd.s32 %v242, 96
        %v255 = vadd.s32 %v242, 104
        %v256 = vadd.s32 %v242, 112
        %v257 = vadd.s32 %v242, 120
        %v258 = vadd.s32 %v242, 128
        %v259 = vadd.s32 %v242, 136
        %v260 = vadd.s32 %v242, 144
        %v261 = vadd.s32 %v242, 152
        %v262 = vadd.s32 %v242, 160
        %v263 = vadd.s32 %v242, 168
        %v264 = vadd.s32 %v242, 176
        %v265 = vadd.s32 %v242, 184
        %v266 = vadd.s32 %v242, 192
        %v267 = vadd.s32 %v242, 200
        %v268 = vadd.s32 %v242, 208
        %v269 = vadd.s32 %v242, 216
        %v270 = vadd.s32 %v242, 224
        %v271 = vadd.s32 %v242, 232
        %v272 = vadd.s32 %v242, 240
        %v273 = vadd.s32 %v242, 248
        %v274 = vadd.s32 %v242, 256
        %v275 = vadd.s32 %v242, 264
        %v276 = vadd.s32 %v242, 272
        %v277 = vadd.s32 %v242, 280
        %v278 = vcvt.s32.f32 %v242
        %v279 = vcvt.s32.f32 %v243
        %v280 = vcvt.s32.f32 %v244
        %v281 = vcvt.s32.f32 %v245
        %v282 = vcvt.s32.f32 %v246
        %v283 = vcvt.s32.f32 %v247
        %v284 = vcvt.s32.f32 %v248
        %v285 = vcvt.s32.f32 %v249
        %v286 = vcvt.s32.f32 %v250
        %v287 = vcvt.s32.f32 %v251
        %v288 = vcvt.s32.f32 %v252
        %v289 = vcvt.s32.f32 %v253
        %v290 = vcvt.s32.f32 %v254
        %v291 = vcvt.s32.f32 %v255
        %v292 = vcvt.s32.f32 %v256
        %v293 = vcvt.s32.f32 %v257
        %v294 = vcvt.s32.f32 %v258
        %v295 = vcvt.s32.f32 %v259
        %v296 = vcvt.s32.f32 %v260
        %v297 = vcvt.s32.f32 %v261
        %v298 = vcvt.s32.f32 %v262
        %v299 = vcvt.s32.f32 %v263
        %v300 = vcvt.s32.f32 %v264
        %v301 = vcvt.s32.f32 %v265
        %v302 = vcvt.s32.f32 %v266
        %v303 = vcvt.s32.f32 %v267
        %v304 = vcvt.s32.f32 %v268
        %v305 = vcvt.s32.f32 %v269
        %v306 = vcvt.s32.f32 %v270
        %v307 = vcvt.s32.f32 %v271
        %v308 = vcvt.s32.f32 %v272
        %v309 = vcvt.s32.f32 %v273
        %v310 = vcvt.s32.f32 %v274
        %v311 = vcvt.s32.f32 %v275
        %v312 = vcvt.s32.f32 %v276
        %v313 = vcvt.s32.f32 %v277
        %v314 = vadd.f32 %v278, 0.5
        %v315 = vadd.f32 %v279, 0.5
        %v316 = vadd.f32 %v280, 0.5
        %v317 = vadd.f32 %v281, 0.5
        %v318 = vadd.f32 %v282, 0.5
        %v319 = vadd.f32 %v283, 0.5
        %v320 = vadd.f32 %v284, 0.5
        %v321 = vadd.f32 %v285, 0.5
        %v322 = vadd.f32 %v286, 0.5
        %v323 = vadd.f32 %v287, 0.5
        %v324 = vadd.f32 %v288, 0.5
        %v325 = vadd.f32 %v289, 0.5
        %v326 = vadd.f32 %v290, 0.5
        %v327 = vadd.f32 %v291, 0.5
        %v328 = vadd.f32 %v292, 0.5
        %v329 = vadd.f32 %v293, 0.5
        %v330 = vadd.f32 %v294, 0.5
        %v331 = vadd.f32 %v295, 0.5
        %v332 = vadd.f32 %v296, 0.5
        %v333 = vadd.f32 %v297, 0.5
        %v334 = vadd.f32 %v298, 0.5
        %v335 = vadd.f32 %v299, 0.5
        %v336 = vadd.f32 %v300, 0.5
        %v337 = vadd.f32 %v301, 0.5
        %v338 = vadd.f32 %v302, 0.5
        %v339 = vadd.f32 %v303, 0.5
        %v340 = vadd.f32 %v304, 0.5
        %v341 = vadd.f32 %v305, 0.5
        %v342 = vadd.f32 %v306, 0.5
        %v343 = vadd.f32 %v307, 0.5
        %v344 = vadd.f32 %v308, 0.5
        %v345 = vadd.f32 %v309, 0.5
        %v346 = vadd.f32 %v310, 0.5
        %v347 = vadd.f32 %v311, 0.5
        %v348 = vadd.f32 %v312, 0.5
        %v349 = vadd.f32 %v313, 0.5
        %v350 = vmul.f32 %v314, 0.055555556
        %v351 = vmul.f32 %v315, 0.055555556
        %v352 = vmul.f32 %v316, 0.055555556
        %v353 = vmul.f32 %v317, 0.055555556
        %v354 = vmul.f32 %v318, 0.055555556
        %v355 = vmul.f32 %v319, 0.055555556
        %v356 = vmul.f32 %v320, 0.055555556
        %v357 = vmul.f32 %v321, 0.055555556
        %v358 = vmul.f32 %v322, 0.055555556
        %v359 = vmul.f32 %v323, 0.055555556
        %v360 = vmul.f32 %v324, 0.055555556
        %v361 = vmul.f32 %v325, 0.055555556
        %v362 = vmul.f32 %v326, 0.055555556
        %v363 = vmul.f32 %v327, 0.055555556
        %v364 = vmul.f32 %v328, 0.055555556
        %v365 = vmul.f32 %v329, 0.055555556
        %v366 = vmul.f32 %v330, 0.055555556
        %v367 = vmul.f32 %v331, 0.055555556
        %v368 = vmul.f32 %v332, 0.055555556
        %v369 = vmul.f32 %v333, 0.055555556
        %v370 = vmul.f32 %v334, 0.055555556
        %v371 = vmul.f32 %v335, 0.055555556
        %v372 = vmul.f32 %v336, 0.055555556
        %v373 = vmul.f32 %v337, 0.055555556
        %v374 = vmul.f32 %v338, 0.055555556
        %v375 = vmul.f32 %v339, 0.055555556
        %v376 = vmul.f32 %v340, 0.055555556
        %v377 = vmul.f32 %v341, 0.055555556
        %v378 = vmul.f32 %v342, 0.055555556
        %v379 = vmul.f32 %v343, 0.055555556
        %v380 = vmul.f32 %v344, 0.055555556
        %v381 = vmul.f32 %v345, 0.055555556
        %v382 = vmul.f32 %v346, 0.055555556
        %v383 = vmul.f32 %v347, 0.055555556
        %v384 = vmul.f32 %v348, 0.055555556
        %v385 = vmul.f32 %v349, 0.055555556
        %v386 = vfloor.f32 %v350
        %v387 = vfloor.f32 %v351
        %v388 = vfloor.f32 %v352
        %v389 = vfloor.f32 %v353
        %v390 = vfloor.f32 %v354
        %v391 = vfloor.f32 %v355
        %v392 = vfloor.f32 %v356
        %v393 = vfloor.f32 %v357
        %v394 = vfloor.f32 %v358
        %v395 = vfloor.f32 %v359
        %v396 = vfloor.f32 %v360
        %v397 = vfloor.f32 %v361
        %v398 = vfloor.f32 %v362
        %v399 = vfloor.f32 %v363
        %v400 = vfloor.f32 %v364
        %v401 = vfloor.f32 %v365
        %v402 = vfloor.f32 %v366
        %v403 = vfloor.f32 %v367
        %v404 = vfloor.f32 %v368
        %v405 = vfloor.f32 %v369
        %v406 = vfloor.f32 %v370
        %v407 = vfloor.f32 %v371
        %v408 = vfloor.f32 %v372
        %v409 = vfloor.f32 %v373
        %v410 = vfloor.f32 %v374
        %v411 = vfloor.f32 %v375
        %v412 = vfloor.f32 %v376
        %v413 = vfloor.f32 %v377
        %v414 = vfloor.f32 %v378
        %v415 = vfloor.f32 %v379
        %v416 = vfloor.f32 %v380
        %v417 = vfloor.f32 %v381
        %v418 = vfloor.f32 %v382
        %v419 = vfloor.f32 %v383
        %v420 = vfloor.f32 %v384
        %v421 = vfloor.f32 %v385
        %v422 = vmul.f32 %v386, 18.0
        %v423 = vmul.f32 %v387, 18.0
        %v424 = vmul.f32 %v388, 18.0
        %v425 = vmul.f32 %v389, 18.0
        %v426 = vmul.f32 %v390, 18.0
        %v427 = vmul.f32 %v391, 18.0
        %v428 = vmul.f32 %v392, 18.0
        %v429 = vmul.f32 %v393, 18.0
        %v430 = vmul.f32 %v394, 18.0
        %v431 = vmul.f32 %v395, 18.0
        %v432 = vmul.f32 %v396, 18.0
        %v433 = vmul.f32 %v397, 18.0
        %v434 = vmul.f32 %v398, 18.0
        %v435 = vmul.f32 %v399, 18.0
        %v436 = vmul.f32 %v400, 18.0
        %v437 = vmul.f32 %v401, 18.0
        %v438 = vmul.f32 %v402, 18.0
        %v439 = vmul.f32 %v403, 18.0
        %v440 = vmul.f32 %v404, 18.0
        %v441 = vmul.f32 %v405, 18.0
        %v442 = vmul.f32 %v406, 18.0
        %v443 = vmul.f32 %v407, 18.0
        %v444 = vmul.f32 %v408, 18.0
        %v445 = vmul.f32 %v409, 18.0
        %v446 = vmul.f32 %v410, 18.0
        %v447 = vmul.f32 %v411, 18.0
        %v448 = vmul.f32 %v412, 18.0
        %v449 = vmul.f32 %v413, 18.0
        %v450 = vmul.f32 %v414, 18.0
        %v451 = vmul.f32 %v415, 18.0
        %v452 = vmul.f32 %v416, 18.0
        %v453 = vmul.f32 %v417, 18.0
        %v454 = vmul.f32 %v418, 18.0
        %v455 = vmul.f32 %v419, 18.0
        %v456 = vmul.f32 %v420, 18.0
        %v457 = vmul.f32 %v421, 18.0
        %v458 = vsub.f32 %v278, %v422
        %v459 = vsub.f32 %v279, %v423
        %v460 = vsub.f32 %v280, %v424
        %v461 = vsub.f32 %v281, %v425
        %v462 = vsub.f32 %v282, %v426
        %v463 = vsub.f32 %v283, %v427
        %v464 = vsub.f32 %v284, %v428
        %v465 = vsub.f32 %v285, %v429
        %v466 = vsub.f32 %v286, %v430
        %v467 = vsub.f32 %v287, %v431
        %v468 = vsub.f32 %v288, %v432
        %v469 = vsub.f32 %v289, %v433
        %v470 = vsub.f32 %v290, %v434
        %v471 = vsub.f32 %v291, %v435
        %v472 = vsub.f32 %v292, %v436
        %v473 = vsub.f32 %v293, %v437
        %v474 = vsub.f32 %v294, %v438
        %v475 = vsub.f32 %v295, %v439
        %v476 = vsub.f32 %v296, %v440
        %v477 = vsub.f32 %v297, %v441
        %v478 = vsub.f32 %v298, %v442
        %v479 = vsub.f32 %v299, %v443
        %v480 = vsub.f32 %v300, %v444
        %v481 = vsub.f32 %v301, %v445
        %v482 = vsub.f32 %v302, %v446
        %v483 = vsub.f32 %v303, %v447
        %v484 = vsub.f32 %v304, %v448
        %v485 = vsub.f32 %v305, %v449
        %v486 = vsub.f32 %v306, %v450
        %v487 = vsub.f32 %v307, %v451
        %v488 = vsub.f32 %v308, %v452
        %v489 = vsub.f32 %v309, %v453
        %v490 = vsub.f32 %v310, %v454
        %v491 = vsub.f32 %v311, %v455
        %v492 = vsub.f32 %v312, %v456
        %v493 = vsub.f32 %v313, %v457
        %vm494 = vcmp.lt.f32.partialorder %v458, 15.5
        %vm495 = vcmp.lt.f32.partialorder %v459, 15.5
        %vm496 = vcmp.lt.f32.partialorder %v460, 15.5
        %vm497 = vcmp.lt.f32.partialorder %v461, 15.5
        %vm498 = vcmp.lt.f32.partialorder %v462, 15.5
        %vm499 = vcmp.lt.f32.partialorder %v463, 15.5
        %vm500 = vcmp.lt.f32.partialorder %v464, 15.5
        %vm501 = vcmp.lt.f32.partialorder %v465, 15.5
        %vm502 = vcmp.lt.f32.partialorder %v466, 15.5
        %vm503 = vcmp.lt.f32.partialorder %v467, 15.5
        %vm504 = vcmp.lt.f32.partialorder %v468, 15.5
        %vm505 = vcmp.lt.f32.partialorder %v469, 15.5
        %vm506 = vcmp.lt.f32.partialorder %v470, 15.5
        %vm507 = vcmp.lt.f32.partialorder %v471, 15.5
        %vm508 = vcmp.lt.f32.partialorder %v472, 15.5
        %vm509 = vcmp.lt.f32.partialorder %v473, 15.5
        %vm510 = vcmp.lt.f32.partialorder %v474, 15.5
        %vm511 = vcmp.lt.f32.partialorder %v475, 15.5
        %vm512 = vcmp.lt.f32.partialorder %v476, 15.5
        %vm513 = vcmp.lt.f32.partialorder %v477, 15.5
        %vm514 = vcmp.lt.f32.partialorder %v478, 15.5
        %vm515 = vcmp.lt.f32.partialorder %v479, 15.5
        %vm516 = vcmp.lt.f32.partialorder %v480, 15.5
        %vm517 = vcmp.lt.f32.partialorder %v481, 15.5
        %vm518 = vcmp.lt.f32.partialorder %v482, 15.5
        %vm519 = vcmp.lt.f32.partialorder %v483, 15.5
        %vm520 = vcmp.lt.f32.partialorder %v484, 15.5
        %vm521 = vcmp.lt.f32.partialorder %v485, 15.5
        %vm522 = vcmp.lt.f32.partialorder %v486, 15.5
        %vm523 = vcmp.lt.f32.partialorder %v487, 15.5
        %vm524 = vcmp.lt.f32.partialorder %v488, 15.5
        %vm525 = vcmp.lt.f32.partialorder %v489, 15.5
        %vm526 = vcmp.lt.f32.partialorder %v490, 15.5
        %vm527 = vcmp.lt.f32.partialorder %v491, 15.5
        %vm528 = vcmp.lt.f32.partialorder %v492, 15.5
        %vm529 = vcmp.lt.f32.partialorder %v493, 15.5
        %v530 = vld [vmem:[%s234] sm:$0xf]
        %v531 = vld [vmem:[%s234 + $0x4] sm:$0xf]
        %v532 = vld [vmem:[%s234 + $0x8] sm:$0xf]
        %v533 = vld [vmem:[%s234 + $0xc] sm:$0xf]
        %v534 = vld [vmem:[%s234 + $0x10] sm:$0xf]
        %v535 = vld [vmem:[%s234 + $0x14] sm:$0xf]
        %v536 = vld [vmem:[%s234 + $0x18] sm:$0xf]
        %v537 = vld [vmem:[%s234 + $0x1c] sm:$0xf]
        %v538 = vld [vmem:[%s234 + $0x20] sm:$0xf]
        %v539 = vld [vmem:[%s234 + $0x24] sm:$0xf]
        %v540 = vld [vmem:[%s234 + $0x28] sm:$0xf]
        %v541 = vld [vmem:[%s234 + $0x2c] sm:$0xf]
        %v542 = vld [vmem:[%s234 + $0x30] sm:$0xf]
        %v543 = vld [vmem:[%s234 + $0x34] sm:$0xf]
        %v544 = vld [vmem:[%s234 + $0x38] sm:$0xf]
        %v545 = vld [vmem:[%s234 + $0x3c] sm:$0xf]
        %v546 = vld [vmem:[%s234 + $0x40] sm:$0xf]
        %v547 = vld [vmem:[%s234 + $0x44] sm:$0xf]
        %v548 = vld [vmem:[%s234 + $0x48] sm:$0xf]
        %v549 = vld [vmem:[%s234 + $0x4c] sm:$0xf]
        %v550 = vld [vmem:[%s234 + $0x50] sm:$0xf]
        %v551 = vld [vmem:[%s234 + $0x54] sm:$0xf]
        %v552 = vld [vmem:[%s234 + $0x58] sm:$0xf]
        %v553 = vld [vmem:[%s234 + $0x5c] sm:$0xf]
        %v554 = vld [vmem:[%s234 + $0x60] sm:$0xf]
        %v555 = vld [vmem:[%s234 + $0x64] sm:$0xf]
        %v556 = vld [vmem:[%s234 + $0x68] sm:$0xf]
        %v557 = vld [vmem:[%s234 + $0x6c] sm:$0xf]
        %v558 = vld [vmem:[%s234 + $0x70] sm:$0xf]
        %v559 = vld [vmem:[%s234 + $0x74] sm:$0xf]
        %v560 = vld [vmem:[%s234 + $0x78] sm:$0xf]
        %v561 = vld [vmem:[%s234 + $0x7c] sm:$0xf]
        %v562 = vld [vmem:[%s234 + $0x80] sm:$0xf]
        %v563 = vld [vmem:[%s234 + $0x84] sm:$0xf]
        %v564 = vld [vmem:[%s234 + $0x88] sm:$0xf]
        %v565 = vld [vmem:[%s234 + $0x8c] sm:$0xf]
        %v566 = vld [vmem:[%s234 + $0x8] sm:$0xe]
        %v567 = vld [vmem:[%s234 + $0x90] sm:$0xf]
        %v568 = vld [vmem:[%s234 + $0x94] sm:$0xf]
        %v569 = vld [vmem:[%s234 + $0x98] sm:$0x1]
        %v570 = vld [vmem:[%s234 + $0x10] sm:$0xc]
        %v571 = vld [vmem:[%s234 + $0x98] sm:$0xf]
        %v572 = vld [vmem:[%s234 + $0x9c] sm:$0xf]
        %v573 = vld [vmem:[%s234 + $0xa0] sm:$0x3]
        %v610 = vunpack.c.l.b16 %v530
        %v611 = vunpack.c.l.b16 %v531
        %v612 = vunpack.c.l.b16 %v532
        %v613 = vunpack.c.l.b16 %v533
        %v614 = vunpack.c.l.b16 %v534
        %v615 = vunpack.c.l.b16 %v535
        %v616 = vunpack.c.l.b16 %v536
        %v617 = vunpack.c.l.b16 %v537
        %v618 = vunpack.c.l.b16 %v538
        %v619 = vunpack.c.l.b16 %v539
        %v620 = vunpack.c.l.b16 %v540
        %v621 = vunpack.c.l.b16 %v541
        %v622 = vunpack.c.l.b16 %v542
        %v623 = vunpack.c.l.b16 %v543
        %v624 = vunpack.c.l.b16 %v544
        %v625 = vunpack.c.l.b16 %v545
        %v626 = vunpack.c.l.b16 %v546
        %v627 = vunpack.c.l.b16 %v547
        %v628 = vunpack.c.l.b16 %v548
        %v629 = vunpack.c.l.b16 %v549
        %v630 = vunpack.c.l.b16 %v550
        %v631 = vunpack.c.l.b16 %v551
        %v632 = vunpack.c.l.b16 %v552
        %v633 = vunpack.c.l.b16 %v553
        %v634 = vunpack.c.l.b16 %v554
        %v635 = vunpack.c.l.b16 %v555
        %v636 = vunpack.c.l.b16 %v556
        %v637 = vunpack.c.l.b16 %v557
        %v638 = vunpack.c.l.b16 %v558
        %v639 = vunpack.c.l.b16 %v559
        %v640 = vunpack.c.l.b16 %v560
        %v641 = vunpack.c.l.b16 %v561
        %v642 = vunpack.c.l.b16 %v562
        %v643 = vunpack.c.l.b16 %v563
        %v644 = vunpack.c.l.b16 %v564
        %v645 = vunpack.c.l.b16 %v565
        %v646 = vpack.c.b16 %v611, %v610
        %v647 = vpack.c.b16 %v613, %v612
        %v648 = vpack.c.b16 %v615, %v614
        %v649 = vpack.c.b16 %v617, %v616
        %v650 = vpack.c.b16 %v619, %v618
        %v651 = vpack.c.b16 %v621, %v620
        %v652 = vpack.c.b16 %v623, %v622
        %v653 = vpack.c.b16 %v625, %v624
        %v654 = vpack.c.b16 %v627, %v626
        %v655 = vpack.c.b16 %v629, %v628
        %v656 = vpack.c.b16 %v631, %v630
        %v657 = vpack.c.b16 %v633, %v632
        %v658 = vpack.c.b16 %v635, %v634
        %v659 = vpack.c.b16 %v637, %v636
        %v660 = vpack.c.b16 %v639, %v638
        %v661 = vpack.c.b16 %v641, %v640
        %v662 = vpack.c.b16 %v643, %v642
        %v663 = vpack.c.b16 %v645, %v644
        %v686 = vunpack.c.l.b16 %v566
        %v687 = vunpack.c.l.b16 %v567
        %v688 = vunpack.c.l.b16 %v568
        %v689 = vunpack.c.l.b16 %v569
        %v690 = vpack.c.b16 %v613, %v686
        %v691 = vpack.c.b16 %v688, %v687
        %v692 = vpack.c.b16 %v689, %v689
        %vm693 = vcmask 1046528
        %v694 = vrot.slane %v690, 1
        %v695 = vrot.slane %v648, 1
        %v696 = vsel %vm693, %v694, %v695
        %v697 = vrot.slane %v649, 1
        %v698 = vsel %vm693, %v695, %v697
        %v699 = vrot.slane %v650, 1
        %v700 = vsel %vm693, %v697, %v699
        %v701 = vrot.slane %v651, 1
        %v702 = vsel %vm693, %v699, %v701
        %v703 = vrot.slane %v652, 1
        %v704 = vsel %vm693, %v701, %v703
        %v705 = vrot.slane %v653, 1
        %v706 = vsel %vm693, %v703, %v705
        %v707 = vrot.slane %v654, 1
        %v708 = vsel %vm693, %v705, %v707
        %v709 = vrot.slane %v655, 1
        %v710 = vsel %vm693, %v707, %v709
        %v711 = vrot.slane %v656, 1
        %v712 = vsel %vm693, %v709, %v711
        %v713 = vrot.slane %v657, 1
        %v714 = vsel %vm693, %v711, %v713
        %v715 = vrot.slane %v658, 1
        %v716 = vsel %vm693, %v713, %v715
        %v717 = vrot.slane %v659, 1
        %v718 = vsel %vm693, %v715, %v717
        %v719 = vrot.slane %v660, 1
        %v720 = vsel %vm693, %v717, %v719
        %v721 = vrot.slane %v661, 1
        %v722 = vsel %vm693, %v719, %v721
        %v723 = vrot.slane %v662, 1
        %v724 = vsel %vm693, %v721, %v723
        %v725 = vrot.slane %v663, 1
        %v726 = vsel %vm693, %v723, %v725
        %v727 = vrot.slane %v691, 1
        %v728 = vsel %vm693, %v725, %v727
        %v729 = vrot.slane %v692, 1
        %v730 = vsel %vm693, %v727, %v729
        %v753 = vunpack.c.l.b16 %v570
        %v754 = vunpack.c.l.b16 %v571
        %v755 = vunpack.c.l.b16 %v572
        %v756 = vunpack.c.l.b16 %v573
        %v757 = vpack.c.b16 %v615, %v753
        %v758 = vpack.c.b16 %v755, %v754
        %v759 = vpack.c.b16 %v756, %v756
        %vm760 = vcmask 1045504
        %v761 = vrot.slane %v757, 2
        %v762 = vrot.slane %v649, 2
        %v763 = vsel %vm760, %v761, %v762
        %v764 = vrot.slane %v650, 2
        %v765 = vsel %vm760, %v762, %v764
        %v766 = vrot.slane %v651, 2
        %v767 = vsel %vm760, %v764, %v766
        %v768 = vrot.slane %v652, 2
        %v769 = vsel %vm760, %v766, %v768
        %v770 = vrot.slane %v653, 2
        %v771 = vsel %vm760, %v768, %v770
        %v772 = vrot.slane %v654, 2
        %v773 = vsel %vm760, %v770, %v772
        %v774 = vrot.slane %v655, 2
        %v775 = vsel %vm760, %v772, %v774
        %v776 = vrot.slane %v656, 2
        %v777 = vsel %vm760, %v774, %v776
        %v778 = vrot.slane %v657, 2
        %v779 = vsel %vm760, %v776, %v778
        %v780 = vrot.slane %v658, 2
        %v781 = vsel %vm760, %v778, %v780
        %v782 = vrot.slane %v659, 2
        %v783 = vsel %vm760, %v780, %v782
        %v784 = vrot.slane %v660, 2
        %v785 = vsel %vm760, %v782, %v784
        %v786 = vrot.slane %v661, 2
        %v787 = vsel %vm760, %v784, %v786
        %v788 = vrot.slane %v662, 2
        %v789 = vsel %vm760, %v786, %v788
        %v790 = vrot.slane %v663, 2
        %v791 = vsel %vm760, %v788, %v790
        %v792 = vrot.slane %v691, 2
        %v793 = vsel %vm760, %v790, %v792
        %v794 = vrot.slane %v758, 2
        %v795 = vsel %vm760, %v792, %v794
        %v796 = vrot.slane %v759, 2
        %v797 = vsel %vm760, %v794, %v796
        %v816 = vld [vmem:[%s1] sm:$0xf]
        %v817 = vld [vmem:[%s1 + $0x4] sm:$0xf]
        %v818 = vld [vmem:[%s1 + $0x8] sm:$0xf]
        %v819 = vld [vmem:[%s1 + $0xc] sm:$0xf]
        %v820 = vld [vmem:[%s1 + $0x10] sm:$0xf]
        %v821 = vld [vmem:[%s1 + $0x14] sm:$0xf]
        %v822 = vld [vmem:[%s1 + $0x18] sm:$0xf]
        %v823 = vld [vmem:[%s1 + $0x1c] sm:$0xf]
        %v824 = vld [vmem:[%s1 + $0x20] sm:$0xf]
        %v825 = vld [vmem:[%s1 + $0x24] sm:$0xf]
        %v826 = vld [vmem:[%s1 + $0x28] sm:$0xf]
        %v827 = vld [vmem:[%s1 + $0x2c] sm:$0xf]
        %v828 = vld [vmem:[%s1 + $0x30] sm:$0xf]
        %v829 = vld [vmem:[%s1 + $0x34] sm:$0xf]
        %v830 = vld [vmem:[%s1 + $0x38] sm:$0xf]
        %v831 = vld [vmem:[%s1 + $0x3c] sm:$0xf]
        %v832 = vld [vmem:[%s1 + $0x40] sm:$0xf]
        %v833 = vld [vmem:[%s1 + $0x44] sm:$0xf]
        %v834 = vld [vmem:[%s1 + $0x48] sm:$0xf]
        %v835 = vld [vmem:[%s1 + $0x4c] sm:$0xf]
        %v836 = vld [vmem:[%s1 + $0x50] sm:$0xf]
        %v837 = vld [vmem:[%s1 + $0x54] sm:$0xf]
        %v838 = vld [vmem:[%s1 + $0x58] sm:$0xf]
        %v839 = vld [vmem:[%s1 + $0x5c] sm:$0xf]
        %v840 = vld [vmem:[%s1 + $0x60] sm:$0xf]
        %v841 = vld [vmem:[%s1 + $0x64] sm:$0xf]
        %v842 = vld [vmem:[%s1 + $0x68] sm:$0xf]
        %v843 = vld [vmem:[%s1 + $0x6c] sm:$0xf]
        %v844 = vld [vmem:[%s1 + $0x70] sm:$0xf]
        %v845 = vld [vmem:[%s1 + $0x74] sm:$0xf]
        %v846 = vld [vmem:[%s1 + $0x78] sm:$0xf]
        %v847 = vld [vmem:[%s1 + $0x7c] sm:$0xf]
        %v848 = vld [vmem:[%s1 + $0x80] sm:$0xf]
        %v849 = vld [vmem:[%s1 + $0x84] sm:$0xf]
        %v850 = vld [vmem:[%s1 + $0x88] sm:$0xf]
        %v851 = vld [vmem:[%s1 + $0x8c] sm:$0xf]
        %v852 = vld [vmem:[%s1 + $0x90] sm:$0xf]
        %v853 = vld [vmem:[%s1 + $0x94] sm:$0xf]
        %v854 = vld [vmem:[%s1 + $0x98] sm:$0xf]
        %v855 = vld [vmem:[%s1 + $0x9c] sm:$0xf]
        %v856 = vld [vmem:[%s1 + $0xa0] sm:$0xf]
        %v857 = vld [vmem:[%s1 + $0xa4] sm:$0xf]
        %v858 = vld [vmem:[%s1 + $0xa8] sm:$0xf]
        %v859 = vld [vmem:[%s1 + $0xac] sm:$0xf]
        %v860 = vld [vmem:[%s1 + $0xb0] sm:$0xf]
        %v861 = vld [vmem:[%s1 + $0xb4] sm:$0xf]
        %v862 = vld [vmem:[%s1 + $0xb8] sm:$0xf]
        %v863 = vld [vmem:[%s1 + $0xbc] sm:$0xf]
        %v912 = vunpack.c.l.b16 %v816
        %v913 = vunpack.c.l.b16 %v817
        %v914 = vunpack.c.l.b16 %v818
        %v915 = vunpack.c.l.b16 %v819
        %v916 = vunpack.c.l.b16 %v820
        %v917 = vunpack.c.l.b16 %v821
        %v918 = vunpack.c.l.b16 %v822
        %v919 = vunpack.c.l.b16 %v823
        %v920 = vunpack.c.l.b16 %v824
        %v921 = vunpack.c.l.b16 %v825
        %v922 = vunpack.c.l.b16 %v826
        %v923 = vunpack.c.l.b16 %v827
        %v924 = vunpack.c.l.b16 %v828
        %v925 = vunpack.c.l.b16 %v829
        %v926 = vunpack.c.l.b16 %v830
        %v927 = vunpack.c.l.b16 %v831
        %v928 = vunpack.c.l.b16 %v832
        %v929 = vunpack.c.l.b16 %v833
        %v930 = vunpack.c.l.b16 %v834
        %v931 = vunpack.c.l.b16 %v835
        %v932 = vunpack.c.l.b16 %v836
        %v933 = vunpack.c.l.b16 %v837
        %v934 = vunpack.c.l.b16 %v838
        %v935 = vunpack.c.l.b16 %v839
        %v936 = vunpack.c.l.b16 %v840
        %v937 = vunpack.c.l.b16 %v841
        %v938 = vunpack.c.l.b16 %v842
        %v939 = vunpack.c.l.b16 %v843
        %v940 = vunpack.c.l.b16 %v844
        %v941 = vunpack.c.l.b16 %v845
        %v942 = vunpack.c.l.b16 %v846
        %v943 = vunpack.c.l.b16 %v847
        %v944 = vunpack.c.l.b16 %v848
        %v945 = vunpack.c.l.b16 %v849
        %v946 = vunpack.c.l.b16 %v850
        %v947 = vunpack.c.l.b16 %v851
        %v948 = vunpack.c.l.b16 %v852
        %v949 = vunpack.c.l.b16 %v853
        %v950 = vunpack.c.l.b16 %v854
        %v951 = vunpack.c.l.b16 %v855
        %v952 = vunpack.c.l.b16 %v856
        %v953 = vunpack.c.l.b16 %v857
        %v954 = vunpack.c.l.b16 %v858
        %v955 = vunpack.c.l.b16 %v859
        %v956 = vunpack.c.l.b16 %v860
        %v957 = vunpack.c.l.b16 %v861
        %v958 = vunpack.c.l.b16 %v862
        %v959 = vunpack.c.l.b16 %v863
        %v960 = vpack.c.b16 %v913, %v912
        %v961 = vpack.c.b16 %v915, %v914
        %v962 = vpack.c.b16 %v917, %v916
        %v963 = vpack.c.b16 %v919, %v918
        %v964 = vpack.c.b16 %v921, %v920
        %v965 = vpack.c.b16 %v923, %v922
        %v966 = vpack.c.b16 %v925, %v924
        %v967 = vpack.c.b16 %v927, %v926
        %v968 = vpack.c.b16 %v929, %v928
        %v969 = vpack.c.b16 %v931, %v930
        %v970 = vpack.c.b16 %v933, %v932
        %v971 = vpack.c.b16 %v935, %v934
        %v972 = vpack.c.b16 %v937, %v936
        %v973 = vpack.c.b16 %v939, %v938
        %v974 = vpack.c.b16 %v941, %v940
        %v975 = vpack.c.b16 %v943, %v942
        %v976 = vpack.c.b16 %v945, %v944
        %v977 = vpack.c.b16 %v947, %v946
        %v978 = vpack.c.b16 %v949, %v948
        %v979 = vpack.c.b16 %v951, %v950
        %v980 = vpack.c.b16 %v953, %v952
        %v981 = vpack.c.b16 %v955, %v954
        %v982 = vpack.c.b16 %v957, %v956
        %v983 = vpack.c.b16 %v959, %v958
        %1008 = vmatprep.subr.bf16.mxu0 0
        %1009 = vmatpush1.bf16.msra.mxu0 %v967
        %1010 = vmatprep.subr.bf16.mxu0 0
        %1011 = vmatpush1.bf16.msra.mxu0 %v966
        %1012 = vmatprep.subr.bf16.mxu0 0
        %1013 = vmatpush1.bf16.msra.mxu0 %v965
        %1014 = vmatprep.subr.bf16.mxu0 0
        %1015 = vmatpush1.bf16.msra.mxu0 %v964
        %1016 = vmatprep.subr.bf16.mxu0 0
        %1017 = vmatpush1.bf16.msra.mxu0 %v963
        %1018 = vmatprep.subr.bf16.mxu0 0
        %1019 = vmatpush1.bf16.msra.mxu0 %v962
        %1020 = vmatprep.subr.bf16.mxu0 0
        %1021 = vmatpush1.bf16.msra.mxu0 %v961
        %1022 = vmatprep.subr.bf16.mxu0 0
        %1023 = vmatpush1.bf16.msra.mxu0 %v960
        %1024 = vmatprep.subr.bf16.mxu0 0
        %1025 = vmatpush2.bf16.msra.mxu0 %v975
        %1026 = vmatprep.subr.bf16.mxu0 0
        %1027 = vmatpush2.bf16.msra.mxu0 %v974
        %1028 = vmatprep.subr.bf16.mxu0 0
        %1029 = vmatpush2.bf16.msra.mxu0 %v973
        %1030 = vmatprep.subr.bf16.mxu0 0
        %1031 = vmatpush2.bf16.msra.mxu0 %v972
        %1032 = vmatprep.subr.bf16.mxu0 0
        %1033 = vmatpush2.bf16.msra.mxu0 %v971
        %1034 = vmatprep.subr.bf16.mxu0 0
        %1035 = vmatpush2.bf16.msra.mxu0 %v970
        %1036 = vmatprep.subr.bf16.mxu0 0
        %1037 = vmatpush2.bf16.msra.mxu0 %v969
        %1038 = vmatprep.subr.bf16.mxu0 0
        %1039 = vmatpush2.bf16.msra.mxu0 %v968
        %1040 = vmatprep.mubr.bf16.mxu0 %v696
        %1041 = vmatmul.mubr.bf16.gmra.mxu0 %v646
        %v1042 = vpop.f32.mrf.mxu0
        %v1043 = vadd.f32 0.0, %v1042
        %v1044 = vpop.f32.mrf.mxu0
        %v1045 = vpop.f32.mrf.mxu0
        %v1046 = vadd.f32 0.0, %v1045
        %v1047 = vpop.f32.mrf.mxu0
        %1048 = vmatprep.mubr.bf16.mxu0 %v698
        %1049 = vmatmul.mubr.bf16.gmra.mxu0 %v647
        %v1050 = vpop.f32.mrf.mxu0
        %v1051 = vadd.f32 0.0, %v1050
        %v1052 = vpop.f32.mrf.mxu0
        %v1053 = vpop.f32.mrf.mxu0
        %v1054 = vadd.f32 0.0, %v1053
        %v1055 = vpop.f32.mrf.mxu0
        %1056 = vmatprep.mubr.bf16.mxu0 %v700
        %1057 = vmatmul.mubr.bf16.gmra.mxu0 %v648
        %v1058 = vpop.f32.mrf.mxu0
        %v1059 = vadd.f32 0.0, %v1058
        %v1060 = vpop.f32.mrf.mxu0
        %v1061 = vpop.f32.mrf.mxu0
        %v1062 = vadd.f32 0.0, %v1061
        %v1063 = vpop.f32.mrf.mxu0
        %1064 = vmatprep.mubr.bf16.mxu0 %v702
        %1065 = vmatmul.mubr.bf16.gmra.mxu0 %v649
        %v1066 = vpop.f32.mrf.mxu0
        %v1067 = vadd.f32 0.0, %v1066
        %v1068 = vpop.f32.mrf.mxu0
        %v1069 = vpop.f32.mrf.mxu0
        %v1070 = vadd.f32 0.0, %v1069
        %v1071 = vpop.f32.mrf.mxu0
        %1072 = vmatprep.mubr.bf16.mxu0 %v704
        %1073 = vmatmul.mubr.bf16.gmra.mxu0 %v650
        %v1074 = vpop.f32.mrf.mxu0
        %v1075 = vadd.f32 0.0, %v1074
        %v1076 = vpop.f32.mrf.mxu0
        %v1077 = vpop.f32.mrf.mxu0
        %v1078 = vadd.f32 0.0, %v1077
        %v1079 = vpop.f32.mrf.mxu0
        %1080 = vmatprep.mubr.bf16.mxu0 %v706
        %1081 = vmatmul.mubr.bf16.gmra.mxu0 %v651
        %v1082 = vpop.f32.mrf.mxu0
        %v1083 = vadd.f32 0.0, %v1082
        %v1084 = vpop.f32.mrf.mxu0
        %v1085 = vpop.f32.mrf.mxu0
        %v1086 = vadd.f32 0.0, %v1085
        %v1087 = vpop.f32.mrf.mxu0
        %1088 = vmatprep.mubr.bf16.mxu0 %v708
        %1089 = vmatmul.mubr.bf16.gmra.mxu0 %v652
        %v1090 = vpop.f32.mrf.mxu0
        %v1091 = vadd.f32 0.0, %v1090
        %v1092 = vpop.f32.mrf.mxu0
        %v1093 = vpop.f32.mrf.mxu0
        %v1094 = vadd.f32 0.0, %v1093
        %v1095 = vpop.f32.mrf.mxu0
        %1096 = vmatprep.mubr.bf16.mxu0 %v710
        %1097 = vmatmul.mubr.bf16.gmra.mxu0 %v653
        %v1098 = vpop.f32.mrf.mxu0
        %v1099 = vadd.f32 0.0, %v1098
        %v1100 = vpop.f32.mrf.mxu0
        %v1101 = vpop.f32.mrf.mxu0
        %v1102 = vadd.f32 0.0, %v1101
        %v1103 = vpop.f32.mrf.mxu0
        %1104 = vmatprep.mubr.bf16.mxu0 %v712
        %1105 = vmatmul.mubr.bf16.gmra.mxu0 %v654
        %v1106 = vpop.f32.mrf.mxu0
        %v1107 = vadd.f32 0.0, %v1106
        %v1108 = vpop.f32.mrf.mxu0
        %v1109 = vpop.f32.mrf.mxu0
        %v1110 = vadd.f32 0.0, %v1109
        %v1111 = vpop.f32.mrf.mxu0
        %1112 = vmatprep.mubr.bf16.mxu0 %v714
        %1113 = vmatmul.mubr.bf16.gmra.mxu0 %v655
        %v1114 = vpop.f32.mrf.mxu0
        %v1115 = vadd.f32 0.0, %v1114
        %v1116 = vpop.f32.mrf.mxu0
        %v1117 = vpop.f32.mrf.mxu0
        %v1118 = vadd.f32 0.0, %v1117
        %v1119 = vpop.f32.mrf.mxu0
        %1120 = vmatprep.mubr.bf16.mxu0 %v716
        %1121 = vmatmul.mubr.bf16.gmra.mxu0 %v656
        %v1122 = vpop.f32.mrf.mxu0
        %v1123 = vadd.f32 0.0, %v1122
        %v1124 = vpop.f32.mrf.mxu0
        %v1125 = vpop.f32.mrf.mxu0
        %v1126 = vadd.f32 0.0, %v1125
        %v1127 = vpop.f32.mrf.mxu0
        %1128 = vmatprep.mubr.bf16.mxu0 %v718
        %1129 = vmatmul.mubr.bf16.gmra.mxu0 %v657
        %v1130 = vpop.f32.mrf.mxu0
        %v1131 = vadd.f32 0.0, %v1130
        %v1132 = vpop.f32.mrf.mxu0
        %v1133 = vpop.f32.mrf.mxu0
        %v1134 = vadd.f32 0.0, %v1133
        %v1135 = vpop.f32.mrf.mxu0
        %1136 = vmatprep.mubr.bf16.mxu0 %v720
        %1137 = vmatmul.mubr.bf16.gmra.mxu0 %v658
        %v1138 = vpop.f32.mrf.mxu0
        %v1139 = vadd.f32 0.0, %v1138
        %v1140 = vpop.f32.mrf.mxu0
        %v1141 = vpop.f32.mrf.mxu0
        %v1142 = vadd.f32 0.0, %v1141
        %v1143 = vpop.f32.mrf.mxu0
        %1144 = vmatprep.mubr.bf16.mxu0 %v722
        %1145 = vmatmul.mubr.bf16.gmra.mxu0 %v659
        %v1146 = vpop.f32.mrf.mxu0
        %v1147 = vadd.f32 0.0, %v1146
        %v1148 = vpop.f32.mrf.mxu0
        %v1149 = vpop.f32.mrf.mxu0
        %v1150 = vadd.f32 0.0, %v1149
        %v1151 = vpop.f32.mrf.mxu0
        %1152 = vmatprep.mubr.bf16.mxu0 %v724
        %1153 = vmatmul.mubr.bf16.gmra.mxu0 %v660
        %v1154 = vpop.f32.mrf.mxu0
        %v1155 = vadd.f32 0.0, %v1154
        %v1156 = vpop.f32.mrf.mxu0
        %v1157 = vpop.f32.mrf.mxu0
        %v1158 = vadd.f32 0.0, %v1157
        %v1159 = vpop.f32.mrf.mxu0
        %1160 = vmatprep.mubr.bf16.mxu0 %v726
        %1161 = vmatmul.mubr.bf16.gmra.mxu0 %v661
        %v1162 = vpop.f32.mrf.mxu0
        %v1163 = vadd.f32 0.0, %v1162
        %v1164 = vpop.f32.mrf.mxu0
        %v1165 = vpop.f32.mrf.mxu0
        %v1166 = vadd.f32 0.0, %v1165
        %v1167 = vpop.f32.mrf.mxu0
        %1168 = vmatprep.mubr.bf16.mxu0 %v728
        %1169 = vmatmul.mubr.bf16.gmra.mxu0 %v662
        %v1170 = vpop.f32.mrf.mxu0
        %v1171 = vadd.f32 0.0, %v1170
        %v1172 = vpop.f32.mrf.mxu0
        %v1173 = vpop.f32.mrf.mxu0
        %v1174 = vadd.f32 0.0, %v1173
        %v1175 = vpop.f32.mrf.mxu0
        %1176 = vmatprep.mubr.bf16.mxu0 %v730
        %1177 = vmatmul.mubr.bf16.gmra.mxu0 %v663
        %v1178 = vpop.f32.mrf.mxu0
        %v1179 = vadd.f32 0.0, %v1178
        %v1180 = vpop.f32.mrf.mxu0
        %v1181 = vpop.f32.mrf.mxu0
        %v1182 = vadd.f32 0.0, %v1181
        %v1183 = vpop.f32.mrf.mxu0
        %1184 = vdwg.mxu0
        %1185 = vmatprep.subr.bf16.mxu0 0
        %1186 = vmatpush1.bf16.msra.mxu0 %v983
        %1187 = vmatprep.subr.bf16.mxu0 0
        %1188 = vmatpush1.bf16.msra.mxu0 %v982
        %1189 = vmatprep.subr.bf16.mxu0 0
        %1190 = vmatpush1.bf16.msra.mxu0 %v981
        %1191 = vmatprep.subr.bf16.mxu0 0
        %1192 = vmatpush1.bf16.msra.mxu0 %v980
        %1193 = vmatprep.subr.bf16.mxu0 0
        %1194 = vmatpush1.bf16.msra.mxu0 %v979
        %1195 = vmatprep.subr.bf16.mxu0 0
        %1196 = vmatpush1.bf16.msra.mxu0 %v978
        %1197 = vmatprep.subr.bf16.mxu0 0
        %1198 = vmatpush1.bf16.msra.mxu0 %v977
        %1199 = vmatprep.subr.bf16.mxu0 0
        %1200 = vmatpush1.bf16.msra.mxu0 %v976
        %1201 = vmatprep.subr.bf16.mxu0 0
        %1202 = vmatpush2.bf16.msra.mxu0 0
        %1203 = vmatprep.subr.bf16.mxu0 0
        %1204 = vmatpush2.bf16.msra.mxu0 0
        %1205 = vmatprep.subr.bf16.mxu0 0
        %1206 = vmatpush2.bf16.msra.mxu0 0
        %1207 = vmatprep.subr.bf16.mxu0 0
        %1208 = vmatpush2.bf16.msra.mxu0 0
        %1209 = vmatprep.subr.bf16.mxu0 0
        %1210 = vmatpush2.bf16.msra.mxu0 0
        %1211 = vmatprep.subr.bf16.mxu0 0
        %1212 = vmatpush2.bf16.msra.mxu0 0
        %1213 = vmatprep.subr.bf16.mxu0 0
        %1214 = vmatpush2.bf16.msra.mxu0 0
        %1215 = vmatprep.subr.bf16.mxu0 0
        %1216 = vmatpush2.bf16.msra.mxu0 0
        %1217 = vmatprep.mubr.bf16.mxu0 0
        %1218 = vmatmul.mubr.bf16.gmra.mxu0 %v763
        %v1219 = vpop.f32.mrf.mxu0
        %v1220 = vadd.f32 %v1043, %v1219
        %v1221 = vpop.f32.mrf.mxu0
        %v1222 = vpop.f32.mrf.mxu0
        %v1223 = vadd.f32 %v1046, %v1222
        %v1224 = vpop.f32.mrf.mxu0
        %1225 = vmatprep.mubr.bf16.mxu0 0
        %1226 = vmatmul.mubr.bf16.gmra.mxu0 %v765
        %v1227 = vpop.f32.mrf.mxu0
        %v1228 = vadd.f32 %v1051, %v1227
        %v1229 = vpop.f32.mrf.mxu0
        %v1230 = vpop.f32.mrf.mxu0
        %v1231 = vadd.f32 %v1054, %v1230
        %v1232 = vpop.f32.mrf.mxu0
        %1233 = vmatprep.mubr.bf16.mxu0 0
        %1234 = vmatmul.mubr.bf16.gmra.mxu0 %v767
        %v1235 = vpop.f32.mrf.mxu0
        %v1236 = vadd.f32 %v1059, %v1235
        %v1237 = vpop.f32.mrf.mxu0
        %v1238 = vpop.f32.mrf.mxu0
        %v1239 = vadd.f32 %v1062, %v1238
        %v1240 = vpop.f32.mrf.mxu0
        %1241 = vmatprep.mubr.bf16.mxu0 0
        %1242 = vmatmul.mubr.bf16.gmra.mxu0 %v769
        %v1243 = vpop.f32.mrf.mxu0
        %v1244 = vadd.f32 %v1067, %v1243
        %v1245 = vpop.f32.mrf.mxu0
        %v1246 = vpop.f32.mrf.mxu0
        %v1247 = vadd.f32 %v1070, %v1246
        %v1248 = vpop.f32.mrf.mxu0
        %1249 = vmatprep.mubr.bf16.mxu0 0
        %1250 = vmatmul.mubr.bf16.gmra.mxu0 %v771
        %v1251 = vpop.f32.mrf.mxu0
        %v1252 = vadd.f32 %v1075, %v1251
        %v1253 = vpop.f32.mrf.mxu0
        %v1254 = vpop.f32.mrf.mxu0
        %v1255 = vadd.f32 %v1078, %v1254
        %v1256 = vpop.f32.mrf.mxu0
        %1257 = vmatprep.mubr.bf16.mxu0 0
        %1258 = vmatmul.mubr.bf16.gmra.mxu0 %v773
        %v1259 = vpop.f32.mrf.mxu0
        %v1260 = vadd.f32 %v1083, %v1259
        %v1261 = vpop.f32.mrf.mxu0
        %v1262 = vpop.f32.mrf.mxu0
        %v1263 = vadd.f32 %v1086, %v1262
        %v1264 = vpop.f32.mrf.mxu0
        %1265 = vmatprep.mubr.bf16.mxu0 0
        %1266 = vmatmul.mubr.bf16.gmra.mxu0 %v775
        %v1267 = vpop.f32.mrf.mxu0
        %v1268 = vadd.f32 %v1091, %v1267
        %v1269 = vpop.f32.mrf.mxu0
        %v1270 = vpop.f32.mrf.mxu0
        %v1271 = vadd.f32 %v1094, %v1270
        %v1272 = vpop.f32.mrf.mxu0
        %1273 = vmatprep.mubr.bf16.mxu0 0
        %1274 = vmatmul.mubr.bf16.gmra.mxu0 %v777
        %v1275 = vpop.f32.mrf.mxu0
        %v1276 = vadd.f32 %v1099, %v1275
        %v1277 = vpop.f32.mrf.mxu0
        %v1278 = vpop.f32.mrf.mxu0
        %v1279 = vadd.f32 %v1102, %v1278
        %v1280 = vpop.f32.mrf.mxu0
        %1281 = vmatprep.mubr.bf16.mxu0 0
        %1282 = vmatmul.mubr.bf16.gmra.mxu0 %v779
        %v1283 = vpop.f32.mrf.mxu0
        %v1284 = vadd.f32 %v1107, %v1283
        %v1285 = vpop.f32.mrf.mxu0
        %v1286 = vpop.f32.mrf.mxu0
        %v1287 = vadd.f32 %v1110, %v1286
        %v1288 = vpop.f32.mrf.mxu0
        %1289 = vmatprep.mubr.bf16.mxu0 0
        %1290 = vmatmul.mubr.bf16.gmra.mxu0 %v781
        %v1291 = vpop.f32.mrf.mxu0
        %v1292 = vadd.f32 %v1115, %v1291
        %v1293 = vpop.f32.mrf.mxu0
        %v1294 = vpop.f32.mrf.mxu0
        %v1295 = vadd.f32 %v1118, %v1294
        %v1296 = vpop.f32.mrf.mxu0
        %1297 = vmatprep.mubr.bf16.mxu0 0
        %1298 = vmatmul.mubr.bf16.gmra.mxu0 %v783
        %v1299 = vpop.f32.mrf.mxu0
        %v1300 = vadd.f32 %v1123, %v1299
        %v1301 = vpop.f32.mrf.mxu0
        %v1302 = vpop.f32.mrf.mxu0
        %v1303 = vadd.f32 %v1126, %v1302
        %v1304 = vpop.f32.mrf.mxu0
        %1305 = vmatprep.mubr.bf16.mxu0 0
        %1306 = vmatmul.mubr.bf16.gmra.mxu0 %v785
        %v1307 = vpop.f32.mrf.mxu0
        %v1308 = vadd.f32 %v1131, %v1307
        %v1309 = vpop.f32.mrf.mxu0
        %v1310 = vpop.f32.mrf.mxu0
        %v1311 = vadd.f32 %v1134, %v1310
        %v1312 = vpop.f32.mrf.mxu0
        %1313 = vmatprep.mubr.bf16.mxu0 0
        %1314 = vmatmul.mubr.bf16.gmra.mxu0 %v787
        %v1315 = vpop.f32.mrf.mxu0
        %v1316 = vadd.f32 %v1139, %v1315
        %v1317 = vpop.f32.mrf.mxu0
        %v1318 = vpop.f32.mrf.mxu0
        %v1319 = vadd.f32 %v1142, %v1318
        %v1320 = vpop.f32.mrf.mxu0
        %1321 = vmatprep.mubr.bf16.mxu0 0
        %1322 = vmatmul.mubr.bf16.gmra.mxu0 %v789
        %v1323 = vpop.f32.mrf.mxu0
        %v1324 = vadd.f32 %v1147, %v1323
        %v1325 = vpop.f32.mrf.mxu0
        %v1326 = vpop.f32.mrf.mxu0
        %v1327 = vadd.f32 %v1150, %v1326
        %v1328 = vpop.f32.mrf.mxu0
        %1329 = vmatprep.mubr.bf16.mxu0 0
        %1330 = vmatmul.mubr.bf16.gmra.mxu0 %v791
        %v1331 = vpop.f32.mrf.mxu0
        %v1332 = vadd.f32 %v1155, %v1331
        %v1333 = vpop.f32.mrf.mxu0
        %v1334 = vpop.f32.mrf.mxu0
        %v1335 = vadd.f32 %v1158, %v1334
        %v1336 = vpop.f32.mrf.mxu0
        %1337 = vmatprep.mubr.bf16.mxu0 0
        %1338 = vmatmul.mubr.bf16.gmra.mxu0 %v793
        %v1339 = vpop.f32.mrf.mxu0
        %v1340 = vadd.f32 %v1163, %v1339
        %v1341 = vpop.f32.mrf.mxu0
        %v1342 = vpop.f32.mrf.mxu0
        %v1343 = vadd.f32 %v1166, %v1342
        %v1344 = vpop.f32.mrf.mxu0
        %1345 = vmatprep.mubr.bf16.mxu0 0
        %1346 = vmatmul.mubr.bf16.gmra.mxu0 %v795
        %v1347 = vpop.f32.mrf.mxu0
        %v1348 = vadd.f32 %v1171, %v1347
        %v1349 = vpop.f32.mrf.mxu0
        %v1350 = vpop.f32.mrf.mxu0
        %v1351 = vadd.f32 %v1174, %v1350
        %v1352 = vpop.f32.mrf.mxu0
        %1353 = vmatprep.mubr.bf16.mxu0 0
        %1354 = vmatmul.mubr.bf16.gmra.mxu0 %v797
        %v1355 = vpop.f32.mrf.mxu0
        %v1356 = vadd.f32 %v1179, %v1355
        %v1357 = vpop.f32.mrf.mxu0
        %v1358 = vpop.f32.mrf.mxu0
        %v1359 = vadd.f32 %v1182, %v1358
        %v1360 = vpop.f32.mrf.mxu0
        %1361 = vdwg.mxu0
        %s1362 = scalar_lea.vmem %s1, 192
        %v1363 = vld [vmem:[%s1362] sm:$0xf]
        %v1364 = vld [vmem:[%s1362 + $0x4] sm:$0xf]
        %v1365 = vld [vmem:[%s1362 + $0x8] sm:$0xf]
        %v1366 = vld [vmem:[%s1362 + $0xc] sm:$0xf]
        %v1367 = vld [vmem:[%s1362 + $0x10] sm:$0xf]
        %v1368 = vld [vmem:[%s1362 + $0x14] sm:$0xf]
        %v1369 = vld [vmem:[%s1362 + $0x18] sm:$0xf]
        %v1370 = vld [vmem:[%s1362 + $0x1c] sm:$0xf]
        %v1371 = vld [vmem:[%s1362 + $0x20] sm:$0xf]
        %v1372 = vld [vmem:[%s1362 + $0x24] sm:$0xf]
        %v1373 = vld [vmem:[%s1362 + $0x28] sm:$0xf]
        %v1374 = vld [vmem:[%s1362 + $0x2c] sm:$0xf]
        %v1375 = vld [vmem:[%s1362 + $0x30] sm:$0xf]
        %v1376 = vld [vmem:[%s1362 + $0x34] sm:$0xf]
        %v1377 = vld [vmem:[%s1362 + $0x38] sm:$0xf]
        %v1378 = vld [vmem:[%s1362 + $0x3c] sm:$0xf]
        %v1379 = vld [vmem:[%s1362 + $0x40] sm:$0xf]
        %v1380 = vld [vmem:[%s1362 + $0x44] sm:$0xf]
        %v1381 = vld [vmem:[%s1362 + $0x48] sm:$0xf]
        %v1382 = vld [vmem:[%s1362 + $0x4c] sm:$0xf]
        %v1383 = vld [vmem:[%s1362 + $0x50] sm:$0xf]
        %v1384 = vld [vmem:[%s1362 + $0x54] sm:$0xf]
        %v1385 = vld [vmem:[%s1362 + $0x58] sm:$0xf]
        %v1386 = vld [vmem:[%s1362 + $0x5c] sm:$0xf]
        %v1387 = vld [vmem:[%s1362 + $0x60] sm:$0xf]
        %v1388 = vld [vmem:[%s1362 + $0x64] sm:$0xf]
        %v1389 = vld [vmem:[%s1362 + $0x68] sm:$0xf]
        %v1390 = vld [vmem:[%s1362 + $0x6c] sm:$0xf]
        %v1391 = vld [vmem:[%s1362 + $0x70] sm:$0xf]
        %v1392 = vld [vmem:[%s1362 + $0x74] sm:$0xf]
        %v1393 = vld [vmem:[%s1362 + $0x78] sm:$0xf]
        %v1394 = vld [vmem:[%s1362 + $0x7c] sm:$0xf]
        %v1395 = vld [vmem:[%s1362 + $0x80] sm:$0xf]
        %v1396 = vld [vmem:[%s1362 + $0x84] sm:$0xf]
        %v1397 = vld [vmem:[%s1362 + $0x88] sm:$0xf]
        %v1398 = vld [vmem:[%s1362 + $0x8c] sm:$0xf]
        %v1399 = vld [vmem:[%s1362 + $0x90] sm:$0xf]
        %v1400 = vld [vmem:[%s1362 + $0x94] sm:$0xf]
        %v1401 = vld [vmem:[%s1362 + $0x98] sm:$0xf]
        %v1402 = vld [vmem:[%s1362 + $0x9c] sm:$0xf]
        %v1403 = vld [vmem:[%s1362 + $0xa0] sm:$0xf]
        %v1404 = vld [vmem:[%s1362 + $0xa4] sm:$0xf]
        %v1405 = vld [vmem:[%s1362 + $0xa8] sm:$0xf]
        %v1406 = vld [vmem:[%s1362 + $0xac] sm:$0xf]
        %v1407 = vld [vmem:[%s1362 + $0xb0] sm:$0xf]
        %v1408 = vld [vmem:[%s1362 + $0xb4] sm:$0xf]
        %v1409 = vld [vmem:[%s1362 + $0xb8] sm:$0xf]
        %v1410 = vld [vmem:[%s1362 + $0xbc] sm:$0xf]
        %v1459 = vunpack.c.l.b16 %v1363
        %v1460 = vunpack.c.l.b16 %v1364
        %v1461 = vunpack.c.l.b16 %v1365
        %v1462 = vunpack.c.l.b16 %v1366
        %v1463 = vunpack.c.l.b16 %v1367
        %v1464 = vunpack.c.l.b16 %v1368
        %v1465 = vunpack.c.l.b16 %v1369
        %v1466 = vunpack.c.l.b16 %v1370
        %v1467 = vunpack.c.l.b16 %v1371
        %v1468 = vunpack.c.l.b16 %v1372
        %v1469 = vunpack.c.l.b16 %v1373
        %v1470 = vunpack.c.l.b16 %v1374
        %v1471 = vunpack.c.l.b16 %v1375
        %v1472 = vunpack.c.l.b16 %v1376
        %v1473 = vunpack.c.l.b16 %v1377
        %v1474 = vunpack.c.l.b16 %v1378
        %v1475 = vunpack.c.l.b16 %v1379
        %v1476 = vunpack.c.l.b16 %v1380
        %v1477 = vunpack.c.l.b16 %v1381
        %v1478 = vunpack.c.l.b16 %v1382
        %v1479 = vunpack.c.l.b16 %v1383
        %v1480 = vunpack.c.l.b16 %v1384
        %v1481 = vunpack.c.l.b16 %v1385
        %v1482 = vunpack.c.l.b16 %v1386
        %v1483 = vunpack.c.l.b16 %v1387
        %v1484 = vunpack.c.l.b16 %v1388
        %v1485 = vunpack.c.l.b16 %v1389
        %v1486 = vunpack.c.l.b16 %v1390
        %v1487 = vunpack.c.l.b16 %v1391
        %v1488 = vunpack.c.l.b16 %v1392
        %v1489 = vunpack.c.l.b16 %v1393
        %v1490 = vunpack.c.l.b16 %v1394
        %v1491 = vunpack.c.l.b16 %v1395
        %v1492 = vunpack.c.l.b16 %v1396
        %v1493 = vunpack.c.l.b16 %v1397
        %v1494 = vunpack.c.l.b16 %v1398
        %v1495 = vunpack.c.l.b16 %v1399
        %v1496 = vunpack.c.l.b16 %v1400
        %v1497 = vunpack.c.l.b16 %v1401
        %v1498 = vunpack.c.l.b16 %v1402
        %v1499 = vunpack.c.l.b16 %v1403
        %v1500 = vunpack.c.l.b16 %v1404
        %v1501 = vunpack.c.l.b16 %v1405
        %v1502 = vunpack.c.l.b16 %v1406
        %v1503 = vunpack.c.l.b16 %v1407
        %v1504 = vunpack.c.l.b16 %v1408
        %v1505 = vunpack.c.l.b16 %v1409
        %v1506 = vunpack.c.l.b16 %v1410
        %v1507 = vpack.c.b16 %v1460, %v1459
        %v1508 = vpack.c.b16 %v1462, %v1461
        %v1509 = vpack.c.b16 %v1464, %v1463
        %v1510 = vpack.c.b16 %v1466, %v1465
        %v1511 = vpack.c.b16 %v1468, %v1467
        %v1512 = vpack.c.b16 %v1470, %v1469
        %v1513 = vpack.c.b16 %v1472, %v1471
        %v1514 = vpack.c.b16 %v1474, %v1473
        %v1515 = vpack.c.b16 %v1476, %v1475
        %v1516 = vpack.c.b16 %v1478, %v1477
        %v1517 = vpack.c.b16 %v1480, %v1479
        %v1518 = vpack.c.b16 %v1482, %v1481
        %v1519 = vpack.c.b16 %v1484, %v1483
        %v1520 = vpack.c.b16 %v1486, %v1485
        %v1521 = vpack.c.b16 %v1488, %v1487
        %v1522 = vpack.c.b16 %v1490, %v1489
        %v1523 = vpack.c.b16 %v1492, %v1491
        %v1524 = vpack.c.b16 %v1494, %v1493
        %v1525 = vpack.c.b16 %v1496, %v1495
        %v1526 = vpack.c.b16 %v1498, %v1497
        %v1527 = vpack.c.b16 %v1500, %v1499
        %v1528 = vpack.c.b16 %v1502, %v1501
        %v1529 = vpack.c.b16 %v1504, %v1503
        %v1530 = vpack.c.b16 %v1506, %v1505
        %1555 = vmatprep.subr.bf16.mxu0 0
        %1556 = vmatpush1.bf16.msra.mxu0 %v1514
        %1557 = vmatprep.subr.bf16.mxu0 0
        %1558 = vmatpush1.bf16.msra.mxu0 %v1513
        %1559 = vmatprep.subr.bf16.mxu0 0
        %1560 = vmatpush1.bf16.msra.mxu0 %v1512
        %1561 = vmatprep.subr.bf16.mxu0 0
        %1562 = vmatpush1.bf16.msra.mxu0 %v1511
        %1563 = vmatprep.subr.bf16.mxu0 0
        %1564 = vmatpush1.bf16.msra.mxu0 %v1510
        %1565 = vmatprep.subr.bf16.mxu0 0
        %1566 = vmatpush1.bf16.msra.mxu0 %v1509
        %1567 = vmatprep.subr.bf16.mxu0 0
        %1568 = vmatpush1.bf16.msra.mxu0 %v1508
        %1569 = vmatprep.subr.bf16.mxu0 0
        %1570 = vmatpush1.bf16.msra.mxu0 %v1507
        %1571 = vmatprep.subr.bf16.mxu0 0
        %1572 = vmatpush2.bf16.msra.mxu0 %v1522
        %1573 = vmatprep.subr.bf16.mxu0 0
        %1574 = vmatpush2.bf16.msra.mxu0 %v1521
        %1575 = vmatprep.subr.bf16.mxu0 0
        %1576 = vmatpush2.bf16.msra.mxu0 %v1520
        %1577 = vmatprep.subr.bf16.mxu0 0
        %1578 = vmatpush2.bf16.msra.mxu0 %v1519
        %1579 = vmatprep.subr.bf16.mxu0 0
        %1580 = vmatpush2.bf16.msra.mxu0 %v1518
        %1581 = vmatprep.subr.bf16.mxu0 0
        %1582 = vmatpush2.bf16.msra.mxu0 %v1517
        %1583 = vmatprep.subr.bf16.mxu0 0
        %1584 = vmatpush2.bf16.msra.mxu0 %v1516
        %1585 = vmatprep.subr.bf16.mxu0 0
        %1586 = vmatpush2.bf16.msra.mxu0 %v1515
        %1587 = vmatprep.mubr.bf16.mxu0 %v696
        %1588 = vmatmul.mubr.bf16.gmra.mxu0 %v646
        %v1589 = vpop.f32.mrf.mxu0
        %v1590 = vadd.f32 0.0, %v1589
        %v1591 = vpop.f32.mrf.mxu0
        %v1592 = vpop.f32.mrf.mxu0
        %v1593 = vadd.f32 0.0, %v1592
        %v1594 = vpop.f32.mrf.mxu0
        %1595 = vmatprep.mubr.bf16.mxu0 %v698
        %1596 = vmatmul.mubr.bf16.gmra.mxu0 %v647
        %v1597 = vpop.f32.mrf.mxu0
        %v1598 = vadd.f32 0.0, %v1597
        %v1599 = vpop.f32.mrf.mxu0
        %v1600 = vpop.f32.mrf.mxu0
        %v1601 = vadd.f32 0.0, %v1600
        %v1602 = vpop.f32.mrf.mxu0
        %1603 = vmatprep.mubr.bf16.mxu0 %v700
        %1604 = vmatmul.mubr.bf16.gmra.mxu0 %v648
        %v1605 = vpop.f32.mrf.mxu0
        %v1606 = vadd.f32 0.0, %v1605
        %v1607 = vpop.f32.mrf.mxu0
        %v1608 = vpop.f32.mrf.mxu0
        %v1609 = vadd.f32 0.0, %v1608
        %v1610 = vpop.f32.mrf.mxu0
        %1611 = vmatprep.mubr.bf16.mxu0 %v702
        %1612 = vmatmul.mubr.bf16.gmra.mxu0 %v649
        %v1613 = vpop.f32.mrf.mxu0
        %v1614 = vadd.f32 0.0, %v1613
        %v1615 = vpop.f32.mrf.mxu0
        %v1616 = vpop.f32.mrf.mxu0
        %v1617 = vadd.f32 0.0, %v1616
        %v1618 = vpop.f32.mrf.mxu0
        %1619 = vmatprep.mubr.bf16.mxu0 %v704
        %1620 = vmatmul.mubr.bf16.gmra.mxu0 %v650
        %v1621 = vpop.f32.mrf.mxu0
        %v1622 = vadd.f32 0.0, %v1621
        %v1623 = vpop.f32.mrf.mxu0
        %v1624 = vpop.f32.mrf.mxu0
        %v1625 = vadd.f32 0.0, %v1624
        %v1626 = vpop.f32.mrf.mxu0
        %1627 = vmatprep.mubr.bf16.mxu0 %v706
        %1628 = vmatmul.mubr.bf16.gmra.mxu0 %v651
        %v1629 = vpop.f32.mrf.mxu0
        %v1630 = vadd.f32 0.0, %v1629
        %v1631 = vpop.f32.mrf.mxu0
        %v1632 = vpop.f32.mrf.mxu0
        %v1633 = vadd.f32 0.0, %v1632
        %v1634 = vpop.f32.mrf.mxu0
        %1635 = vmatprep.mubr.bf16.mxu0 %v708
        %1636 = vmatmul.mubr.bf16.gmra.mxu0 %v652
        %v1637 = vpop.f32.mrf.mxu0
        %v1638 = vadd.f32 0.0, %v1637
        %v1639 = vpop.f32.mrf.mxu0
        %v1640 = vpop.f32.mrf.mxu0
        %v1641 = vadd.f32 0.0, %v1640
        %v1642 = vpop.f32.mrf.mxu0
        %1643 = vmatprep.mubr.bf16.mxu0 %v710
        %1644 = vmatmul.mubr.bf16.gmra.mxu0 %v653
        %v1645 = vpop.f32.mrf.mxu0
        %v1646 = vadd.f32 0.0, %v1645
        %v1647 = vpop.f32.mrf.mxu0
        %v1648 = vpop.f32.mrf.mxu0
        %v1649 = vadd.f32 0.0, %v1648
        %v1650 = vpop.f32.mrf.mxu0
        %1651 = vmatprep.mubr.bf16.mxu0 %v712
        %1652 = vmatmul.mubr.bf16.gmra.mxu0 %v654
        %v1653 = vpop.f32.mrf.mxu0
        %v1654 = vadd.f32 0.0, %v1653
        %v1655 = vpop.f32.mrf.mxu0
        %v1656 = vpop.f32.mrf.mxu0
        %v1657 = vadd.f32 0.0, %v1656
        %v1658 = vpop.f32.mrf.mxu0
        %1659 = vmatprep.mubr.bf16.mxu0 %v714
        %1660 = vmatmul.mubr.bf16.gmra.mxu0 %v655
        %v1661 = vpop.f32.mrf.mxu0
        %v1662 = vadd.f32 0.0, %v1661
        %v1663 = vpop.f32.mrf.mxu0
        %v1664 = vpop.f32.mrf.mxu0
        %v1665 = vadd.f32 0.0, %v1664
        %v1666 = vpop.f32.mrf.mxu0
        %1667 = vmatprep.mubr.bf16.mxu0 %v716
        %1668 = vmatmul.mubr.bf16.gmra.mxu0 %v656
        %v1669 = vpop.f32.mrf.mxu0
        %v1670 = vadd.f32 0.0, %v1669
        %v1671 = vpop.f32.mrf.mxu0
        %v1672 = vpop.f32.mrf.mxu0
        %v1673 = vadd.f32 0.0, %v1672
        %v1674 = vpop.f32.mrf.mxu0
        %1675 = vmatprep.mubr.bf16.mxu0 %v718
        %1676 = vmatmul.mubr.bf16.gmra.mxu0 %v657
        %v1677 = vpop.f32.mrf.mxu0
        %v1678 = vadd.f32 0.0, %v1677
        %v1679 = vpop.f32.mrf.mxu0
        %v1680 = vpop.f32.mrf.mxu0
        %v1681 = vadd.f32 0.0, %v1680
        %v1682 = vpop.f32.mrf.mxu0
        %1683 = vmatprep.mubr.bf16.mxu0 %v720
        %1684 = vmatmul.mubr.bf16.gmra.mxu0 %v658
        %v1685 = vpop.f32.mrf.mxu0
        %v1686 = vadd.f32 0.0, %v1685
        %v1687 = vpop.f32.mrf.mxu0
        %v1688 = vpop.f32.mrf.mxu0
        %v1689 = vadd.f32 0.0, %v1688
        %v1690 = vpop.f32.mrf.mxu0
        %1691 = vmatprep.mubr.bf16.mxu0 %v722
        %1692 = vmatmul.mubr.bf16.gmra.mxu0 %v659
        %v1693 = vpop.f32.mrf.mxu0
        %v1694 = vadd.f32 0.0, %v1693
        %v1695 = vpop.f32.mrf.mxu0
        %v1696 = vpop.f32.mrf.mxu0
        %v1697 = vadd.f32 0.0, %v1696
        %v1698 = vpop.f32.mrf.mxu0
        %1699 = vmatprep.mubr.bf16.mxu0 %v724
        %1700 = vmatmul.mubr.bf16.gmra.mxu0 %v660
        %v1701 = vpop.f32.mrf.mxu0
        %v1702 = vadd.f32 0.0, %v1701
        %v1703 = vpop.f32.mrf.mxu0
        %v1704 = vpop.f32.mrf.mxu0
        %v1705 = vadd.f32 0.0, %v1704
        %v1706 = vpop.f32.mrf.mxu0
        %1707 = vmatprep.mubr.bf16.mxu0 %v726
        %1708 = vmatmul.mubr.bf16.gmra.mxu0 %v661
        %v1709 = vpop.f32.mrf.mxu0
        %v1710 = vadd.f32 0.0, %v1709
        %v1711 = vpop.f32.mrf.mxu0
        %v1712 = vpop.f32.mrf.mxu0
        %v1713 = vadd.f32 0.0, %v1712
        %v1714 = vpop.f32.mrf.mxu0
        %1715 = vmatprep.mubr.bf16.mxu0 %v728
        %1716 = vmatmul.mubr.bf16.gmra.mxu0 %v662
        %v1717 = vpop.f32.mrf.mxu0
        %v1718 = vadd.f32 0.0, %v1717
        %v1719 = vpop.f32.mrf.mxu0
        %v1720 = vpop.f32.mrf.mxu0
        %v1721 = vadd.f32 0.0, %v1720
        %v1722 = vpop.f32.mrf.mxu0
        %1723 = vmatprep.mubr.bf16.mxu0 %v730
        %1724 = vmatmul.mubr.bf16.gmra.mxu0 %v663
        %v1725 = vpop.f32.mrf.mxu0
        %v1726 = vadd.f32 0.0, %v1725
        %v1727 = vpop.f32.mrf.mxu0
        %v1728 = vpop.f32.mrf.mxu0
        %v1729 = vadd.f32 0.0, %v1728
        %v1730 = vpop.f32.mrf.mxu0
        %1731 = vdwg.mxu0
        %1732 = vmatprep.subr.bf16.mxu0 0
        %1733 = vmatpush1.bf16.msra.mxu0 %v1530
        %1734 = vmatprep.subr.bf16.mxu0 0
        %1735 = vmatpush1.bf16.msra.mxu0 %v1529
        %1736 = vmatprep.subr.bf16.mxu0 0
        %1737 = vmatpush1.bf16.msra.mxu0 %v1528
        %1738 = vmatprep.subr.bf16.mxu0 0
        %1739 = vmatpush1.bf16.msra.mxu0 %v1527
        %1740 = vmatprep.subr.bf16.mxu0 0
        %1741 = vmatpush1.bf16.msra.mxu0 %v1526
        %1742 = vmatprep.subr.bf16.mxu0 0
        %1743 = vmatpush1.bf16.msra.mxu0 %v1525
        %1744 = vmatprep.subr.bf16.mxu0 0
        %1745 = vmatpush1.bf16.msra.mxu0 %v1524
        %1746 = vmatprep.subr.bf16.mxu0 0
        %1747 = vmatpush1.bf16.msra.mxu0 %v1523
        %1748 = vmatprep.subr.bf16.mxu0 0
        %1749 = vmatpush2.bf16.msra.mxu0 0
        %1750 = vmatprep.subr.bf16.mxu0 0
        %1751 = vmatpush2.bf16.msra.mxu0 0
        %1752 = vmatprep.subr.bf16.mxu0 0
        %1753 = vmatpush2.bf16.msra.mxu0 0
        %1754 = vmatprep.subr.bf16.mxu0 0
        %1755 = vmatpush2.bf16.msra.mxu0 0
        %1756 = vmatprep.subr.bf16.mxu0 0
        %1757 = vmatpush2.bf16.msra.mxu0 0
        %1758 = vmatprep.subr.bf16.mxu0 0
        %1759 = vmatpush2.bf16.msra.mxu0 0
        %1760 = vmatprep.subr.bf16.mxu0 0
        %1761 = vmatpush2.bf16.msra.mxu0 0
        %1762 = vmatprep.subr.bf16.mxu0 0
        %1763 = vmatpush2.bf16.msra.mxu0 0
        %1764 = vmatprep.mubr.bf16.mxu0 0
        %1765 = vmatmul.mubr.bf16.gmra.mxu0 %v763
        %v1766 = vpop.f32.mrf.mxu0
        %v1767 = vadd.f32 %v1590, %v1766
        %v1768 = vpop.f32.mrf.mxu0
        %v1769 = vpop.f32.mrf.mxu0
        %v1770 = vadd.f32 %v1593, %v1769
        %v1771 = vpop.f32.mrf.mxu0
        %1772 = vmatprep.mubr.bf16.mxu0 0
        %1773 = vmatmul.mubr.bf16.gmra.mxu0 %v765
        %v1774 = vpop.f32.mrf.mxu0
        %v1775 = vadd.f32 %v1598, %v1774
        %v1776 = vpop.f32.mrf.mxu0
        %v1777 = vpop.f32.mrf.mxu0
        %v1778 = vadd.f32 %v1601, %v1777
        %v1779 = vpop.f32.mrf.mxu0
        %1780 = vmatprep.mubr.bf16.mxu0 0
        %1781 = vmatmul.mubr.bf16.gmra.mxu0 %v767
        %v1782 = vpop.f32.mrf.mxu0
        %v1783 = vadd.f32 %v1606, %v1782
        %v1784 = vpop.f32.mrf.mxu0
        %v1785 = vpop.f32.mrf.mxu0
        %v1786 = vadd.f32 %v1609, %v1785
        %v1787 = vpop.f32.mrf.mxu0
        %1788 = vmatprep.mubr.bf16.mxu0 0
        %1789 = vmatmul.mubr.bf16.gmra.mxu0 %v769
        %v1790 = vpop.f32.mrf.mxu0
        %v1791 = vadd.f32 %v1614, %v1790
        %v1792 = vpop.f32.mrf.mxu0
        %v1793 = vpop.f32.mrf.mxu0
        %v1794 = vadd.f32 %v1617, %v1793
        %v1795 = vpop.f32.mrf.mxu0
        %1796 = vmatprep.mubr.bf16.mxu0 0
        %1797 = vmatmul.mubr.bf16.gmra.mxu0 %v771
        %v1798 = vpop.f32.mrf.mxu0
        %v1799 = vadd.f32 %v1622, %v1798
        %v1800 = vpop.f32.mrf.mxu0
        %v1801 = vpop.f32.mrf.mxu0
        %v1802 = vadd.f32 %v1625, %v1801
        %v1803 = vpop.f32.mrf.mxu0
        %1804 = vmatprep.mubr.bf16.mxu0 0
        %1805 = vmatmul.mubr.bf16.gmra.mxu0 %v773
        %v1806 = vpop.f32.mrf.mxu0
        %v1807 = vadd.f32 %v1630, %v1806
        %v1808 = vpop.f32.mrf.mxu0
        %v1809 = vpop.f32.mrf.mxu0
        %v1810 = vadd.f32 %v1633, %v1809
        %v1811 = vpop.f32.mrf.mxu0
        %1812 = vmatprep.mubr.bf16.mxu0 0
        %1813 = vmatmul.mubr.bf16.gmra.mxu0 %v775
        %v1814 = vpop.f32.mrf.mxu0
        %v1815 = vadd.f32 %v1638, %v1814
        %v1816 = vpop.f32.mrf.mxu0
        %v1817 = vpop.f32.mrf.mxu0
        %v1818 = vadd.f32 %v1641, %v1817
        %v1819 = vpop.f32.mrf.mxu0
        %1820 = vmatprep.mubr.bf16.mxu0 0
        %1821 = vmatmul.mubr.bf16.gmra.mxu0 %v777
        %v1822 = vpop.f32.mrf.mxu0
        %v1823 = vadd.f32 %v1646, %v1822
        %v1824 = vpop.f32.mrf.mxu0
        %v1825 = vpop.f32.mrf.mxu0
        %v1826 = vadd.f32 %v1649, %v1825
        %v1827 = vpop.f32.mrf.mxu0
        %1828 = vmatprep.mubr.bf16.mxu0 0
        %1829 = vmatmul.mubr.bf16.gmra.mxu0 %v779
        %v1830 = vpop.f32.mrf.mxu0
        %v1831 = vadd.f32 %v1654, %v1830
        %v1832 = vpop.f32.mrf.mxu0
        %v1833 = vpop.f32.mrf.mxu0
        %v1834 = vadd.f32 %v1657, %v1833
        %v1835 = vpop.f32.mrf.mxu0
        %1836 = vmatprep.mubr.bf16.mxu0 0
        %1837 = vmatmul.mubr.bf16.gmra.mxu0 %v781
        %v1838 = vpop.f32.mrf.mxu0
        %v1839 = vadd.f32 %v1662, %v1838
        %v1840 = vpop.f32.mrf.mxu0
        %v1841 = vpop.f32.mrf.mxu0
        %v1842 = vadd.f32 %v1665, %v1841
        %v1843 = vpop.f32.mrf.mxu0
        %1844 = vmatprep.mubr.bf16.mxu0 0
        %1845 = vmatmul.mubr.bf16.gmra.mxu0 %v783
        %v1846 = vpop.f32.mrf.mxu0
        %v1847 = vadd.f32 %v1670, %v1846
        %v1848 = vpop.f32.mrf.mxu0
        %v1849 = vpop.f32.mrf.mxu0
        %v1850 = vadd.f32 %v1673, %v1849
        %v1851 = vpop.f32.mrf.mxu0
        %1852 = vmatprep.mubr.bf16.mxu0 0
        %1853 = vmatmul.mubr.bf16.gmra.mxu0 %v785
        %v1854 = vpop.f32.mrf.mxu0
        %v1855 = vadd.f32 %v1678, %v1854
        %v1856 = vpop.f32.mrf.mxu0
        %v1857 = vpop.f32.mrf.mxu0
        %v1858 = vadd.f32 %v1681, %v1857
        %v1859 = vpop.f32.mrf.mxu0
        %1860 = vmatprep.mubr.bf16.mxu0 0
        %1861 = vmatmul.mubr.bf16.gmra.mxu0 %v787
        %v1862 = vpop.f32.mrf.mxu0
        %v1863 = vadd.f32 %v1686, %v1862
        %v1864 = vpop.f32.mrf.mxu0
        %v1865 = vpop.f32.mrf.mxu0
        %v1866 = vadd.f32 %v1689, %v1865
        %v1867 = vpop.f32.mrf.mxu0
        %1868 = vmatprep.mubr.bf16.mxu0 0
        %1869 = vmatmul.mubr.bf16.gmra.mxu0 %v789
        %v1870 = vpop.f32.mrf.mxu0
        %v1871 = vadd.f32 %v1694, %v1870
        %v1872 = vpop.f32.mrf.mxu0
        %v1873 = vpop.f32.mrf.mxu0
        %v1874 = vadd.f32 %v1697, %v1873
        %v1875 = vpop.f32.mrf.mxu0
        %1876 = vmatprep.mubr.bf16.mxu0 0
        %1877 = vmatmul.mubr.bf16.gmra.mxu0 %v791
        %v1878 = vpop.f32.mrf.mxu0
        %v1879 = vadd.f32 %v1702, %v1878
        %v1880 = vpop.f32.mrf.mxu0
        %v1881 = vpop.f32.mrf.mxu0
        %v1882 = vadd.f32 %v1705, %v1881
        %v1883 = vpop.f32.mrf.mxu0
        %1884 = vmatprep.mubr.bf16.mxu0 0
        %1885 = vmatmul.mubr.bf16.gmra.mxu0 %v793
        %v1886 = vpop.f32.mrf.mxu0
        %v1887 = vadd.f32 %v1710, %v1886
        %v1888 = vpop.f32.mrf.mxu0
        %v1889 = vpop.f32.mrf.mxu0
        %v1890 = vadd.f32 %v1713, %v1889
        %v1891 = vpop.f32.mrf.mxu0
        %1892 = vmatprep.mubr.bf16.mxu0 0
        %1893 = vmatmul.mubr.bf16.gmra.mxu0 %v795
        %v1894 = vpop.f32.mrf.mxu0
        %v1895 = vadd.f32 %v1718, %v1894
        %v1896 = vpop.f32.mrf.mxu0
        %v1897 = vpop.f32.mrf.mxu0
        %v1898 = vadd.f32 %v1721, %v1897
        %v1899 = vpop.f32.mrf.mxu0
        %1900 = vmatprep.mubr.bf16.mxu0 0
        %1901 = vmatmul.mubr.bf16.gmra.mxu0 %v797
        %v1902 = vpop.f32.mrf.mxu0
        %v1903 = vadd.f32 %v1726, %v1902
        %v1904 = vpop.f32.mrf.mxu0
        %v1905 = vpop.f32.mrf.mxu0
        %v1906 = vadd.f32 %v1729, %v1905
        %v1907 = vpop.f32.mrf.mxu0
        %1908 = vdwg.mxu0
        %vm1945 = vcmask 1046528
        %v1946 = vrot.slane %v1767, 1
        %v1947 = vrot.slane %v1770, 1
        %v1948 = vsel %vm1945, %v1946, %v1947
        %v1949 = vrot.slane %v1775, 1
        %v1950 = vsel %vm1945, %v1947, %v1949
        %v1951 = vrot.slane %v1778, 1
        %v1952 = vsel %vm1945, %v1949, %v1951
        %v1953 = vrot.slane %v1783, 1
        %v1954 = vsel %vm1945, %v1951, %v1953
        %v1955 = vrot.slane %v1786, 1
        %v1956 = vsel %vm1945, %v1953, %v1955
        %v1957 = vrot.slane %v1791, 1
        %v1958 = vsel %vm1945, %v1955, %v1957
        %v1959 = vrot.slane %v1794, 1
        %v1960 = vsel %vm1945, %v1957, %v1959
        %v1961 = vrot.slane %v1799, 1
        %v1962 = vsel %vm1945, %v1959, %v1961
        %v1963 = vrot.slane %v1802, 1
        %v1964 = vsel %vm1945, %v1961, %v1963
        %v1965 = vrot.slane %v1807, 1
        %v1966 = vsel %vm1945, %v1963, %v1965
        %v1967 = vrot.slane %v1810, 1
        %v1968 = vsel %vm1945, %v1965, %v1967
        %v1969 = vrot.slane %v1815, 1
        %v1970 = vsel %vm1945, %v1967, %v1969
        %v1971 = vrot.slane %v1818, 1
        %v1972 = vsel %vm1945, %v1969, %v1971
        %v1973 = vrot.slane %v1823, 1
        %v1974 = vsel %vm1945, %v1971, %v1973
        %v1975 = vrot.slane %v1826, 1
        %v1976 = vsel %vm1945, %v1973, %v1975
        %v1977 = vrot.slane %v1831, 1
        %v1978 = vsel %vm1945, %v1975, %v1977
        %v1979 = vrot.slane %v1834, 1
        %v1980 = vsel %vm1945, %v1977, %v1979
        %v1981 = vrot.slane %v1839, 1
        %v1982 = vsel %vm1945, %v1979, %v1981
        %v1983 = vrot.slane %v1842, 1
        %v1984 = vsel %vm1945, %v1981, %v1983
        %v1985 = vrot.slane %v1847, 1
        %v1986 = vsel %vm1945, %v1983, %v1985
        %v1987 = vrot.slane %v1850, 1
        %v1988 = vsel %vm1945, %v1985, %v1987
        %v1989 = vrot.slane %v1855, 1
        %v1990 = vsel %vm1945, %v1987, %v1989
        %v1991 = vrot.slane %v1858, 1
        %v1992 = vsel %vm1945, %v1989, %v1991
        %v1993 = vrot.slane %v1863, 1
        %v1994 = vsel %vm1945, %v1991, %v1993
        %v1995 = vrot.slane %v1866, 1
        %v1996 = vsel %vm1945, %v1993, %v1995
        %v1997 = vrot.slane %v1871, 1
        %v1998 = vsel %vm1945, %v1995, %v1997
        %v1999 = vrot.slane %v1874, 1
        %v2000 = vsel %vm1945, %v1997, %v1999
        %v2001 = vrot.slane %v1879, 1
        %v2002 = vsel %vm1945, %v1999, %v2001
        %v2003 = vrot.slane %v1882, 1
        %v2004 = vsel %vm1945, %v2001, %v2003
        %v2005 = vrot.slane %v1887, 1
        %v2006 = vsel %vm1945, %v2003, %v2005
        %v2007 = vrot.slane %v1890, 1
        %v2008 = vsel %vm1945, %v2005, %v2007
        %v2009 = vrot.slane %v1895, 1
        %v2010 = vsel %vm1945, %v2007, %v2009
        %v2011 = vrot.slane %v1898, 1
        %v2012 = vsel %vm1945, %v2009, %v2011
        %v2013 = vrot.slane %v1903, 1
        %v2014 = vsel %vm1945, %v2011, %v2013
        %v2015 = vrot.slane %v1906, 1
        %v2016 = vsel %vm1945, %v2013, %v2015
        %v2053 = vadd.f32 %v1220, %v1948
        %v2054 = vadd.f32 %v1223, %v1950
        %v2055 = vadd.f32 %v1228, %v1952
        %v2056 = vadd.f32 %v1231, %v1954
        %v2057 = vadd.f32 %v1236, %v1956
        %v2058 = vadd.f32 %v1239, %v1958
        %v2059 = vadd.f32 %v1244, %v1960
        %v2060 = vadd.f32 %v1247, %v1962
        %v2061 = vadd.f32 %v1252, %v1964
        %v2062 = vadd.f32 %v1255, %v1966
        %v2063 = vadd.f32 %v1260, %v1968
        %v2064 = vadd.f32 %v1263, %v1970
        %v2065 = vadd.f32 %v1268, %v1972
        %v2066 = vadd.f32 %v1271, %v1974
        %v2067 = vadd.f32 %v1276, %v1976
        %v2068 = vadd.f32 %v1279, %v1978
        %v2069 = vadd.f32 %v1284, %v1980
        %v2070 = vadd.f32 %v1287, %v1982
        %v2071 = vadd.f32 %v1292, %v1984
        %v2072 = vadd.f32 %v1295, %v1986
        %v2073 = vadd.f32 %v1300, %v1988
        %v2074 = vadd.f32 %v1303, %v1990
        %v2075 = vadd.f32 %v1308, %v1992
        %v2076 = vadd.f32 %v1311, %v1994
        %v2077 = vadd.f32 %v1316, %v1996
        %v2078 = vadd.f32 %v1319, %v1998
        %v2079 = vadd.f32 %v1324, %v2000
        %v2080 = vadd.f32 %v1327, %v2002
        %v2081 = vadd.f32 %v1332, %v2004
        %v2082 = vadd.f32 %v1335, %v2006
        %v2083 = vadd.f32 %v1340, %v2008
        %v2084 = vadd.f32 %v1343, %v2010
        %v2085 = vadd.f32 %v1348, %v2012
        %v2086 = vadd.f32 %v1351, %v2014
        %v2087 = vadd.f32 %v1356, %v2016
        %v2088 = vadd.f32 %v1359, %v2015
        %s2089 = scalar_lea.vmem %s1, 384
        %v2090 = vld [vmem:[%s2089] sm:$0xf]
        %v2091 = vld [vmem:[%s2089 + $0x4] sm:$0xf]
        %v2092 = vld [vmem:[%s2089 + $0x8] sm:$0xf]
        %v2093 = vld [vmem:[%s2089 + $0xc] sm:$0xf]
        %v2094 = vld [vmem:[%s2089 + $0x10] sm:$0xf]
        %v2095 = vld [vmem:[%s2089 + $0x14] sm:$0xf]
        %v2096 = vld [vmem:[%s2089 + $0x18] sm:$0xf]
        %v2097 = vld [vmem:[%s2089 + $0x1c] sm:$0xf]
        %v2098 = vld [vmem:[%s2089 + $0x20] sm:$0xf]
        %v2099 = vld [vmem:[%s2089 + $0x24] sm:$0xf]
        %v2100 = vld [vmem:[%s2089 + $0x28] sm:$0xf]
        %v2101 = vld [vmem:[%s2089 + $0x2c] sm:$0xf]
        %v2102 = vld [vmem:[%s2089 + $0x30] sm:$0xf]
        %v2103 = vld [vmem:[%s2089 + $0x34] sm:$0xf]
        %v2104 = vld [vmem:[%s2089 + $0x38] sm:$0xf]
        %v2105 = vld [vmem:[%s2089 + $0x3c] sm:$0xf]
        %v2106 = vld [vmem:[%s2089 + $0x40] sm:$0xf]
        %v2107 = vld [vmem:[%s2089 + $0x44] sm:$0xf]
        %v2108 = vld [vmem:[%s2089 + $0x48] sm:$0xf]
        %v2109 = vld [vmem:[%s2089 + $0x4c] sm:$0xf]
        %v2110 = vld [vmem:[%s2089 + $0x50] sm:$0xf]
        %v2111 = vld [vmem:[%s2089 + $0x54] sm:$0xf]
        %v2112 = vld [vmem:[%s2089 + $0x58] sm:$0xf]
        %v2113 = vld [vmem:[%s2089 + $0x5c] sm:$0xf]
        %v2114 = vld [vmem:[%s2089 + $0x60] sm:$0xf]
        %v2115 = vld [vmem:[%s2089 + $0x64] sm:$0xf]
        %v2116 = vld [vmem:[%s2089 + $0x68] sm:$0xf]
        %v2117 = vld [vmem:[%s2089 + $0x6c] sm:$0xf]
        %v2118 = vld [vmem:[%s2089 + $0x70] sm:$0xf]
        %v2119 = vld [vmem:[%s2089 + $0x74] sm:$0xf]
        %v2120 = vld [vmem:[%s2089 + $0x78] sm:$0xf]
        %v2121 = vld [vmem:[%s2089 + $0x7c] sm:$0xf]
        %v2122 = vld [vmem:[%s2089 + $0x80] sm:$0xf]
        %v2123 = vld [vmem:[%s2089 + $0x84] sm:$0xf]
        %v2124 = vld [vmem:[%s2089 + $0x88] sm:$0xf]
        %v2125 = vld [vmem:[%s2089 + $0x8c] sm:$0xf]
        %v2126 = vld [vmem:[%s2089 + $0x90] sm:$0xf]
        %v2127 = vld [vmem:[%s2089 + $0x94] sm:$0xf]
        %v2128 = vld [vmem:[%s2089 + $0x98] sm:$0xf]
        %v2129 = vld [vmem:[%s2089 + $0x9c] sm:$0xf]
        %v2130 = vld [vmem:[%s2089 + $0xa0] sm:$0xf]
        %v2131 = vld [vmem:[%s2089 + $0xa4] sm:$0xf]
        %v2132 = vld [vmem:[%s2089 + $0xa8] sm:$0xf]
        %v2133 = vld [vmem:[%s2089 + $0xac] sm:$0xf]
        %v2134 = vld [vmem:[%s2089 + $0xb0] sm:$0xf]
        %v2135 = vld [vmem:[%s2089 + $0xb4] sm:$0xf]
        %v2136 = vld [vmem:[%s2089 + $0xb8] sm:$0xf]
        %v2137 = vld [vmem:[%s2089 + $0xbc] sm:$0xf]
        %v2186 = vunpack.c.l.b16 %v2090
        %v2187 = vunpack.c.l.b16 %v2091
        %v2188 = vunpack.c.l.b16 %v2092
        %v2189 = vunpack.c.l.b16 %v2093
        %v2190 = vunpack.c.l.b16 %v2094
        %v2191 = vunpack.c.l.b16 %v2095
        %v2192 = vunpack.c.l.b16 %v2096
        %v2193 = vunpack.c.l.b16 %v2097
        %v2194 = vunpack.c.l.b16 %v2098
        %v2195 = vunpack.c.l.b16 %v2099
        %v2196 = vunpack.c.l.b16 %v2100
        %v2197 = vunpack.c.l.b16 %v2101
        %v2198 = vunpack.c.l.b16 %v2102
        %v2199 = vunpack.c.l.b16 %v2103
        %v2200 = vunpack.c.l.b16 %v2104
        %v2201 = vunpack.c.l.b16 %v2105
        %v2202 = vunpack.c.l.b16 %v2106
        %v2203 = vunpack.c.l.b16 %v2107
        %v2204 = vunpack.c.l.b16 %v2108
        %v2205 = vunpack.c.l.b16 %v2109
        %v2206 = vunpack.c.l.b16 %v2110
        %v2207 = vunpack.c.l.b16 %v2111
        %v2208 = vunpack.c.l.b16 %v2112
        %v2209 = vunpack.c.l.b16 %v2113
        %v2210 = vunpack.c.l.b16 %v2114
        %v2211 = vunpack.c.l.b16 %v2115
        %v2212 = vunpack.c.l.b16 %v2116
        %v2213 = vunpack.c.l.b16 %v2117
        %v2214 = vunpack.c.l.b16 %v2118
        %v2215 = vunpack.c.l.b16 %v2119
        %v2216 = vunpack.c.l.b16 %v2120
        %v2217 = vunpack.c.l.b16 %v2121
        %v2218 = vunpack.c.l.b16 %v2122
        %v2219 = vunpack.c.l.b16 %v2123
        %v2220 = vunpack.c.l.b16 %v2124
        %v2221 = vunpack.c.l.b16 %v2125
        %v2222 = vunpack.c.l.b16 %v2126
        %v2223 = vunpack.c.l.b16 %v2127
        %v2224 = vunpack.c.l.b16 %v2128
        %v2225 = vunpack.c.l.b16 %v2129
        %v2226 = vunpack.c.l.b16 %v2130
        %v2227 = vunpack.c.l.b16 %v2131
        %v2228 = vunpack.c.l.b16 %v2132
        %v2229 = vunpack.c.l.b16 %v2133
        %v2230 = vunpack.c.l.b16 %v2134
        %v2231 = vunpack.c.l.b16 %v2135
        %v2232 = vunpack.c.l.b16 %v2136
        %v2233 = vunpack.c.l.b16 %v2137
        %v2234 = vpack.c.b16 %v2187, %v2186
        %v2235 = vpack.c.b16 %v2189, %v2188
        %v2236 = vpack.c.b16 %v2191, %v2190
        %v2237 = vpack.c.b16 %v2193, %v2192
        %v2238 = vpack.c.b16 %v2195, %v2194
        %v2239 = vpack.c.b16 %v2197, %v2196
        %v2240 = vpack.c.b16 %v2199, %v2198
        %v2241 = vpack.c.b16 %v2201, %v2200
        %v2242 = vpack.c.b16 %v2203, %v2202
        %v2243 = vpack.c.b16 %v2205, %v2204
        %v2244 = vpack.c.b16 %v2207, %v2206
        %v2245 = vpack.c.b16 %v2209, %v2208
        %v2246 = vpack.c.b16 %v2211, %v2210
        %v2247 = vpack.c.b16 %v2213, %v2212
        %v2248 = vpack.c.b16 %v2215, %v2214
        %v2249 = vpack.c.b16 %v2217, %v2216
        %v2250 = vpack.c.b16 %v2219, %v2218
        %v2251 = vpack.c.b16 %v2221, %v2220
        %v2252 = vpack.c.b16 %v2223, %v2222
        %v2253 = vpack.c.b16 %v2225, %v2224
        %v2254 = vpack.c.b16 %v2227, %v2226
        %v2255 = vpack.c.b16 %v2229, %v2228
        %v2256 = vpack.c.b16 %v2231, %v2230
        %v2257 = vpack.c.b16 %v2233, %v2232
        %2282 = vmatprep.subr.bf16.mxu0 0
        %2283 = vmatpush1.bf16.msra.mxu0 %v2241
        %2284 = vmatprep.subr.bf16.mxu0 0
        %2285 = vmatpush1.bf16.msra.mxu0 %v2240
        %2286 = vmatprep.subr.bf16.mxu0 0
        %2287 = vmatpush1.bf16.msra.mxu0 %v2239
        %2288 = vmatprep.subr.bf16.mxu0 0
        %2289 = vmatpush1.bf16.msra.mxu0 %v2238
        %2290 = vmatprep.subr.bf16.mxu0 0
        %2291 = vmatpush1.bf16.msra.mxu0 %v2237
        %2292 = vmatprep.subr.bf16.mxu0 0
        %2293 = vmatpush1.bf16.msra.mxu0 %v2236
        %2294 = vmatprep.subr.bf16.mxu0 0
        %2295 = vmatpush1.bf16.msra.mxu0 %v2235
        %2296 = vmatprep.subr.bf16.mxu0 0
        %2297 = vmatpush1.bf16.msra.mxu0 %v2234
        %2298 = vmatprep.subr.bf16.mxu0 0
        %2299 = vmatpush2.bf16.msra.mxu0 %v2249
        %2300 = vmatprep.subr.bf16.mxu0 0
        %2301 = vmatpush2.bf16.msra.mxu0 %v2248
        %2302 = vmatprep.subr.bf16.mxu0 0
        %2303 = vmatpush2.bf16.msra.mxu0 %v2247
        %2304 = vmatprep.subr.bf16.mxu0 0
        %2305 = vmatpush2.bf16.msra.mxu0 %v2246
        %2306 = vmatprep.subr.bf16.mxu0 0
        %2307 = vmatpush2.bf16.msra.mxu0 %v2245
        %2308 = vmatprep.subr.bf16.mxu0 0
        %2309 = vmatpush2.bf16.msra.mxu0 %v2244
        %2310 = vmatprep.subr.bf16.mxu0 0
        %2311 = vmatpush2.bf16.msra.mxu0 %v2243
        %2312 = vmatprep.subr.bf16.mxu0 0
        %2313 = vmatpush2.bf16.msra.mxu0 %v2242
        %2314 = vmatprep.mubr.bf16.mxu0 %v696
        %2315 = vmatmul.mubr.bf16.gmra.mxu0 %v646
        %v2316 = vpop.f32.mrf.mxu0
        %v2317 = vadd.f32 0.0, %v2316
        %v2318 = vpop.f32.mrf.mxu0
        %v2319 = vpop.f32.mrf.mxu0
        %v2320 = vadd.f32 0.0, %v2319
        %v2321 = vpop.f32.mrf.mxu0
        %2322 = vmatprep.mubr.bf16.mxu0 %v698
        %2323 = vmatmul.mubr.bf16.gmra.mxu0 %v647
        %v2324 = vpop.f32.mrf.mxu0
        %v2325 = vadd.f32 0.0, %v2324
        %v2326 = vpop.f32.mrf.mxu0
        %v2327 = vpop.f32.mrf.mxu0
        %v2328 = vadd.f32 0.0, %v2327
        %v2329 = vpop.f32.mrf.mxu0
        %2330 = vmatprep.mubr.bf16.mxu0 %v700
        %2331 = vmatmul.mubr.bf16.gmra.mxu0 %v648
        %v2332 = vpop.f32.mrf.mxu0
        %v2333 = vadd.f32 0.0, %v2332
        %v2334 = vpop.f32.mrf.mxu0
        %v2335 = vpop.f32.mrf.mxu0
        %v2336 = vadd.f32 0.0, %v2335
        %v2337 = vpop.f32.mrf.mxu0
        %2338 = vmatprep.mubr.bf16.mxu0 %v702
        %2339 = vmatmul.mubr.bf16.gmra.mxu0 %v649
        %v2340 = vpop.f32.mrf.mxu0
        %v2341 = vadd.f32 0.0, %v2340
        %v2342 = vpop.f32.mrf.mxu0
        %v2343 = vpop.f32.mrf.mxu0
        %v2344 = vadd.f32 0.0, %v2343
        %v2345 = vpop.f32.mrf.mxu0
        %2346 = vmatprep.mubr.bf16.mxu0 %v704
        %2347 = vmatmul.mubr.bf16.gmra.mxu0 %v650
        %v2348 = vpop.f32.mrf.mxu0
        %v2349 = vadd.f32 0.0, %v2348
        %v2350 = vpop.f32.mrf.mxu0
        %v2351 = vpop.f32.mrf.mxu0
        %v2352 = vadd.f32 0.0, %v2351
        %v2353 = vpop.f32.mrf.mxu0
        %2354 = vmatprep.mubr.bf16.mxu0 %v706
        %2355 = vmatmul.mubr.bf16.gmra.mxu0 %v651
        %v2356 = vpop.f32.mrf.mxu0
        %v2357 = vadd.f32 0.0, %v2356
        %v2358 = vpop.f32.mrf.mxu0
        %v2359 = vpop.f32.mrf.mxu0
        %v2360 = vadd.f32 0.0, %v2359
        %v2361 = vpop.f32.mrf.mxu0
        %2362 = vmatprep.mubr.bf16.mxu0 %v708
        %2363 = vmatmul.mubr.bf16.gmra.mxu0 %v652
        %v2364 = vpop.f32.mrf.mxu0
        %v2365 = vadd.f32 0.0, %v2364
        %v2366 = vpop.f32.mrf.mxu0
        %v2367 = vpop.f32.mrf.mxu0
        %v2368 = vadd.f32 0.0, %v2367
        %v2369 = vpop.f32.mrf.mxu0
        %2370 = vmatprep.mubr.bf16.mxu0 %v710
        %2371 = vmatmul.mubr.bf16.gmra.mxu0 %v653
        %v2372 = vpop.f32.mrf.mxu0
        %v2373 = vadd.f32 0.0, %v2372
        %v2374 = vpop.f32.mrf.mxu0
        %v2375 = vpop.f32.mrf.mxu0
        %v2376 = vadd.f32 0.0, %v2375
        %v2377 = vpop.f32.mrf.mxu0
        %2378 = vmatprep.mubr.bf16.mxu0 %v712
        %2379 = vmatmul.mubr.bf16.gmra.mxu0 %v654
        %v2380 = vpop.f32.mrf.mxu0
        %v2381 = vadd.f32 0.0, %v2380
        %v2382 = vpop.f32.mrf.mxu0
        %v2383 = vpop.f32.mrf.mxu0
        %v2384 = vadd.f32 0.0, %v2383
        %v2385 = vpop.f32.mrf.mxu0
        %2386 = vmatprep.mubr.bf16.mxu0 %v714
        %2387 = vmatmul.mubr.bf16.gmra.mxu0 %v655
        %v2388 = vpop.f32.mrf.mxu0
        %v2389 = vadd.f32 0.0, %v2388
        %v2390 = vpop.f32.mrf.mxu0
        %v2391 = vpop.f32.mrf.mxu0
        %v2392 = vadd.f32 0.0, %v2391
        %v2393 = vpop.f32.mrf.mxu0
        %2394 = vmatprep.mubr.bf16.mxu0 %v716
        %2395 = vmatmul.mubr.bf16.gmra.mxu0 %v656
        %v2396 = vpop.f32.mrf.mxu0
        %v2397 = vadd.f32 0.0, %v2396
        %v2398 = vpop.f32.mrf.mxu0
        %v2399 = vpop.f32.mrf.mxu0
        %v2400 = vadd.f32 0.0, %v2399
        %v2401 = vpop.f32.mrf.mxu0
        %2402 = vmatprep.mubr.bf16.mxu0 %v718
        %2403 = vmatmul.mubr.bf16.gmra.mxu0 %v657
        %v2404 = vpop.f32.mrf.mxu0
        %v2405 = vadd.f32 0.0, %v2404
        %v2406 = vpop.f32.mrf.mxu0
        %v2407 = vpop.f32.mrf.mxu0
        %v2408 = vadd.f32 0.0, %v2407
        %v2409 = vpop.f32.mrf.mxu0
        %2410 = vmatprep.mubr.bf16.mxu0 %v720
        %2411 = vmatmul.mubr.bf16.gmra.mxu0 %v658
        %v2412 = vpop.f32.mrf.mxu0
        %v2413 = vadd.f32 0.0, %v2412
        %v2414 = vpop.f32.mrf.mxu0
        %v2415 = vpop.f32.mrf.mxu0
        %v2416 = vadd.f32 0.0, %v2415
        %v2417 = vpop.f32.mrf.mxu0
        %2418 = vmatprep.mubr.bf16.mxu0 %v722
        %2419 = vmatmul.mubr.bf16.gmra.mxu0 %v659
        %v2420 = vpop.f32.mrf.mxu0
        %v2421 = vadd.f32 0.0, %v2420
        %v2422 = vpop.f32.mrf.mxu0
        %v2423 = vpop.f32.mrf.mxu0
        %v2424 = vadd.f32 0.0, %v2423
        %v2425 = vpop.f32.mrf.mxu0
        %2426 = vmatprep.mubr.bf16.mxu0 %v724
        %2427 = vmatmul.mubr.bf16.gmra.mxu0 %v660
        %v2428 = vpop.f32.mrf.mxu0
        %v2429 = vadd.f32 0.0, %v2428
        %v2430 = vpop.f32.mrf.mxu0
        %v2431 = vpop.f32.mrf.mxu0
        %v2432 = vadd.f32 0.0, %v2431
        %v2433 = vpop.f32.mrf.mxu0
        %2434 = vmatprep.mubr.bf16.mxu0 %v726
        %2435 = vmatmul.mubr.bf16.gmra.mxu0 %v661
        %v2436 = vpop.f32.mrf.mxu0
        %v2437 = vadd.f32 0.0, %v2436
        %v2438 = vpop.f32.mrf.mxu0
        %v2439 = vpop.f32.mrf.mxu0
        %v2440 = vadd.f32 0.0, %v2439
        %v2441 = vpop.f32.mrf.mxu0
        %2442 = vmatprep.mubr.bf16.mxu0 %v728
        %2443 = vmatmul.mubr.bf16.gmra.mxu0 %v662
        %v2444 = vpop.f32.mrf.mxu0
        %v2445 = vadd.f32 0.0, %v2444
        %v2446 = vpop.f32.mrf.mxu0
        %v2447 = vpop.f32.mrf.mxu0
        %v2448 = vadd.f32 0.0, %v2447
        %v2449 = vpop.f32.mrf.mxu0
        %2450 = vmatprep.mubr.bf16.mxu0 %v730
        %2451 = vmatmul.mubr.bf16.gmra.mxu0 %v663
        %v2452 = vpop.f32.mrf.mxu0
        %v2453 = vadd.f32 0.0, %v2452
        %v2454 = vpop.f32.mrf.mxu0
        %v2455 = vpop.f32.mrf.mxu0
        %v2456 = vadd.f32 0.0, %v2455
        %v2457 = vpop.f32.mrf.mxu0
        %2458 = vdwg.mxu0
        %2459 = vmatprep.subr.bf16.mxu0 0
        %2460 = vmatpush1.bf16.msra.mxu0 %v2257
        %2461 = vmatprep.subr.bf16.mxu0 0
        %2462 = vmatpush1.bf16.msra.mxu0 %v2256
        %2463 = vmatprep.subr.bf16.mxu0 0
        %2464 = vmatpush1.bf16.msra.mxu0 %v2255
        %2465 = vmatprep.subr.bf16.mxu0 0
        %2466 = vmatpush1.bf16.msra.mxu0 %v2254
        %2467 = vmatprep.subr.bf16.mxu0 0
        %2468 = vmatpush1.bf16.msra.mxu0 %v2253
        %2469 = vmatprep.subr.bf16.mxu0 0
        %2470 = vmatpush1.bf16.msra.mxu0 %v2252
        %2471 = vmatprep.subr.bf16.mxu0 0
        %2472 = vmatpush1.bf16.msra.mxu0 %v2251
        %2473 = vmatprep.subr.bf16.mxu0 0
        %2474 = vmatpush1.bf16.msra.mxu0 %v2250
        %2475 = vmatprep.subr.bf16.mxu0 0
        %2476 = vmatpush2.bf16.msra.mxu0 0
        %2477 = vmatprep.subr.bf16.mxu0 0
        %2478 = vmatpush2.bf16.msra.mxu0 0
        %2479 = vmatprep.subr.bf16.mxu0 0
        %2480 = vmatpush2.bf16.msra.mxu0 0
        %2481 = vmatprep.subr.bf16.mxu0 0
        %2482 = vmatpush2.bf16.msra.mxu0 0
        %2483 = vmatprep.subr.bf16.mxu0 0
        %2484 = vmatpush2.bf16.msra.mxu0 0
        %2485 = vmatprep.subr.bf16.mxu0 0
        %2486 = vmatpush2.bf16.msra.mxu0 0
        %2487 = vmatprep.subr.bf16.mxu0 0
        %2488 = vmatpush2.bf16.msra.mxu0 0
        %2489 = vmatprep.subr.bf16.mxu0 0
        %2490 = vmatpush2.bf16.msra.mxu0 0
        %2491 = vmatprep.mubr.bf16.mxu0 0
        %2492 = vmatmul.mubr.bf16.gmra.mxu0 %v763
        %v2493 = vpop.f32.mrf.mxu0
        %v2494 = vadd.f32 %v2317, %v2493
        %v2495 = vpop.f32.mrf.mxu0
        %v2496 = vpop.f32.mrf.mxu0
        %v2497 = vadd.f32 %v2320, %v2496
        %v2498 = vpop.f32.mrf.mxu0
        %2499 = vmatprep.mubr.bf16.mxu0 0
        %2500 = vmatmul.mubr.bf16.gmra.mxu0 %v765
        %v2501 = vpop.f32.mrf.mxu0
        %v2502 = vadd.f32 %v2325, %v2501
        %v2503 = vpop.f32.mrf.mxu0
        %v2504 = vpop.f32.mrf.mxu0
        %v2505 = vadd.f32 %v2328, %v2504
        %v2506 = vpop.f32.mrf.mxu0
        %2507 = vmatprep.mubr.bf16.mxu0 0
        %2508 = vmatmul.mubr.bf16.gmra.mxu0 %v767
        %v2509 = vpop.f32.mrf.mxu0
        %v2510 = vadd.f32 %v2333, %v2509
        %v2511 = vpop.f32.mrf.mxu0
        %v2512 = vpop.f32.mrf.mxu0
        %v2513 = vadd.f32 %v2336, %v2512
        %v2514 = vpop.f32.mrf.mxu0
        %2515 = vmatprep.mubr.bf16.mxu0 0
        %2516 = vmatmul.mubr.bf16.gmra.mxu0 %v769
        %v2517 = vpop.f32.mrf.mxu0
        %v2518 = vadd.f32 %v2341, %v2517
        %v2519 = vpop.f32.mrf.mxu0
        %v2520 = vpop.f32.mrf.mxu0
        %v2521 = vadd.f32 %v2344, %v2520
        %v2522 = vpop.f32.mrf.mxu0
        %2523 = vmatprep.mubr.bf16.mxu0 0
        %2524 = vmatmul.mubr.bf16.gmra.mxu0 %v771
        %v2525 = vpop.f32.mrf.mxu0
        %v2526 = vadd.f32 %v2349, %v2525
        %v2527 = vpop.f32.mrf.mxu0
        %v2528 = vpop.f32.mrf.mxu0
        %v2529 = vadd.f32 %v2352, %v2528
        %v2530 = vpop.f32.mrf.mxu0
        %2531 = vmatprep.mubr.bf16.mxu0 0
        %2532 = vmatmul.mubr.bf16.gmra.mxu0 %v773
        %v2533 = vpop.f32.mrf.mxu0
        %v2534 = vadd.f32 %v2357, %v2533
        %v2535 = vpop.f32.mrf.mxu0
        %v2536 = vpop.f32.mrf.mxu0
        %v2537 = vadd.f32 %v2360, %v2536
        %v2538 = vpop.f32.mrf.mxu0
        %2539 = vmatprep.mubr.bf16.mxu0 0
        %2540 = vmatmul.mubr.bf16.gmra.mxu0 %v775
        %v2541 = vpop.f32.mrf.mxu0
        %v2542 = vadd.f32 %v2365, %v2541
        %v2543 = vpop.f32.mrf.mxu0
        %v2544 = vpop.f32.mrf.mxu0
        %v2545 = vadd.f32 %v2368, %v2544
        %v2546 = vpop.f32.mrf.mxu0
        %2547 = vmatprep.mubr.bf16.mxu0 0
        %2548 = vmatmul.mubr.bf16.gmra.mxu0 %v777
        %v2549 = vpop.f32.mrf.mxu0
        %v2550 = vadd.f32 %v2373, %v2549
        %v2551 = vpop.f32.mrf.mxu0
        %v2552 = vpop.f32.mrf.mxu0
        %v2553 = vadd.f32 %v2376, %v2552
        %v2554 = vpop.f32.mrf.mxu0
        %2555 = vmatprep.mubr.bf16.mxu0 0
        %2556 = vmatmul.mubr.bf16.gmra.mxu0 %v779
        %v2557 = vpop.f32.mrf.mxu0
        %v2558 = vadd.f32 %v2381, %v2557
        %v2559 = vpop.f32.mrf.mxu0
        %v2560 = vpop.f32.mrf.mxu0
        %v2561 = vadd.f32 %v2384, %v2560
        %v2562 = vpop.f32.mrf.mxu0
        %2563 = vmatprep.mubr.bf16.mxu0 0
        %2564 = vmatmul.mubr.bf16.gmra.mxu0 %v781
        %v2565 = vpop.f32.mrf.mxu0
        %v2566 = vadd.f32 %v2389, %v2565
        %v2567 = vpop.f32.mrf.mxu0
        %v2568 = vpop.f32.mrf.mxu0
        %v2569 = vadd.f32 %v2392, %v2568
        %v2570 = vpop.f32.mrf.mxu0
        %2571 = vmatprep.mubr.bf16.mxu0 0
        %2572 = vmatmul.mubr.bf16.gmra.mxu0 %v783
        %v2573 = vpop.f32.mrf.mxu0
        %v2574 = vadd.f32 %v2397, %v2573
        %v2575 = vpop.f32.mrf.mxu0
        %v2576 = vpop.f32.mrf.mxu0
        %v2577 = vadd.f32 %v2400, %v2576
        %v2578 = vpop.f32.mrf.mxu0
        %2579 = vmatprep.mubr.bf16.mxu0 0
        %2580 = vmatmul.mubr.bf16.gmra.mxu0 %v785
        %v2581 = vpop.f32.mrf.mxu0
        %v2582 = vadd.f32 %v2405, %v2581
        %v2583 = vpop.f32.mrf.mxu0
        %v2584 = vpop.f32.mrf.mxu0
        %v2585 = vadd.f32 %v2408, %v2584
        %v2586 = vpop.f32.mrf.mxu0
        %2587 = vmatprep.mubr.bf16.mxu0 0
        %2588 = vmatmul.mubr.bf16.gmra.mxu0 %v787
        %v2589 = vpop.f32.mrf.mxu0
        %v2590 = vadd.f32 %v2413, %v2589
        %v2591 = vpop.f32.mrf.mxu0
        %v2592 = vpop.f32.mrf.mxu0
        %v2593 = vadd.f32 %v2416, %v2592
        %v2594 = vpop.f32.mrf.mxu0
        %2595 = vmatprep.mubr.bf16.mxu0 0
        %2596 = vmatmul.mubr.bf16.gmra.mxu0 %v789
        %v2597 = vpop.f32.mrf.mxu0
        %v2598 = vadd.f32 %v2421, %v2597
        %v2599 = vpop.f32.mrf.mxu0
        %v2600 = vpop.f32.mrf.mxu0
        %v2601 = vadd.f32 %v2424, %v2600
        %v2602 = vpop.f32.mrf.mxu0
        %2603 = vmatprep.mubr.bf16.mxu0 0
        %2604 = vmatmul.mubr.bf16.gmra.mxu0 %v791
        %v2605 = vpop.f32.mrf.mxu0
        %v2606 = vadd.f32 %v2429, %v2605
        %v2607 = vpop.f32.mrf.mxu0
        %v2608 = vpop.f32.mrf.mxu0
        %v2609 = vadd.f32 %v2432, %v2608
        %v2610 = vpop.f32.mrf.mxu0
        %2611 = vmatprep.mubr.bf16.mxu0 0
        %2612 = vmatmul.mubr.bf16.gmra.mxu0 %v793
        %v2613 = vpop.f32.mrf.mxu0
        %v2614 = vadd.f32 %v2437, %v2613
        %v2615 = vpop.f32.mrf.mxu0
        %v2616 = vpop.f32.mrf.mxu0
        %v2617 = vadd.f32 %v2440, %v2616
        %v2618 = vpop.f32.mrf.mxu0
        %2619 = vmatprep.mubr.bf16.mxu0 0
        %2620 = vmatmul.mubr.bf16.gmra.mxu0 %v795
        %v2621 = vpop.f32.mrf.mxu0
        %v2622 = vadd.f32 %v2445, %v2621
        %v2623 = vpop.f32.mrf.mxu0
        %v2624 = vpop.f32.mrf.mxu0
        %v2625 = vadd.f32 %v2448, %v2624
        %v2626 = vpop.f32.mrf.mxu0
        %2627 = vmatprep.mubr.bf16.mxu0 0
        %2628 = vmatmul.mubr.bf16.gmra.mxu0 %v797
        %v2629 = vpop.f32.mrf.mxu0
        %v2630 = vadd.f32 %v2453, %v2629
        %v2631 = vpop.f32.mrf.mxu0
        %v2632 = vpop.f32.mrf.mxu0
        %v2633 = vadd.f32 %v2456, %v2632
        %v2634 = vpop.f32.mrf.mxu0
        %2635 = vdwg.mxu0
        %vm2672 = vcmask 1045504
        %v2673 = vrot.slane %v2494, 2
        %v2674 = vrot.slane %v2497, 2
        %v2675 = vsel %vm2672, %v2673, %v2674
        %v2676 = vrot.slane %v2502, 2
        %v2677 = vsel %vm2672, %v2674, %v2676
        %v2678 = vrot.slane %v2505, 2
        %v2679 = vsel %vm2672, %v2676, %v2678
        %v2680 = vrot.slane %v2510, 2
        %v2681 = vsel %vm2672, %v2678, %v2680
        %v2682 = vrot.slane %v2513, 2
        %v2683 = vsel %vm2672, %v2680, %v2682
        %v2684 = vrot.slane %v2518, 2
        %v2685 = vsel %vm2672, %v2682, %v2684
        %v2686 = vrot.slane %v2521, 2
        %v2687 = vsel %vm2672, %v2684, %v2686
        %v2688 = vrot.slane %v2526, 2
        %v2689 = vsel %vm2672, %v2686, %v2688
        %v2690 = vrot.slane %v2529, 2
        %v2691 = vsel %vm2672, %v2688, %v2690
        %v2692 = vrot.slane %v2534, 2
        %v2693 = vsel %vm2672, %v2690, %v2692
        %v2694 = vrot.slane %v2537, 2
        %v2695 = vsel %vm2672, %v2692, %v2694
        %v2696 = vrot.slane %v2542, 2
        %v2697 = vsel %vm2672, %v2694, %v2696
        %v2698 = vrot.slane %v2545, 2
        %v2699 = vsel %vm2672, %v2696, %v2698
        %v2700 = vrot.slane %v2550, 2
        %v2701 = vsel %vm2672, %v2698, %v2700
        %v2702 = vrot.slane %v2553, 2
        %v2703 = vsel %vm2672, %v2700, %v2702
        %v2704 = vrot.slane %v2558, 2
        %v2705 = vsel %vm2672, %v2702, %v2704
        %v2706 = vrot.slane %v2561, 2
        %v2707 = vsel %vm2672, %v2704, %v2706
        %v2708 = vrot.slane %v2566, 2
        %v2709 = vsel %vm2672, %v2706, %v2708
        %v2710 = vrot.slane %v2569, 2
        %v2711 = vsel %vm2672, %v2708, %v2710
        %v2712 = vrot.slane %v2574, 2
        %v2713 = vsel %vm2672, %v2710, %v2712
        %v2714 = vrot.slane %v2577, 2
        %v2715 = vsel %vm2672, %v2712, %v2714
        %v2716 = vrot.slane %v2582, 2
        %v2717 = vsel %vm2672, %v2714, %v2716
        %v2718 = vrot.slane %v2585, 2
        %v2719 = vsel %vm2672, %v2716, %v2718
        %v2720 = vrot.slane %v2590, 2
        %v2721 = vsel %vm2672, %v2718, %v2720
        %v2722 = vrot.slane %v2593, 2
        %v2723 = vsel %vm2672, %v2720, %v2722
        %v2724 = vrot.slane %v2598, 2
        %v2725 = vsel %vm2672, %v2722, %v2724
        %v2726 = vrot.slane %v2601, 2
        %v2727 = vsel %vm2672, %v2724, %v2726
        %v2728 = vrot.slane %v2606, 2
        %v2729 = vsel %vm2672, %v2726, %v2728
        %v2730 = vrot.slane %v2609, 2
        %v2731 = vsel %vm2672, %v2728, %v2730
        %v2732 = vrot.slane %v2614, 2
        %v2733 = vsel %vm2672, %v2730, %v2732
        %v2734 = vrot.slane %v2617, 2
        %v2735 = vsel %vm2672, %v2732, %v2734
        %v2736 = vrot.slane %v2622, 2
        %v2737 = vsel %vm2672, %v2734, %v2736
        %v2738 = vrot.slane %v2625, 2
        %v2739 = vsel %vm2672, %v2736, %v2738
        %v2740 = vrot.slane %v2630, 2
        %v2741 = vsel %vm2672, %v2738, %v2740
        %v2742 = vrot.slane %v2633, 2
        %v2743 = vsel %vm2672, %v2740, %v2742
        %v2780 = vadd.f32 %v2053, %v2675
        %v2781 = vadd.f32 %v2054, %v2677
        %v2782 = vadd.f32 %v2055, %v2679
        %v2783 = vadd.f32 %v2056, %v2681
        %v2784 = vadd.f32 %v2057, %v2683
        %v2785 = vadd.f32 %v2058, %v2685
        %v2786 = vadd.f32 %v2059, %v2687
        %v2787 = vadd.f32 %v2060, %v2689
        %v2788 = vadd.f32 %v2061, %v2691
        %v2789 = vadd.f32 %v2062, %v2693
        %v2790 = vadd.f32 %v2063, %v2695
        %v2791 = vadd.f32 %v2064, %v2697
        %v2792 = vadd.f32 %v2065, %v2699
        %v2793 = vadd.f32 %v2066, %v2701
        %v2794 = vadd.f32 %v2067, %v2703
        %v2795 = vadd.f32 %v2068, %v2705
        %v2796 = vadd.f32 %v2069, %v2707
        %v2797 = vadd.f32 %v2070, %v2709
        %v2798 = vadd.f32 %v2071, %v2711
        %v2799 = vadd.f32 %v2072, %v2713
        %v2800 = vadd.f32 %v2073, %v2715
        %v2801 = vadd.f32 %v2074, %v2717
        %v2802 = vadd.f32 %v2075, %v2719
        %v2803 = vadd.f32 %v2076, %v2721
        %v2804 = vadd.f32 %v2077, %v2723
        %v2805 = vadd.f32 %v2078, %v2725
        %v2806 = vadd.f32 %v2079, %v2727
        %v2807 = vadd.f32 %v2080, %v2729
        %v2808 = vadd.f32 %v2081, %v2731
        %v2809 = vadd.f32 %v2082, %v2733
        %v2810 = vadd.f32 %v2083, %v2735
        %v2811 = vadd.f32 %v2084, %v2737
        %v2812 = vadd.f32 %v2085, %v2739
        %v2813 = vadd.f32 %v2086, %v2741
        %v2814 = vadd.f32 %v2087, %v2743
        %v2815 = vadd.f32 %v2088, %v2742
        %v2816 = vld [vmem:[%s3] sm:$0x1]
        %v2818 = vlaneseq
        %v2819 = vshrl.u32 %v2818, 7
        %v2820 = vsub.s32 0, %v2819
        %v2821 = vrot.slane %v2816, %v2820
        %v2823 = vadd.f32 %v2780, %v2821
        %v2824 = vadd.f32 %v2781, %v2821
        %v2825 = vadd.f32 %v2782, %v2821
        %v2826 = vadd.f32 %v2783, %v2821
        %v2827 = vadd.f32 %v2784, %v2821
        %v2828 = vadd.f32 %v2785, %v2821
        %v2829 = vadd.f32 %v2786, %v2821
        %v2830 = vadd.f32 %v2787, %v2821
        %v2831 = vadd.f32 %v2788, %v2821
        %v2832 = vadd.f32 %v2789, %v2821
        %v2833 = vadd.f32 %v2790, %v2821
        %v2834 = vadd.f32 %v2791, %v2821
        %v2835 = vadd.f32 %v2792, %v2821
        %v2836 = vadd.f32 %v2793, %v2821
        %v2837 = vadd.f32 %v2794, %v2821
        %v2838 = vadd.f32 %v2795, %v2821
        %v2839 = vadd.f32 %v2796, %v2821
        %v2840 = vadd.f32 %v2797, %v2821
        %v2841 = vadd.f32 %v2798, %v2821
        %v2842 = vadd.f32 %v2799, %v2821
        %v2843 = vadd.f32 %v2800, %v2821
        %v2844 = vadd.f32 %v2801, %v2821
        %v2845 = vadd.f32 %v2802, %v2821
        %v2846 = vadd.f32 %v2803, %v2821
        %v2847 = vadd.f32 %v2804, %v2821
        %v2848 = vadd.f32 %v2805, %v2821
        %v2849 = vadd.f32 %v2806, %v2821
        %v2850 = vadd.f32 %v2807, %v2821
        %v2851 = vadd.f32 %v2808, %v2821
        %v2852 = vadd.f32 %v2809, %v2821
        %v2853 = vadd.f32 %v2810, %v2821
        %v2854 = vadd.f32 %v2811, %v2821
        %v2855 = vadd.f32 %v2812, %v2821
        %v2856 = vadd.f32 %v2813, %v2821
        %v2857 = vadd.f32 %v2814, %v2821
        %v2858 = vadd.f32 %v2815, %v2821
        %v2859 = vmax.f32 %v2823, 0.0
        %v2860 = vmax.f32 %v2824, 0.0
        %v2861 = vmax.f32 %v2825, 0.0
        %v2862 = vmax.f32 %v2826, 0.0
        %v2863 = vmax.f32 %v2827, 0.0
        %v2864 = vmax.f32 %v2828, 0.0
        %v2865 = vmax.f32 %v2829, 0.0
        %v2866 = vmax.f32 %v2830, 0.0
        %v2867 = vmax.f32 %v2831, 0.0
        %v2868 = vmax.f32 %v2832, 0.0
        %v2869 = vmax.f32 %v2833, 0.0
        %v2870 = vmax.f32 %v2834, 0.0
        %v2871 = vmax.f32 %v2835, 0.0
        %v2872 = vmax.f32 %v2836, 0.0
        %v2873 = vmax.f32 %v2837, 0.0
        %v2874 = vmax.f32 %v2838, 0.0
        %v2875 = vmax.f32 %v2839, 0.0
        %v2876 = vmax.f32 %v2840, 0.0
        %v2877 = vmax.f32 %v2841, 0.0
        %v2878 = vmax.f32 %v2842, 0.0
        %v2879 = vmax.f32 %v2843, 0.0
        %v2880 = vmax.f32 %v2844, 0.0
        %v2881 = vmax.f32 %v2845, 0.0
        %v2882 = vmax.f32 %v2846, 0.0
        %v2883 = vmax.f32 %v2847, 0.0
        %v2884 = vmax.f32 %v2848, 0.0
        %v2885 = vmax.f32 %v2849, 0.0
        %v2886 = vmax.f32 %v2850, 0.0
        %v2887 = vmax.f32 %v2851, 0.0
        %v2888 = vmax.f32 %v2852, 0.0
        %v2889 = vmax.f32 %v2853, 0.0
        %v2890 = vmax.f32 %v2854, 0.0
        %v2891 = vmax.f32 %v2855, 0.0
        %v2892 = vmax.f32 %v2856, 0.0
        %v2893 = vmax.f32 %v2857, 0.0
        %v2894 = vmax.f32 %v2858, 0.0
        %2895 = vst [vmem:[#allocation2] sm:$0xf] 0
        %2896 = vst [vmem:[#allocation2 + $0x4] sm:$0xf] 0
        %vm2897 = vcmask 1041408
        %vm2898 = vsmask.f32 1280
        %vm2899 = vmand %vm2897, %vm2898
        %v2900 = vld [vmem:[#allocation2 + $0x8] sm:$0x3]
        %v2901 = vsel %vm2899, 0, %v2900
        %2902 = vst [vmem:[#allocation2 + $0x8] sm:$0x3] %v2901
        %vm2903 = vcmask 1043456
        %vm2904 = vsmask.f32 7938
        %vm2905 = vmand %vm2903, %vm2904
        %v2906 = vld [vmem:[#allocation2 + $0x98] sm:$0xf]
        %v2907 = vsel %vm2905, 0, %v2906
        %2908 = vst [vmem:[#allocation2 + $0x98] sm:$0xf] %v2907
        %2909 = vst [vmem:[#allocation2 + $0x9c] sm:$0xf] 0
        %2910 = vst [vmem:[#allocation2 + $0xa0] sm:$0x3] 0
        %v2911 = vsel %vm494, 1, 0
        %v2912 = vsel %vm495, 1, 0
        %v2913 = vsel %vm496, 1, 0
        %v2914 = vsel %vm497, 1, 0
        %v2915 = vsel %vm498, 1, 0
        %v2916 = vsel %vm499, 1, 0
        %v2917 = vsel %vm500, 1, 0
        %v2918 = vsel %vm501, 1, 0
        %v2919 = vsel %vm502, 1, 0
        %v2920 = vsel %vm503, 1, 0
        %v2921 = vsel %vm504, 1, 0
        %v2922 = vsel %vm505, 1, 0
        %v2923 = vsel %vm506, 1, 0
        %v2924 = vsel %vm507, 1, 0
        %v2925 = vsel %vm508, 1, 0
        %v2926 = vsel %vm509, 1, 0
        %v2927 = vsel %vm510, 1, 0
        %v2928 = vsel %vm511, 1, 0
        %v2929 = vsel %vm512, 1, 0
        %v2930 = vsel %vm513, 1, 0
        %v2931 = vsel %vm514, 1, 0
        %v2932 = vsel %vm515, 1, 0
        %v2933 = vsel %vm516, 1, 0
        %v2934 = vsel %vm517, 1, 0
        %v2935 = vsel %vm518, 1, 0
        %v2936 = vsel %vm519, 1, 0
        %v2937 = vsel %vm520, 1, 0
        %v2938 = vsel %vm521, 1, 0
        %v2939 = vsel %vm522, 1, 0
        %v2940 = vsel %vm523, 1, 0
        %v2941 = vsel %vm524, 1, 0
        %v2942 = vsel %vm525, 1, 0
        %v2943 = vsel %vm526, 1, 0
        %v2944 = vsel %vm527, 1, 0
        %v2945 = vsel %vm528, 1, 0
        %v2946 = vsel %vm529, 1, 0
        %vm2947 = vcmp.eq.s32.totalorder %v2911, 1
        %vm2948 = vcmp.eq.s32.totalorder %v2912, 1
        %vm2949 = vcmp.eq.s32.totalorder %v2913, 1
        %vm2950 = vcmp.eq.s32.totalorder %v2914, 1
        %vm2951 = vcmp.eq.s32.totalorder %v2915, 1
        %vm2952 = vcmp.eq.s32.totalorder %v2916, 1
        %vm2953 = vcmp.eq.s32.totalorder %v2917, 1
        %vm2954 = vcmp.eq.s32.totalorder %v2918, 1
        %vm2955 = vcmp.eq.s32.totalorder %v2919, 1
        %vm2956 = vcmp.eq.s32.totalorder %v2920, 1
        %vm2957 = vcmp.eq.s32.totalorder %v2921, 1
        %vm2958 = vcmp.eq.s32.totalorder %v2922, 1
        %vm2959 = vcmp.eq.s32.totalorder %v2923, 1
        %vm2960 = vcmp.eq.s32.totalorder %v2924, 1
        %vm2961 = vcmp.eq.s32.totalorder %v2925, 1
        %vm2962 = vcmp.eq.s32.totalorder %v2926, 1
        %vm2963 = vcmp.eq.s32.totalorder %v2927, 1
        %vm2964 = vcmp.eq.s32.totalorder %v2928, 1
        %vm2965 = vcmp.eq.s32.totalorder %v2929, 1
        %vm2966 = vcmp.eq.s32.totalorder %v2930, 1
        %vm2967 = vcmp.eq.s32.totalorder %v2931, 1
        %vm2968 = vcmp.eq.s32.totalorder %v2932, 1
        %vm2969 = vcmp.eq.s32.totalorder %v2933, 1
        %vm2970 = vcmp.eq.s32.totalorder %v2934, 1
        %vm2971 = vcmp.eq.s32.totalorder %v2935, 1
        %vm2972 = vcmp.eq.s32.totalorder %v2936, 1
        %vm2973 = vcmp.eq.s32.totalorder %v2937, 1
        %vm2974 = vcmp.eq.s32.totalorder %v2938, 1
        %vm2975 = vcmp.eq.s32.totalorder %v2939, 1
        %vm2976 = vcmp.eq.s32.totalorder %v2940, 1
        %vm2977 = vcmp.eq.s32.totalorder %v2941, 1
        %vm2978 = vcmp.eq.s32.totalorder %v2942, 1
        %vm2979 = vcmp.eq.s32.totalorder %v2943, 1
        %vm2980 = vcmp.eq.s32.totalorder %v2944, 1
        %vm2981 = vcmp.eq.s32.totalorder %v2945, 1
        %vm2982 = vcmp.eq.s32.totalorder %v2946, 1
        %v2983 = vsel %vm2947, %v2859, 0.0
        %v2984 = vsel %vm2948, %v2860, 0.0
        %v2985 = vsel %vm2949, %v2861, 0.0
        %v2986 = vsel %vm2950, %v2862, 0.0
        %v2987 = vsel %vm2951, %v2863, 0.0
        %v2988 = vsel %vm2952, %v2864, 0.0
        %v2989 = vsel %vm2953, %v2865, 0.0
        %v2990 = vsel %vm2954, %v2866, 0.0
        %v2991 = vsel %vm2955, %v2867, 0.0
        %v2992 = vsel %vm2956, %v2868, 0.0
        %v2993 = vsel %vm2957, %v2869, 0.0
        %v2994 = vsel %vm2958, %v2870, 0.0
        %v2995 = vsel %vm2959, %v2871, 0.0
        %v2996 = vsel %vm2960, %v2872, 0.0
        %v2997 = vsel %vm2961, %v2873, 0.0
        %v2998 = vsel %vm2962, %v2874, 0.0
        %v2999 = vsel %vm2963, %v2875, 0.0
        %v3000 = vsel %vm2964, %v2876, 0.0
        %v3001 = vsel %vm2965, %v2877, 0.0
        %v3002 = vsel %vm2966, %v2878, 0.0
        %v3003 = vsel %vm2967, %v2879, 0.0
        %v3004 = vsel %vm2968, %v2880, 0.0
        %v3005 = vsel %vm2969, %v2881, 0.0
        %v3006 = vsel %vm2970, %v2882, 0.0
        %v3007 = vsel %vm2971, %v2883, 0.0
        %v3008 = vsel %vm2972, %v2884, 0.0
        %v3009 = vsel %vm2973, %v2885, 0.0
        %v3010 = vsel %vm2974, %v2886, 0.0
        %v3011 = vsel %vm2975, %v2887, 0.0
        %v3012 = vsel %vm2976, %v2888, 0.0
        %v3013 = vsel %vm2977, %v2889, 0.0
        %v3014 = vsel %vm2978, %v2890, 0.0
        %v3015 = vsel %vm2979, %v2891, 0.0
        %v3016 = vsel %vm2980, %v2892, 0.0
        %v3017 = vsel %vm2981, %v2893, 0.0
        %v3018 = vsel %vm2982, %v2894, 0.0
        %v3019 = vpack.c.bf16 %v2984, %v2983
        %v3020 = vpack.c.bf16 %v2986, %v2985
        %v3021 = vpack.c.bf16 %v2988, %v2987
        %v3022 = vpack.c.bf16 %v2990, %v2989
        %v3023 = vpack.c.bf16 %v2992, %v2991
        %v3024 = vpack.c.bf16 %v2994, %v2993
        %v3025 = vpack.c.bf16 %v2996, %v2995
        %v3026 = vpack.c.bf16 %v2998, %v2997
        %v3027 = vpack.c.bf16 %v3000, %v2999
        %v3028 = vpack.c.bf16 %v3002, %v3001
        %v3029 = vpack.c.bf16 %v3004, %v3003
        %v3030 = vpack.c.bf16 %v3006, %v3005
        %v3031 = vpack.c.bf16 %v3008, %v3007
        %v3032 = vpack.c.bf16 %v3010, %v3009
        %v3033 = vpack.c.bf16 %v3012, %v3011
        %v3034 = vpack.c.bf16 %v3014, %v3013
        %v3035 = vpack.c.bf16 %v3016, %v3015
        %v3036 = vpack.c.bf16 %v3018, %v3017
        %v3055 = vunpack.c.l.b16 %v3019
        %v3056 = vunpack.c.h.b16 %v3019
        %v3057 = vunpack.c.l.b16 %v3020
        %v3058 = vunpack.c.h.b16 %v3020
        %v3059 = vunpack.c.l.b16 %v3021
        %v3060 = vunpack.c.h.b16 %v3021
        %v3061 = vunpack.c.l.b16 %v3022
        %v3062 = vunpack.c.h.b16 %v3022
        %v3063 = vunpack.c.l.b16 %v3023
        %v3064 = vunpack.c.h.b16 %v3023
        %v3065 = vunpack.c.l.b16 %v3024
        %v3066 = vunpack.c.h.b16 %v3024
        %v3067 = vunpack.c.l.b16 %v3025
        %v3068 = vunpack.c.h.b16 %v3025
        %v3069 = vunpack.c.l.b16 %v3026
        %v3070 = vunpack.c.h.b16 %v3026
        %v3071 = vunpack.c.l.b16 %v3027
        %v3072 = vunpack.c.h.b16 %v3027
        %v3073 = vunpack.c.l.b16 %v3028
        %v3074 = vunpack.c.h.b16 %v3028
        %v3075 = vunpack.c.l.b16 %v3029
        %v3076 = vunpack.c.h.b16 %v3029
        %v3077 = vunpack.c.l.b16 %v3030
        %v3078 = vunpack.c.h.b16 %v3030
        %v3079 = vunpack.c.l.b16 %v3031
        %v3080 = vunpack.c.h.b16 %v3031
        %v3081 = vunpack.c.l.b16 %v3032
        %v3082 = vunpack.c.h.b16 %v3032
        %v3083 = vunpack.c.l.b16 %v3033
        %v3084 = vunpack.c.h.b16 %v3033
        %v3085 = vunpack.c.l.b16 %v3034
        %v3086 = vunpack.c.h.b16 %v3034
        %v3087 = vunpack.c.l.b16 %v3035
        %v3088 = vunpack.c.h.b16 %v3035
        %v3089 = vunpack.c.l.b16 %v3036
        %v3090 = vunpack.c.h.b16 %v3036
        %v3091 = vpack.c.b16 %v3055, %v3055
        %v3092 = vpack.c.b16 %v3056, %v3056
        %v3093 = vpack.c.b16 %v3057, %v3057
        %v3094 = vpack.c.b16 %v3058, %v3058
        %v3095 = vpack.c.b16 %v3059, %v3059
        %v3096 = vpack.c.b16 %v3060, %v3060
        %v3097 = vpack.c.b16 %v3061, %v3061
        %v3098 = vpack.c.b16 %v3062, %v3062
        %v3099 = vpack.c.b16 %v3063, %v3063
        %v3100 = vpack.c.b16 %v3064, %v3064
        %v3101 = vpack.c.b16 %v3065, %v3065
        %v3102 = vpack.c.b16 %v3066, %v3066
        %v3103 = vpack.c.b16 %v3067, %v3067
        %v3104 = vpack.c.b16 %v3068, %v3068
        %v3105 = vpack.c.b16 %v3069, %v3069
        %v3106 = vpack.c.b16 %v3070, %v3070
        %v3107 = vpack.c.b16 %v3071, %v3071
        %v3108 = vpack.c.b16 %v3072, %v3072
        %v3109 = vpack.c.b16 %v3073, %v3073
        %v3110 = vpack.c.b16 %v3074, %v3074
        %v3111 = vpack.c.b16 %v3075, %v3075
        %v3112 = vpack.c.b16 %v3076, %v3076
        %v3113 = vpack.c.b16 %v3077, %v3077
        %v3114 = vpack.c.b16 %v3078, %v3078
        %v3115 = vpack.c.b16 %v3079, %v3079
        %v3116 = vpack.c.b16 %v3080, %v3080
        %v3117 = vpack.c.b16 %v3081, %v3081
        %v3118 = vpack.c.b16 %v3082, %v3082
        %v3119 = vpack.c.b16 %v3083, %v3083
        %v3120 = vpack.c.b16 %v3084, %v3084
        %v3121 = vpack.c.b16 %v3085, %v3085
        %v3122 = vpack.c.b16 %v3086, %v3086
        %v3123 = vpack.c.b16 %v3087, %v3087
        %v3124 = vpack.c.b16 %v3088, %v3088
        %v3125 = vpack.c.b16 %v3089, %v3089
        %v3126 = vpack.c.b16 %v3090, %v3090
        %vm3127 = vsmask.f32 5392
        %vm3128 = vmor %vm2898, %vm3127
        %v3130 = vshrl.u32 %v3091, 16
        %v3132 = vrot.slane %v3130, 6
        %v3133 = vshll.u32 %v3091, 16
        %v3135 = vrot.slane %v3133, 7
        %v3136 = vor.u32 %v3132, %v3135
        %v3137 = vrot.slane %v3136, 4
        %v3139 = vshrl.u32 %v3092, 16
        %v3141 = vrot.slane %v3139, 6
        %v3142 = vshll.u32 %v3092, 16
        %v3144 = vrot.slane %v3142, 7
        %v3145 = vor.u32 %v3141, %v3144
        %v3146 = vsel %vm3128, %v3137, %v3145
        %v3147 = vrot.slane %v3145, 4
        %v3149 = vshrl.u32 %v3093, 16
        %v3151 = vrot.slane %v3149, 6
        %v3152 = vshll.u32 %v3093, 16
        %v3154 = vrot.slane %v3152, 7
        %v3155 = vor.u32 %v3151, %v3154
        %v3156 = vsel %vm3128, %v3147, %v3155
        %v3157 = vrot.slane %v3155, 4
        %v3159 = vshrl.u32 %v3094, 16
        %v3161 = vrot.slane %v3159, 6
        %v3162 = vshll.u32 %v3094, 16
        %v3164 = vrot.slane %v3162, 7
        %v3165 = vor.u32 %v3161, %v3164
        %v3166 = vsel %vm3128, %v3157, %v3165
        %v3167 = vrot.slane %v3165, 4
        %v3169 = vshrl.u32 %v3095, 16
        %v3171 = vrot.slane %v3169, 6
        %v3172 = vshll.u32 %v3095, 16
        %v3174 = vrot.slane %v3172, 7
        %v3175 = vor.u32 %v3171, %v3174
        %v3176 = vsel %vm3128, %v3167, %v3175
        %v3177 = vrot.slane %v3175, 4
        %v3179 = vshrl.u32 %v3096, 16
        %v3181 = vrot.slane %v3179, 6
        %v3182 = vshll.u32 %v3096, 16
        %v3184 = vrot.slane %v3182, 7
        %v3185 = vor.u32 %v3181, %v3184
        %v3186 = vsel %vm3128, %v3177, %v3185
        %v3187 = vrot.slane %v3185, 4
        %v3189 = vshrl.u32 %v3097, 16
        %v3191 = vrot.slane %v3189, 6
        %v3192 = vshll.u32 %v3097, 16
        %v3194 = vrot.slane %v3192, 7
        %v3195 = vor.u32 %v3191, %v3194
        %v3196 = vsel %vm3128, %v3187, %v3195
        %v3197 = vrot.slane %v3195, 4
        %v3199 = vshrl.u32 %v3098, 16
        %v3201 = vrot.slane %v3199, 6
        %v3202 = vshll.u32 %v3098, 16
        %v3204 = vrot.slane %v3202, 7
        %v3205 = vor.u32 %v3201, %v3204
        %v3206 = vsel %vm3128, %v3197, %v3205
        %v3207 = vrot.slane %v3205, 4
        %v3209 = vshrl.u32 %v3099, 16
        %v3211 = vrot.slane %v3209, 6
        %v3212 = vshll.u32 %v3099, 16
        %v3214 = vrot.slane %v3212, 7
        %v3215 = vor.u32 %v3211, %v3214
        %v3216 = vsel %vm3128, %v3207, %v3215
        %v3217 = vrot.slane %v3215, 4
        %v3219 = vshrl.u32 %v3100, 16
        %v3221 = vrot.slane %v3219, 6
        %v3222 = vshll.u32 %v3100, 16
        %v3224 = vrot.slane %v3222, 7
        %v3225 = vor.u32 %v3221, %v3224
        %v3226 = vsel %vm3128, %v3217, %v3225
        %v3227 = vrot.slane %v3225, 4
        %v3229 = vshrl.u32 %v3101, 16
        %v3231 = vrot.slane %v3229, 6
        %v3232 = vshll.u32 %v3101, 16
        %v3234 = vrot.slane %v3232, 7
        %v3235 = vor.u32 %v3231, %v3234
        %v3236 = vsel %vm3128, %v3227, %v3235
        %v3237 = vrot.slane %v3235, 4
        %v3239 = vshrl.u32 %v3102, 16
        %v3241 = vrot.slane %v3239, 6
        %v3242 = vshll.u32 %v3102, 16
        %v3244 = vrot.slane %v3242, 7
        %v3245 = vor.u32 %v3241, %v3244
        %v3246 = vsel %vm3128, %v3237, %v3245
        %v3247 = vrot.slane %v3245, 4
        %v3249 = vshrl.u32 %v3103, 16
        %v3251 = vrot.slane %v3249, 6
        %v3252 = vshll.u32 %v3103, 16
        %v3254 = vrot.slane %v3252, 7
        %v3255 = vor.u32 %v3251, %v3254
        %v3256 = vsel %vm3128, %v3247, %v3255
        %v3257 = vrot.slane %v3255, 4
        %v3259 = vshrl.u32 %v3104, 16
        %v3261 = vrot.slane %v3259, 6
        %v3262 = vshll.u32 %v3104, 16
        %v3264 = vrot.slane %v3262, 7
        %v3265 = vor.u32 %v3261, %v3264
        %v3266 = vsel %vm3128, %v3257, %v3265
        %v3267 = vrot.slane %v3265, 4
        %v3269 = vshrl.u32 %v3105, 16
        %v3271 = vrot.slane %v3269, 6
        %v3272 = vshll.u32 %v3105, 16
        %v3274 = vrot.slane %v3272, 7
        %v3275 = vor.u32 %v3271, %v3274
        %v3276 = vsel %vm3128, %v3267, %v3275
        %v3277 = vrot.slane %v3275, 4
        %v3279 = vshrl.u32 %v3106, 16
        %v3281 = vrot.slane %v3279, 6
        %v3282 = vshll.u32 %v3106, 16
        %v3284 = vrot.slane %v3282, 7
        %v3285 = vor.u32 %v3281, %v3284
        %v3286 = vsel %vm3128, %v3277, %v3285
        %v3287 = vrot.slane %v3285, 4
        %v3289 = vshrl.u32 %v3107, 16
        %v3291 = vrot.slane %v3289, 6
        %v3292 = vshll.u32 %v3107, 16
        %v3294 = vrot.slane %v3292, 7
        %v3295 = vor.u32 %v3291, %v3294
        %v3296 = vsel %vm3128, %v3287, %v3295
        %v3297 = vrot.slane %v3295, 4
        %v3299 = vshrl.u32 %v3108, 16
        %v3301 = vrot.slane %v3299, 6
        %v3302 = vshll.u32 %v3108, 16
        %v3304 = vrot.slane %v3302, 7
        %v3305 = vor.u32 %v3301, %v3304
        %v3306 = vsel %vm3128, %v3297, %v3305
        %v3307 = vrot.slane %v3305, 4
        %v3309 = vshrl.u32 %v3109, 16
        %v3311 = vrot.slane %v3309, 6
        %v3312 = vshll.u32 %v3109, 16
        %v3314 = vrot.slane %v3312, 7
        %v3315 = vor.u32 %v3311, %v3314
        %v3316 = vsel %vm3128, %v3307, %v3315
        %v3317 = vrot.slane %v3315, 4
        %v3319 = vshrl.u32 %v3110, 16
        %v3321 = vrot.slane %v3319, 6
        %v3322 = vshll.u32 %v3110, 16
        %v3324 = vrot.slane %v3322, 7
        %v3325 = vor.u32 %v3321, %v3324
        %v3326 = vsel %vm3128, %v3317, %v3325
        %v3327 = vrot.slane %v3325, 4
        %v3329 = vshrl.u32 %v3111, 16
        %v3331 = vrot.slane %v3329, 6
        %v3332 = vshll.u32 %v3111, 16
        %v3334 = vrot.slane %v3332, 7
        %v3335 = vor.u32 %v3331, %v3334
        %v3336 = vsel %vm3128, %v3327, %v3335
        %v3337 = vrot.slane %v3335, 4
        %v3339 = vshrl.u32 %v3112, 16
        %v3341 = vrot.slane %v3339, 6
        %v3342 = vshll.u32 %v3112, 16
        %v3344 = vrot.slane %v3342, 7
        %v3345 = vor.u32 %v3341, %v3344
        %v3346 = vsel %vm3128, %v3337, %v3345
        %v3347 = vrot.slane %v3345, 4
        %v3349 = vshrl.u32 %v3113, 16
        %v3351 = vrot.slane %v3349, 6
        %v3352 = vshll.u32 %v3113, 16
        %v3354 = vrot.slane %v3352, 7
        %v3355 = vor.u32 %v3351, %v3354
        %v3356 = vsel %vm3128, %v3347, %v3355
        %v3357 = vrot.slane %v3355, 4
        %v3359 = vshrl.u32 %v3114, 16
        %v3361 = vrot.slane %v3359, 6
        %v3362 = vshll.u32 %v3114, 16
        %v3364 = vrot.slane %v3362, 7
        %v3365 = vor.u32 %v3361, %v3364
        %v3366 = vsel %vm3128, %v3357, %v3365
        %v3367 = vrot.slane %v3365, 4
        %v3369 = vshrl.u32 %v3115, 16
        %v3371 = vrot.slane %v3369, 6
        %v3372 = vshll.u32 %v3115, 16
        %v3374 = vrot.slane %v3372, 7
        %v3375 = vor.u32 %v3371, %v3374
        %v3376 = vsel %vm3128, %v3367, %v3375
        %v3377 = vrot.slane %v3375, 4
        %v3379 = vshrl.u32 %v3116, 16
        %v3381 = vrot.slane %v3379, 6
        %v3382 = vshll.u32 %v3116, 16
        %v3384 = vrot.slane %v3382, 7
        %v3385 = vor.u32 %v3381, %v3384
        %v3386 = vsel %vm3128, %v3377, %v3385
        %v3387 = vrot.slane %v3385, 4
        %v3389 = vshrl.u32 %v3117, 16
        %v3391 = vrot.slane %v3389, 6
        %v3392 = vshll.u32 %v3117, 16
        %v3394 = vrot.slane %v3392, 7
        %v3395 = vor.u32 %v3391, %v3394
        %v3396 = vsel %vm3128, %v3387, %v3395
        %v3397 = vrot.slane %v3395, 4
        %v3399 = vshrl.u32 %v3118, 16
        %v3401 = vrot.slane %v3399, 6
        %v3402 = vshll.u32 %v3118, 16
        %v3404 = vrot.slane %v3402, 7
        %v3405 = vor.u32 %v3401, %v3404
        %v3406 = vsel %vm3128, %v3397, %v3405
        %v3407 = vrot.slane %v3405, 4
        %v3409 = vshrl.u32 %v3119, 16
        %v3411 = vrot.slane %v3409, 6
        %v3412 = vshll.u32 %v3119, 16
        %v3414 = vrot.slane %v3412, 7
        %v3415 = vor.u32 %v3411, %v3414
        %v3416 = vsel %vm3128, %v3407, %v3415
        %v3417 = vrot.slane %v3415, 4
        %v3419 = vshrl.u32 %v3120, 16
        %v3421 = vrot.slane %v3419, 6
        %v3422 = vshll.u32 %v3120, 16
        %v3424 = vrot.slane %v3422, 7
        %v3425 = vor.u32 %v3421, %v3424
        %v3426 = vsel %vm3128, %v3417, %v3425
        %v3427 = vrot.slane %v3425, 4
        %v3429 = vshrl.u32 %v3121, 16
        %v3431 = vrot.slane %v3429, 6
        %v3432 = vshll.u32 %v3121, 16
        %v3434 = vrot.slane %v3432, 7
        %v3435 = vor.u32 %v3431, %v3434
        %v3436 = vsel %vm3128, %v3427, %v3435
        %v3437 = vrot.slane %v3435, 4
        %v3439 = vshrl.u32 %v3122, 16
        %v3441 = vrot.slane %v3439, 6
        %v3442 = vshll.u32 %v3122, 16
        %v3444 = vrot.slane %v3442, 7
        %v3445 = vor.u32 %v3441, %v3444
        %v3446 = vsel %vm3128, %v3437, %v3445
        %v3447 = vrot.slane %v3445, 4
        %v3449 = vshrl.u32 %v3123, 16
        %v3451 = vrot.slane %v3449, 6
        %v3452 = vshll.u32 %v3123, 16
        %v3454 = vrot.slane %v3452, 7
        %v3455 = vor.u32 %v3451, %v3454
        %v3456 = vsel %vm3128, %v3447, %v3455
        %v3457 = vrot.slane %v3455, 4
        %v3459 = vshrl.u32 %v3124, 16
        %v3461 = vrot.slane %v3459, 6
        %v3462 = vshll.u32 %v3124, 16
        %v3464 = vrot.slane %v3462, 7
        %v3465 = vor.u32 %v3461, %v3464
        %v3466 = vsel %vm3128, %v3457, %v3465
        %v3467 = vrot.slane %v3465, 4
        %v3469 = vshrl.u32 %v3125, 16
        %v3471 = vrot.slane %v3469, 6
        %v3472 = vshll.u32 %v3125, 16
        %v3474 = vrot.slane %v3472, 7
        %v3475 = vor.u32 %v3471, %v3474
        %v3476 = vsel %vm3128, %v3467, %v3475
        %v3477 = vrot.slane %v3475, 4
        %v3479 = vshrl.u32 %v3126, 16
        %v3481 = vrot.slane %v3479, 6
        %v3482 = vshll.u32 %v3126, 16
        %v3484 = vrot.slane %v3482, 7
        %v3485 = vor.u32 %v3481, %v3484
        %v3486 = vsel %vm3128, %v3477, %v3485
        %v3487 = vrot.slane %v3481, 4
        %vm3525 = vcmask 1043457
        %vm3526 = vsmask.f32 7942
        %vm3527 = vmand %vm3525, %vm3526
        %v3528 = vld [vmem:[#allocation2 + $0x8] sm:$0xe]
        %v3529 = vsel %vm3527, %v3136, %v3528
        %3530 = vst [vmem:[#allocation2 + $0x8] sm:$0xe] %v3529
        %3531 = vst [vmem:[#allocation2 + $0xc] sm:$0xf] %v3146
        %3532 = vst [vmem:[#allocation2 + $0x10] sm:$0xf] %v3156
        %3533 = vst [vmem:[#allocation2 + $0x14] sm:$0xf] %v3166
        %3534 = vst [vmem:[#allocation2 + $0x18] sm:$0xf] %v3176
        %3535 = vst [vmem:[#allocation2 + $0x1c] sm:$0xf] %v3186
        %3536 = vst [vmem:[#allocation2 + $0x20] sm:$0xf] %v3196
        %3537 = vst [vmem:[#allocation2 + $0x24] sm:$0xf] %v3206
        %3538 = vst [vmem:[#allocation2 + $0x28] sm:$0xf] %v3216
        %3539 = vst [vmem:[#allocation2 + $0x2c] sm:$0xf] %v3226
        %3540 = vst [vmem:[#allocation2 + $0x30] sm:$0xf] %v3236
        %3541 = vst [vmem:[#allocation2 + $0x34] sm:$0xf] %v3246
        %3542 = vst [vmem:[#allocation2 + $0x38] sm:$0xf] %v3256
        %3543 = vst [vmem:[#allocation2 + $0x3c] sm:$0xf] %v3266
        %3544 = vst [vmem:[#allocation2 + $0x40] sm:$0xf] %v3276
        %3545 = vst [vmem:[#allocation2 + $0x44] sm:$0xf] %v3286
        %3546 = vst [vmem:[#allocation2 + $0x48] sm:$0xf] %v3296
        %3547 = vst [vmem:[#allocation2 + $0x4c] sm:$0xf] %v3306
        %3548 = vst [vmem:[#allocation2 + $0x50] sm:$0xf] %v3316
        %3549 = vst [vmem:[#allocation2 + $0x54] sm:$0xf] %v3326
        %3550 = vst [vmem:[#allocation2 + $0x58] sm:$0xf] %v3336
        %3551 = vst [vmem:[#allocation2 + $0x5c] sm:$0xf] %v3346
        %3552 = vst [vmem:[#allocation2 + $0x60] sm:$0xf] %v3356
        %3553 = vst [vmem:[#allocation2 + $0x64] sm:$0xf] %v3366
        %3554 = vst [vmem:[#allocation2 + $0x68] sm:$0xf] %v3376
        %3555 = vst [vmem:[#allocation2 + $0x6c] sm:$0xf] %v3386
        %3556 = vst [vmem:[#allocation2 + $0x70] sm:$0xf] %v3396
        %3557 = vst [vmem:[#allocation2 + $0x74] sm:$0xf] %v3406
        %3558 = vst [vmem:[#allocation2 + $0x78] sm:$0xf] %v3416
        %3559 = vst [vmem:[#allocation2 + $0x7c] sm:$0xf] %v3426
        %3560 = vst [vmem:[#allocation2 + $0x80] sm:$0xf] %v3436
        %3561 = vst [vmem:[#allocation2 + $0x84] sm:$0xf] %v3446
        %3562 = vst [vmem:[#allocation2 + $0x88] sm:$0xf] %v3456
        %3563 = vst [vmem:[#allocation2 + $0x8c] sm:$0xf] %v3466
        %3564 = vst [vmem:[#allocation2 + $0x90] sm:$0xf] %v3476
        %3565 = vst [vmem:[#allocation2 + $0x94] sm:$0xf] %v3486
        %vm3566 = vcmask 1040384
        %vm3567 = vsmask.f32 256
        %vm3568 = vmand %vm3566, %vm3567
        %v3569 = vld [vmem:[#allocation2 + $0x98] sm:$0x1]
        %v3570 = vsel %vm3568, %v3487, %v3569
        %3571 = vst [vmem:[#allocation2 + $0x98] sm:$0x1] %v3570
        %v3572 = vld [vmem:[#allocation2] sm:$0xf]
        %v3573 = vld [vmem:[#allocation2 + $0x4] sm:$0xf]
        %v3574 = vld [vmem:[#allocation2 + $0x8] sm:$0xf]
        %v3575 = vld [vmem:[#allocation2 + $0xc] sm:$0xf]
        %v3576 = vld [vmem:[#allocation2 + $0x10] sm:$0xf]
        %v3577 = vld [vmem:[#allocation2 + $0x14] sm:$0xf]
        %v3578 = vld [vmem:[#allocation2 + $0x18] sm:$0xf]
        %v3579 = vld [vmem:[#allocation2 + $0x1c] sm:$0xf]
        %v3580 = vld [vmem:[#allocation2 + $0x20] sm:$0xf]
        %v3581 = vld [vmem:[#allocation2 + $0x24] sm:$0xf]
        %v3582 = vld [vmem:[#allocation2 + $0x28] sm:$0xf]
        %v3583 = vld [vmem:[#allocation2 + $0x2c] sm:$0xf]
        %v3584 = vld [vmem:[#allocation2 + $0x30] sm:$0xf]
        %v3585 = vld [vmem:[#allocation2 + $0x34] sm:$0xf]
        %v3586 = vld [vmem:[#allocation2 + $0x38] sm:$0xf]
        %v3587 = vld [vmem:[#allocation2 + $0x3c] sm:$0xf]
        %v3588 = vld [vmem:[#allocation2 + $0x40] sm:$0xf]
        %v3589 = vld [vmem:[#allocation2 + $0x44] sm:$0xf]
        %v3590 = vld [vmem:[#allocation2 + $0x48] sm:$0xf]
        %v3591 = vld [vmem:[#allocation2 + $0x4c] sm:$0xf]
        %v3592 = vld [vmem:[#allocation2 + $0x50] sm:$0xf]
        %v3593 = vld [vmem:[#allocation2 + $0x54] sm:$0xf]
        %v3594 = vld [vmem:[#allocation2 + $0x58] sm:$0xf]
        %v3595 = vld [vmem:[#allocation2 + $0x5c] sm:$0xf]
        %v3596 = vld [vmem:[#allocation2 + $0x60] sm:$0xf]
        %v3597 = vld [vmem:[#allocation2 + $0x64] sm:$0xf]
        %v3598 = vld [vmem:[#allocation2 + $0x68] sm:$0xf]
        %v3599 = vld [vmem:[#allocation2 + $0x6c] sm:$0xf]
        %v3600 = vld [vmem:[#allocation2 + $0x70] sm:$0xf]
        %v3601 = vld [vmem:[#allocation2 + $0x74] sm:$0xf]
        %v3602 = vld [vmem:[#allocation2 + $0x78] sm:$0xf]
        %v3603 = vld [vmem:[#allocation2 + $0x7c] sm:$0xf]
        %v3604 = vld [vmem:[#allocation2 + $0x80] sm:$0xf]
        %v3605 = vld [vmem:[#allocation2 + $0x84] sm:$0xf]
        %v3606 = vld [vmem:[#allocation2 + $0x88] sm:$0xf]
        %v3607 = vld [vmem:[#allocation2 + $0x8c] sm:$0xf]
        %v3608 = vld [vmem:[#allocation2 + $0x8] sm:$0xe]
        %v3609 = vld [vmem:[#allocation2 + $0x90] sm:$0xf]
        %v3610 = vld [vmem:[#allocation2 + $0x94] sm:$0xf]
        %v3611 = vld [vmem:[#allocation2 + $0x98] sm:$0x1]
        %v3612 = vld [vmem:[#allocation2 + $0x10] sm:$0xc]
        %v3613 = vld [vmem:[#allocation2 + $0x98] sm:$0xf]
        %v3614 = vld [vmem:[#allocation2 + $0x9c] sm:$0xf]
        %v3615 = vld [vmem:[#allocation2 + $0xa0] sm:$0x3]
        %v3652 = vunpack.c.l.b16 %v3572
        %v3653 = vunpack.c.l.b16 %v3573
        %v3654 = vunpack.c.l.b16 %v3574
        %v3655 = vunpack.c.l.b16 %v3575
        %v3656 = vunpack.c.l.b16 %v3576
        %v3657 = vunpack.c.l.b16 %v3577
        %v3658 = vunpack.c.l.b16 %v3578
        %v3659 = vunpack.c.l.b16 %v3579
        %v3660 = vunpack.c.l.b16 %v3580
        %v3661 = vunpack.c.l.b16 %v3581
        %v3662 = vunpack.c.l.b16 %v3582
        %v3663 = vunpack.c.l.b16 %v3583
        %v3664 = vunpack.c.l.b16 %v3584
        %v3665 = vunpack.c.l.b16 %v3585
        %v3666 = vunpack.c.l.b16 %v3586
        %v3667 = vunpack.c.l.b16 %v3587
        %v3668 = vunpack.c.l.b16 %v3588
        %v3669 = vunpack.c.l.b16 %v3589
        %v3670 = vunpack.c.l.b16 %v3590
        %v3671 = vunpack.c.l.b16 %v3591
        %v3672 = vunpack.c.l.b16 %v3592
        %v3673 = vunpack.c.l.b16 %v3593
        %v3674 = vunpack.c.l.b16 %v3594
        %v3675 = vunpack.c.l.b16 %v3595
        %v3676 = vunpack.c.l.b16 %v3596
        %v3677 = vunpack.c.l.b16 %v3597
        %v3678 = vunpack.c.l.b16 %v3598
        %v3679 = vunpack.c.l.b16 %v3599
        %v3680 = vunpack.c.l.b16 %v3600
        %v3681 = vunpack.c.l.b16 %v3601
        %v3682 = vunpack.c.l.b16 %v3602
        %v3683 = vunpack.c.l.b16 %v3603
        %v3684 = vunpack.c.l.b16 %v3604
        %v3685 = vunpack.c.l.b16 %v3605
        %v3686 = vunpack.c.l.b16 %v3606
        %v3687 = vunpack.c.l.b16 %v3607
        %v3688 = vpack.c.b16 %v3653, %v3652
        %v3689 = vpack.c.b16 %v3655, %v3654
        %v3690 = vpack.c.b16 %v3657, %v3656
        %v3691 = vpack.c.b16 %v3659, %v3658
        %v3692 = vpack.c.b16 %v3661, %v3660
        %v3693 = vpack.c.b16 %v3663, %v3662
        %v3694 = vpack.c.b16 %v3665, %v3664
        %v3695 = vpack.c.b16 %v3667, %v3666
        %v3696 = vpack.c.b16 %v3669, %v3668
        %v3697 = vpack.c.b16 %v3671, %v3670
        %v3698 = vpack.c.b16 %v3673, %v3672
        %v3699 = vpack.c.b16 %v3675, %v3674
        %v3700 = vpack.c.b16 %v3677, %v3676
        %v3701 = vpack.c.b16 %v3679, %v3678
        %v3702 = vpack.c.b16 %v3681, %v3680
        %v3703 = vpack.c.b16 %v3683, %v3682
        %v3704 = vpack.c.b16 %v3685, %v3684
        %v3705 = vpack.c.b16 %v3687, %v3686
        %v3728 = vunpack.c.l.b16 %v3608
        %v3729 = vunpack.c.l.b16 %v3609
        %v3730 = vunpack.c.l.b16 %v3610
        %v3731 = vunpack.c.l.b16 %v3611
        %v3732 = vpack.c.b16 %v3655, %v3728
        %v3733 = vpack.c.b16 %v3730, %v3729
        %v3734 = vpack.c.b16 %v3731, %v3731
        %v3735 = vrot.slane %v3732, 1
        %v3736 = vrot.slane %v3690, 1
        %v3737 = vsel %vm693, %v3735, %v3736
        %v3738 = vrot.slane %v3691, 1
        %v3739 = vsel %vm693, %v3736, %v3738
        %v3740 = vrot.slane %v3692, 1
        %v3741 = vsel %vm693, %v3738, %v3740
        %v3742 = vrot.slane %v3693, 1
        %v3743 = vsel %vm693, %v3740, %v3742
        %v3744 = vrot.slane %v3694, 1
        %v3745 = vsel %vm693, %v3742, %v3744
        %v3746 = vrot.slane %v3695, 1
        %v3747 = vsel %vm693, %v3744, %v3746
        %v3748 = vrot.slane %v3696, 1
        %v3749 = vsel %vm693, %v3746, %v3748
        %v3750 = vrot.slane %v3697, 1
        %v3751 = vsel %vm693, %v3748, %v3750
        %v3752 = vrot.slane %v3698, 1
        %v3753 = vsel %vm693, %v3750, %v3752
        %v3754 = vrot.slane %v3699, 1
        %v3755 = vsel %vm693, %v3752, %v3754
        %v3756 = vrot.slane %v3700, 1
        %v3757 = vsel %vm693, %v3754, %v3756
        %v3758 = vrot.slane %v3701, 1
        %v3759 = vsel %vm693, %v3756, %v3758
        %v3760 = vrot.slane %v3702, 1
        %v3761 = vsel %vm693, %v3758, %v3760
        %v3762 = vrot.slane %v3703, 1
        %v3763 = vsel %vm693, %v3760, %v3762
        %v3764 = vrot.slane %v3704, 1
        %v3765 = vsel %vm693, %v3762, %v3764
        %v3766 = vrot.slane %v3705, 1
        %v3767 = vsel %vm693, %v3764, %v3766
        %v3768 = vrot.slane %v3733, 1
        %v3769 = vsel %vm693, %v3766, %v3768
        %v3770 = vrot.slane %v3734, 1
        %v3771 = vsel %vm693, %v3768, %v3770
        %v3794 = vunpack.c.l.b16 %v3612
        %v3795 = vunpack.c.l.b16 %v3613
        %v3796 = vunpack.c.l.b16 %v3614
        %v3797 = vunpack.c.l.b16 %v3615
        %v3798 = vpack.c.b16 %v3657, %v3794
        %v3799 = vpack.c.b16 %v3796, %v3795
        %v3800 = vpack.c.b16 %v3797, %v3797
        %v3801 = vrot.slane %v3798, 2
        %v3802 = vrot.slane %v3691, 2
        %v3803 = vsel %vm760, %v3801, %v3802
        %v3804 = vrot.slane %v3692, 2
        %v3805 = vsel %vm760, %v3802, %v3804
        %v3806 = vrot.slane %v3693, 2
        %v3807 = vsel %vm760, %v3804, %v3806
        %v3808 = vrot.slane %v3694, 2
        %v3809 = vsel %vm760, %v3806, %v3808
        %v3810 = vrot.slane %v3695, 2
        %v3811 = vsel %vm760, %v3808, %v3810
        %v3812 = vrot.slane %v3696, 2
        %v3813 = vsel %vm760, %v3810, %v3812
        %v3814 = vrot.slane %v3697, 2
        %v3815 = vsel %vm760, %v3812, %v3814
        %v3816 = vrot.slane %v3698, 2
        %v3817 = vsel %vm760, %v3814, %v3816
        %v3818 = vrot.slane %v3699, 2
        %v3819 = vsel %vm760, %v3816, %v3818
        %v3820 = vrot.slane %v3700, 2
        %v3821 = vsel %vm760, %v3818, %v3820
        %v3822 = vrot.slane %v3701, 2
        %v3823 = vsel %vm760, %v3820, %v3822
        %v3824 = vrot.slane %v3702, 2
        %v3825 = vsel %vm760, %v3822, %v3824
        %v3826 = vrot.slane %v3703, 2
        %v3827 = vsel %vm760, %v3824, %v3826
        %v3828 = vrot.slane %v3704, 2
        %v3829 = vsel %vm760, %v3826, %v3828
        %v3830 = vrot.slane %v3705, 2
        %v3831 = vsel %vm760, %v3828, %v3830
        %v3832 = vrot.slane %v3733, 2
        %v3833 = vsel %vm760, %v3830, %v3832
        %v3834 = vrot.slane %v3799, 2
        %v3835 = vsel %vm760, %v3832, %v3834
        %v3836 = vrot.slane %v3800, 2
        %v3837 = vsel %vm760, %v3834, %v3836
        %v3856 = vld [vmem:[#allocation3] sm:$0xf]
        %v3857 = vld [vmem:[#allocation3 + $0x4] sm:$0xf]
        %v3858 = vld [vmem:[#allocation3 + $0x8] sm:$0xf]
        %v3859 = vld [vmem:[#allocation3 + $0xc] sm:$0xf]
        %v3860 = vld [vmem:[#allocation3 + $0x10] sm:$0xf]
        %v3861 = vld [vmem:[#allocation3 + $0x14] sm:$0xf]
        %v3862 = vld [vmem:[#allocation3 + $0x18] sm:$0xf]
        %v3863 = vld [vmem:[#allocation3 + $0x1c] sm:$0xf]
        %v3864 = vld [vmem:[#allocation3 + $0x20] sm:$0xf]
        %v3865 = vld [vmem:[#allocation3 + $0x24] sm:$0xf]
        %v3866 = vld [vmem:[#allocation3 + $0x28] sm:$0xf]
        %v3867 = vld [vmem:[#allocation3 + $0x2c] sm:$0xf]
        %v3868 = vld [vmem:[#allocation3 + $0x30] sm:$0xf]
        %v3869 = vld [vmem:[#allocation3 + $0x34] sm:$0xf]
        %v3870 = vld [vmem:[#allocation3 + $0x38] sm:$0xf]
        %v3871 = vld [vmem:[#allocation3 + $0x3c] sm:$0xf]
        %v3872 = vld [vmem:[#allocation3 + $0x40] sm:$0xf]
        %v3873 = vld [vmem:[#allocation3 + $0x44] sm:$0xf]
        %v3874 = vld [vmem:[#allocation3 + $0x48] sm:$0xf]
        %v3875 = vld [vmem:[#allocation3 + $0x4c] sm:$0xf]
        %v3876 = vld [vmem:[#allocation3 + $0x50] sm:$0xf]
        %v3877 = vld [vmem:[#allocation3 + $0x54] sm:$0xf]
        %v3878 = vld [vmem:[#allocation3 + $0x58] sm:$0xf]
        %v3879 = vld [vmem:[#allocation3 + $0x5c] sm:$0xf]
        %v3880 = vld [vmem:[#allocation3 + $0x60] sm:$0xf]
        %v3881 = vld [vmem:[#allocation3 + $0x64] sm:$0xf]
        %v3882 = vld [vmem:[#allocation3 + $0x68] sm:$0xf]
        %v3883 = vld [vmem:[#allocation3 + $0x6c] sm:$0xf]
        %v3884 = vld [vmem:[#allocation3 + $0x70] sm:$0xf]
        %v3885 = vld [vmem:[#allocation3 + $0x74] sm:$0xf]
        %v3886 = vld [vmem:[#allocation3 + $0x78] sm:$0xf]
        %v3887 = vld [vmem:[#allocation3 + $0x7c] sm:$0xf]
        %v3888 = vld [vmem:[#allocation3 + $0x80] sm:$0xf]
        %v3889 = vld [vmem:[#allocation3 + $0x84] sm:$0xf]
        %v3890 = vld [vmem:[#allocation3 + $0x88] sm:$0xf]
        %v3891 = vld [vmem:[#allocation3 + $0x8c] sm:$0xf]
        %v3892 = vld [vmem:[#allocation3 + $0x90] sm:$0xf]
        %v3893 = vld [vmem:[#allocation3 + $0x94] sm:$0xf]
        %v3894 = vld [vmem:[#allocation3 + $0x98] sm:$0xf]
        %v3895 = vld [vmem:[#allocation3 + $0x9c] sm:$0xf]
        %v3896 = vld [vmem:[#allocation3 + $0xa0] sm:$0xf]
        %v3897 = vld [vmem:[#allocation3 + $0xa4] sm:$0xf]
        %v3898 = vld [vmem:[#allocation3 + $0xa8] sm:$0xf]
        %v3899 = vld [vmem:[#allocation3 + $0xac] sm:$0xf]
        %v3900 = vld [vmem:[#allocation3 + $0xb0] sm:$0xf]
        %v3901 = vld [vmem:[#allocation3 + $0xb4] sm:$0xf]
        %v3902 = vld [vmem:[#allocation3 + $0xb8] sm:$0xf]
        %v3903 = vld [vmem:[#allocation3 + $0xbc] sm:$0xf]
        %v3952 = vunpack.c.l.b16 %v3856
        %v3953 = vunpack.c.l.b16 %v3857
        %v3954 = vunpack.c.l.b16 %v3858
        %v3955 = vunpack.c.l.b16 %v3859
        %v3956 = vunpack.c.l.b16 %v3860
        %v3957 = vunpack.c.l.b16 %v3861
        %v3958 = vunpack.c.l.b16 %v3862
        %v3959 = vunpack.c.l.b16 %v3863
        %v3960 = vunpack.c.l.b16 %v3864
        %v3961 = vunpack.c.l.b16 %v3865
        %v3962 = vunpack.c.l.b16 %v3866
        %v3963 = vunpack.c.l.b16 %v3867
        %v3964 = vunpack.c.l.b16 %v3868
        %v3965 = vunpack.c.l.b16 %v3869
        %v3966 = vunpack.c.l.b16 %v3870
        %v3967 = vunpack.c.l.b16 %v3871
        %v3968 = vunpack.c.l.b16 %v3872
        %v3969 = vunpack.c.l.b16 %v3873
        %v3970 = vunpack.c.l.b16 %v3874
        %v3971 = vunpack.c.l.b16 %v3875
        %v3972 = vunpack.c.l.b16 %v3876
        %v3973 = vunpack.c.l.b16 %v3877
        %v3974 = vunpack.c.l.b16 %v3878
        %v3975 = vunpack.c.l.b16 %v3879
        %v3976 = vunpack.c.l.b16 %v3880
        %v3977 = vunpack.c.l.b16 %v3881
        %v3978 = vunpack.c.l.b16 %v3882
        %v3979 = vunpack.c.l.b16 %v3883
        %v3980 = vunpack.c.l.b16 %v3884
        %v3981 = vunpack.c.l.b16 %v3885
        %v3982 = vunpack.c.l.b16 %v3886
        %v3983 = vunpack.c.l.b16 %v3887
        %v3984 = vunpack.c.l.b16 %v3888
        %v3985 = vunpack.c.l.b16 %v3889
        %v3986 = vunpack.c.l.b16 %v3890
        %v3987 = vunpack.c.l.b16 %v3891
        %v3988 = vunpack.c.l.b16 %v3892
        %v3989 = vunpack.c.l.b16 %v3893
        %v3990 = vunpack.c.l.b16 %v3894
        %v3991 = vunpack.c.l.b16 %v3895
        %v3992 = vunpack.c.l.b16 %v3896
        %v3993 = vunpack.c.l.b16 %v3897
        %v3994 = vunpack.c.l.b16 %v3898
        %v3995 = vunpack.c.l.b16 %v3899
        %v3996 = vunpack.c.l.b16 %v3900
        %v3997 = vunpack.c.l.b16 %v3901
        %v3998 = vunpack.c.l.b16 %v3902
        %v3999 = vunpack.c.l.b16 %v3903
        %v4000 = vpack.c.b16 %v3953, %v3952
        %v4001 = vpack.c.b16 %v3955, %v3954
        %v4002 = vpack.c.b16 %v3957, %v3956
        %v4003 = vpack.c.b16 %v3959, %v3958
        %v4004 = vpack.c.b16 %v3961, %v3960
        %v4005 = vpack.c.b16 %v3963, %v3962
        %v4006 = vpack.c.b16 %v3965, %v3964
        %v4007 = vpack.c.b16 %v3967, %v3966
        %v4008 = vpack.c.b16 %v3969, %v3968
        %v4009 = vpack.c.b16 %v3971, %v3970
        %v4010 = vpack.c.b16 %v3973, %v3972
        %v4011 = vpack.c.b16 %v3975, %v3974
        %v4012 = vpack.c.b16 %v3977, %v3976
        %v4013 = vpack.c.b16 %v3979, %v3978
        %v4014 = vpack.c.b16 %v3981, %v3980
        %v4015 = vpack.c.b16 %v3983, %v3982
        %v4016 = vpack.c.b16 %v3985, %v3984
        %v4017 = vpack.c.b16 %v3987, %v3986
        %v4018 = vpack.c.b16 %v3989, %v3988
        %v4019 = vpack.c.b16 %v3991, %v3990
        %v4020 = vpack.c.b16 %v3993, %v3992
        %v4021 = vpack.c.b16 %v3995, %v3994
        %v4022 = vpack.c.b16 %v3997, %v3996
        %v4023 = vpack.c.b16 %v3999, %v3998
        %4048 = vmatprep.subr.bf16.mxu0 0
        %4049 = vmatpush1.bf16.msra.mxu0 %v4007
        %4050 = vmatprep.subr.bf16.mxu0 0
        %4051 = vmatpush1.bf16.msra.mxu0 %v4006
        %4052 = vmatprep.subr.bf16.mxu0 0
        %4053 = vmatpush1.bf16.msra.mxu0 %v4005
        %4054 = vmatprep.subr.bf16.mxu0 0
        %4055 = vmatpush1.bf16.msra.mxu0 %v4004
        %4056 = vmatprep.subr.bf16.mxu0 0
        %4057 = vmatpush1.bf16.msra.mxu0 %v4003
        %4058 = vmatprep.subr.bf16.mxu0 0
        %4059 = vmatpush1.bf16.msra.mxu0 %v4002
        %4060 = vmatprep.subr.bf16.mxu0 0
        %4061 = vmatpush1.bf16.msra.mxu0 %v4001
        %4062 = vmatprep.subr.bf16.mxu0 0
        %4063 = vmatpush1.bf16.msra.mxu0 %v4000
        %4064 = vmatprep.subr.bf16.mxu0 0
        %4065 = vmatpush2.bf16.msra.mxu0 %v4015
        %4066 = vmatprep.subr.bf16.mxu0 0
        %4067 = vmatpush2.bf16.msra.mxu0 %v4014
        %4068 = vmatprep.subr.bf16.mxu0 0
        %4069 = vmatpush2.bf16.msra.mxu0 %v4013
        %4070 = vmatprep.subr.bf16.mxu0 0
        %4071 = vmatpush2.bf16.msra.mxu0 %v4012
        %4072 = vmatprep.subr.bf16.mxu0 0
        %4073 = vmatpush2.bf16.msra.mxu0 %v4011
        %4074 = vmatprep.subr.bf16.mxu0 0
        %4075 = vmatpush2.bf16.msra.mxu0 %v4010
        %4076 = vmatprep.subr.bf16.mxu0 0
        %4077 = vmatpush2.bf16.msra.mxu0 %v4009
        %4078 = vmatprep.subr.bf16.mxu0 0
        %4079 = vmatpush2.bf16.msra.mxu0 %v4008
        %4080 = vmatprep.mubr.bf16.mxu0 %v3737
        %4081 = vmatmul.mubr.bf16.gmra.mxu0 %v3688
        %v4082 = vpop.f32.mrf.mxu0
        %v4083 = vadd.f32 0.0, %v4082
        %v4084 = vpop.f32.mrf.mxu0
        %v4085 = vpop.f32.mrf.mxu0
        %v4086 = vadd.f32 0.0, %v4085
        %v4087 = vpop.f32.mrf.mxu0
        %4088 = vmatprep.mubr.bf16.mxu0 %v3739
        %4089 = vmatmul.mubr.bf16.gmra.mxu0 %v3689
        %v4090 = vpop.f32.mrf.mxu0
        %v4091 = vadd.f32 0.0, %v4090
        %v4092 = vpop.f32.mrf.mxu0
        %v4093 = vpop.f32.mrf.mxu0
        %v4094 = vadd.f32 0.0, %v4093
        %v4095 = vpop.f32.mrf.mxu0
        %4096 = vmatprep.mubr.bf16.mxu0 %v3741
        %4097 = vmatmul.mubr.bf16.gmra.mxu0 %v3690
        %v4098 = vpop.f32.mrf.mxu0
        %v4099 = vadd.f32 0.0, %v4098
        %v4100 = vpop.f32.mrf.mxu0
        %v4101 = vpop.f32.mrf.mxu0
        %v4102 = vadd.f32 0.0, %v4101
        %v4103 = vpop.f32.mrf.mxu0
        %4104 = vmatprep.mubr.bf16.mxu0 %v3743
        %4105 = vmatmul.mubr.bf16.gmra.mxu0 %v3691
        %v4106 = vpop.f32.mrf.mxu0
        %v4107 = vadd.f32 0.0, %v4106
        %v4108 = vpop.f32.mrf.mxu0
        %v4109 = vpop.f32.mrf.mxu0
        %v4110 = vadd.f32 0.0, %v4109
        %v4111 = vpop.f32.mrf.mxu0
        %4112 = vmatprep.mubr.bf16.mxu0 %v3745
        %4113 = vmatmul.mubr.bf16.gmra.mxu0 %v3692
        %v4114 = vpop.f32.mrf.mxu0
        %v4115 = vadd.f32 0.0, %v4114
        %v4116 = vpop.f32.mrf.mxu0
        %v4117 = vpop.f32.mrf.mxu0
        %v4118 = vadd.f32 0.0, %v4117
        %v4119 = vpop.f32.mrf.mxu0
        %4120 = vmatprep.mubr.bf16.mxu0 %v3747
        %4121 = vmatmul.mubr.bf16.gmra.mxu0 %v3693
        %v4122 = vpop.f32.mrf.mxu0
        %v4123 = vadd.f32 0.0, %v4122
        %v4124 = vpop.f32.mrf.mxu0
        %v4125 = vpop.f32.mrf.mxu0
        %v4126 = vadd.f32 0.0, %v4125
        %v4127 = vpop.f32.mrf.mxu0
        %4128 = vmatprep.mubr.bf16.mxu0 %v3749
        %4129 = vmatmul.mubr.bf16.gmra.mxu0 %v3694
        %v4130 = vpop.f32.mrf.mxu0
        %v4131 = vadd.f32 0.0, %v4130
        %v4132 = vpop.f32.mrf.mxu0
        %v4133 = vpop.f32.mrf.mxu0
        %v4134 = vadd.f32 0.0, %v4133
        %v4135 = vpop.f32.mrf.mxu0
        %4136 = vmatprep.mubr.bf16.mxu0 %v3751
        %4137 = vmatmul.mubr.bf16.gmra.mxu0 %v3695
        %v4138 = vpop.f32.mrf.mxu0
        %v4139 = vadd.f32 0.0, %v4138
        %v4140 = vpop.f32.mrf.mxu0
        %v4141 = vpop.f32.mrf.mxu0
        %v4142 = vadd.f32 0.0, %v4141
        %v4143 = vpop.f32.mrf.mxu0
        %4144 = vmatprep.mubr.bf16.mxu0 %v3753
        %4145 = vmatmul.mubr.bf16.gmra.mxu0 %v3696
        %v4146 = vpop.f32.mrf.mxu0
        %v4147 = vadd.f32 0.0, %v4146
        %v4148 = vpop.f32.mrf.mxu0
        %v4149 = vpop.f32.mrf.mxu0
        %v4150 = vadd.f32 0.0, %v4149
        %v4151 = vpop.f32.mrf.mxu0
        %4152 = vmatprep.mubr.bf16.mxu0 %v3755
        %4153 = vmatmul.mubr.bf16.gmra.mxu0 %v3697
        %v4154 = vpop.f32.mrf.mxu0
        %v4155 = vadd.f32 0.0, %v4154
        %v4156 = vpop.f32.mrf.mxu0
        %v4157 = vpop.f32.mrf.mxu0
        %v4158 = vadd.f32 0.0, %v4157
        %v4159 = vpop.f32.mrf.mxu0
        %4160 = vmatprep.mubr.bf16.mxu0 %v3757
        %4161 = vmatmul.mubr.bf16.gmra.mxu0 %v3698
        %v4162 = vpop.f32.mrf.mxu0
        %v4163 = vadd.f32 0.0, %v4162
        %v4164 = vpop.f32.mrf.mxu0
        %v4165 = vpop.f32.mrf.mxu0
        %v4166 = vadd.f32 0.0, %v4165
        %v4167 = vpop.f32.mrf.mxu0
        %4168 = vmatprep.mubr.bf16.mxu0 %v3759
        %4169 = vmatmul.mubr.bf16.gmra.mxu0 %v3699
        %v4170 = vpop.f32.mrf.mxu0
        %v4171 = vadd.f32 0.0, %v4170
        %v4172 = vpop.f32.mrf.mxu0
        %v4173 = vpop.f32.mrf.mxu0
        %v4174 = vadd.f32 0.0, %v4173
        %v4175 = vpop.f32.mrf.mxu0
        %4176 = vmatprep.mubr.bf16.mxu0 %v3761
        %4177 = vmatmul.mubr.bf16.gmra.mxu0 %v3700
        %v4178 = vpop.f32.mrf.mxu0
        %v4179 = vadd.f32 0.0, %v4178
        %v4180 = vpop.f32.mrf.mxu0
        %v4181 = vpop.f32.mrf.mxu0
        %v4182 = vadd.f32 0.0, %v4181
        %v4183 = vpop.f32.mrf.mxu0
        %4184 = vmatprep.mubr.bf16.mxu0 %v3763
        %4185 = vmatmul.mubr.bf16.gmra.mxu0 %v3701
        %v4186 = vpop.f32.mrf.mxu0
        %v4187 = vadd.f32 0.0, %v4186
        %v4188 = vpop.f32.mrf.mxu0
        %v4189 = vpop.f32.mrf.mxu0
        %v4190 = vadd.f32 0.0, %v4189
        %v4191 = vpop.f32.mrf.mxu0
        %4192 = vmatprep.mubr.bf16.mxu0 %v3765
        %4193 = vmatmul.mubr.bf16.gmra.mxu0 %v3702
        %v4194 = vpop.f32.mrf.mxu0
        %v4195 = vadd.f32 0.0, %v4194
        %v4196 = vpop.f32.mrf.mxu0
        %v4197 = vpop.f32.mrf.mxu0
        %v4198 = vadd.f32 0.0, %v4197
        %v4199 = vpop.f32.mrf.mxu0
        %4200 = vmatprep.mubr.bf16.mxu0 %v3767
        %4201 = vmatmul.mubr.bf16.gmra.mxu0 %v3703
        %v4202 = vpop.f32.mrf.mxu0
        %v4203 = vadd.f32 0.0, %v4202
        %v4204 = vpop.f32.mrf.mxu0
        %v4205 = vpop.f32.mrf.mxu0
        %v4206 = vadd.f32 0.0, %v4205
        %v4207 = vpop.f32.mrf.mxu0
        %4208 = vmatprep.mubr.bf16.mxu0 %v3769
        %4209 = vmatmul.mubr.bf16.gmra.mxu0 %v3704
        %v4210 = vpop.f32.mrf.mxu0
        %v4211 = vadd.f32 0.0, %v4210
        %v4212 = vpop.f32.mrf.mxu0
        %v4213 = vpop.f32.mrf.mxu0
        %v4214 = vadd.f32 0.0, %v4213
        %v4215 = vpop.f32.mrf.mxu0
        %4216 = vmatprep.mubr.bf16.mxu0 %v3771
        %4217 = vmatmul.mubr.bf16.gmra.mxu0 %v3705
        %v4218 = vpop.f32.mrf.mxu0
        %v4219 = vadd.f32 0.0, %v4218
        %v4220 = vpop.f32.mrf.mxu0
        %v4221 = vpop.f32.mrf.mxu0
        %v4222 = vadd.f32 0.0, %v4221
        %v4223 = vpop.f32.mrf.mxu0
        %4224 = vdwg.mxu0
        %4225 = vmatprep.subr.bf16.mxu0 0
        %4226 = vmatpush1.bf16.msra.mxu0 %v4023
        %4227 = vmatprep.subr.bf16.mxu0 0
        %4228 = vmatpush1.bf16.msra.mxu0 %v4022
        %4229 = vmatprep.subr.bf16.mxu0 0
        %4230 = vmatpush1.bf16.msra.mxu0 %v4021
        %4231 = vmatprep.subr.bf16.mxu0 0
        %4232 = vmatpush1.bf16.msra.mxu0 %v4020
        %4233 = vmatprep.subr.bf16.mxu0 0
        %4234 = vmatpush1.bf16.msra.mxu0 %v4019
        %4235 = vmatprep.subr.bf16.mxu0 0
        %4236 = vmatpush1.bf16.msra.mxu0 %v4018
        %4237 = vmatprep.subr.bf16.mxu0 0
        %4238 = vmatpush1.bf16.msra.mxu0 %v4017
        %4239 = vmatprep.subr.bf16.mxu0 0
        %4240 = vmatpush1.bf16.msra.mxu0 %v4016
        %4241 = vmatprep.subr.bf16.mxu0 0
        %4242 = vmatpush2.bf16.msra.mxu0 0
        %4243 = vmatprep.subr.bf16.mxu0 0
        %4244 = vmatpush2.bf16.msra.mxu0 0
        %4245 = vmatprep.subr.bf16.mxu0 0
        %4246 = vmatpush2.bf16.msra.mxu0 0
        %4247 = vmatprep.subr.bf16.mxu0 0
        %4248 = vmatpush2.bf16.msra.mxu0 0
        %4249 = vmatprep.subr.bf16.mxu0 0
        %4250 = vmatpush2.bf16.msra.mxu0 0
        %4251 = vmatprep.subr.bf16.mxu0 0
        %4252 = vmatpush2.bf16.msra.mxu0 0
        %4253 = vmatprep.subr.bf16.mxu0 0
        %4254 = vmatpush2.bf16.msra.mxu0 0
        %4255 = vmatprep.subr.bf16.mxu0 0
        %4256 = vmatpush2.bf16.msra.mxu0 0
        %4257 = vmatprep.mubr.bf16.mxu0 0
        %4258 = vmatmul.mubr.bf16.gmra.mxu0 %v3803
        %v4259 = vpop.f32.mrf.mxu0
        %v4260 = vadd.f32 %v4083, %v4259
        %v4261 = vpop.f32.mrf.mxu0
        %v4262 = vpop.f32.mrf.mxu0
        %v4263 = vadd.f32 %v4086, %v4262
        %v4264 = vpop.f32.mrf.mxu0
        %4265 = vmatprep.mubr.bf16.mxu0 0
        %4266 = vmatmul.mubr.bf16.gmra.mxu0 %v3805
        %v4267 = vpop.f32.mrf.mxu0
        %v4268 = vadd.f32 %v4091, %v4267
        %v4269 = vpop.f32.mrf.mxu0
        %v4270 = vpop.f32.mrf.mxu0
        %v4271 = vadd.f32 %v4094, %v4270
        %v4272 = vpop.f32.mrf.mxu0
        %4273 = vmatprep.mubr.bf16.mxu0 0
        %4274 = vmatmul.mubr.bf16.gmra.mxu0 %v3807
        %v4275 = vpop.f32.mrf.mxu0
        %v4276 = vadd.f32 %v4099, %v4275
        %v4277 = vpop.f32.mrf.mxu0
        %v4278 = vpop.f32.mrf.mxu0
        %v4279 = vadd.f32 %v4102, %v4278
        %v4280 = vpop.f32.mrf.mxu0
        %4281 = vmatprep.mubr.bf16.mxu0 0
        %4282 = vmatmul.mubr.bf16.gmra.mxu0 %v3809
        %v4283 = vpop.f32.mrf.mxu0
        %v4284 = vadd.f32 %v4107, %v4283
        %v4285 = vpop.f32.mrf.mxu0
        %v4286 = vpop.f32.mrf.mxu0
        %v4287 = vadd.f32 %v4110, %v4286
        %v4288 = vpop.f32.mrf.mxu0
        %4289 = vmatprep.mubr.bf16.mxu0 0
        %4290 = vmatmul.mubr.bf16.gmra.mxu0 %v3811
        %v4291 = vpop.f32.mrf.mxu0
        %v4292 = vadd.f32 %v4115, %v4291
        %v4293 = vpop.f32.mrf.mxu0
        %v4294 = vpop.f32.mrf.mxu0
        %v4295 = vadd.f32 %v4118, %v4294
        %v4296 = vpop.f32.mrf.mxu0
        %4297 = vmatprep.mubr.bf16.mxu0 0
        %4298 = vmatmul.mubr.bf16.gmra.mxu0 %v3813
        %v4299 = vpop.f32.mrf.mxu0
        %v4300 = vadd.f32 %v4123, %v4299
        %v4301 = vpop.f32.mrf.mxu0
        %v4302 = vpop.f32.mrf.mxu0
        %v4303 = vadd.f32 %v4126, %v4302
        %v4304 = vpop.f32.mrf.mxu0
        %4305 = vmatprep.mubr.bf16.mxu0 0
        %4306 = vmatmul.mubr.bf16.gmra.mxu0 %v3815
        %v4307 = vpop.f32.mrf.mxu0
        %v4308 = vadd.f32 %v4131, %v4307
        %v4309 = vpop.f32.mrf.mxu0
        %v4310 = vpop.f32.mrf.mxu0
        %v4311 = vadd.f32 %v4134, %v4310
        %v4312 = vpop.f32.mrf.mxu0
        %4313 = vmatprep.mubr.bf16.mxu0 0
        %4314 = vmatmul.mubr.bf16.gmra.mxu0 %v3817
        %v4315 = vpop.f32.mrf.mxu0
        %v4316 = vadd.f32 %v4139, %v4315
        %v4317 = vpop.f32.mrf.mxu0
        %v4318 = vpop.f32.mrf.mxu0
        %v4319 = vadd.f32 %v4142, %v4318
        %v4320 = vpop.f32.mrf.mxu0
        %4321 = vmatprep.mubr.bf16.mxu0 0
        %4322 = vmatmul.mubr.bf16.gmra.mxu0 %v3819
        %v4323 = vpop.f32.mrf.mxu0
        %v4324 = vadd.f32 %v4147, %v4323
        %v4325 = vpop.f32.mrf.mxu0
        %v4326 = vpop.f32.mrf.mxu0
        %v4327 = vadd.f32 %v4150, %v4326
        %v4328 = vpop.f32.mrf.mxu0
        %4329 = vmatprep.mubr.bf16.mxu0 0
        %4330 = vmatmul.mubr.bf16.gmra.mxu0 %v3821
        %v4331 = vpop.f32.mrf.mxu0
        %v4332 = vadd.f32 %v4155, %v4331
        %v4333 = vpop.f32.mrf.mxu0
        %v4334 = vpop.f32.mrf.mxu0
        %v4335 = vadd.f32 %v4158, %v4334
        %v4336 = vpop.f32.mrf.mxu0
        %4337 = vmatprep.mubr.bf16.mxu0 0
        %4338 = vmatmul.mubr.bf16.gmra.mxu0 %v3823
        %v4339 = vpop.f32.mrf.mxu0
        %v4340 = vadd.f32 %v4163, %v4339
        %v4341 = vpop.f32.mrf.mxu0
        %v4342 = vpop.f32.mrf.mxu0
        %v4343 = vadd.f32 %v4166, %v4342
        %v4344 = vpop.f32.mrf.mxu0
        %4345 = vmatprep.mubr.bf16.mxu0 0
        %4346 = vmatmul.mubr.bf16.gmra.mxu0 %v3825
        %v4347 = vpop.f32.mrf.mxu0
        %v4348 = vadd.f32 %v4171, %v4347
        %v4349 = vpop.f32.mrf.mxu0
        %v4350 = vpop.f32.mrf.mxu0
        %v4351 = vadd.f32 %v4174, %v4350
        %v4352 = vpop.f32.mrf.mxu0
        %4353 = vmatprep.mubr.bf16.mxu0 0
        %4354 = vmatmul.mubr.bf16.gmra.mxu0 %v3827
        %v4355 = vpop.f32.mrf.mxu0
        %v4356 = vadd.f32 %v4179, %v4355
        %v4357 = vpop.f32.mrf.mxu0
        %v4358 = vpop.f32.mrf.mxu0
        %v4359 = vadd.f32 %v4182, %v4358
        %v4360 = vpop.f32.mrf.mxu0
        %4361 = vmatprep.mubr.bf16.mxu0 0
        %4362 = vmatmul.mubr.bf16.gmra.mxu0 %v3829
        %v4363 = vpop.f32.mrf.mxu0
        %v4364 = vadd.f32 %v4187, %v4363
        %v4365 = vpop.f32.mrf.mxu0
        %v4366 = vpop.f32.mrf.mxu0
        %v4367 = vadd.f32 %v4190, %v4366
        %v4368 = vpop.f32.mrf.mxu0
        %4369 = vmatprep.mubr.bf16.mxu0 0
        %4370 = vmatmul.mubr.bf16.gmra.mxu0 %v3831
        %v4371 = vpop.f32.mrf.mxu0
        %v4372 = vadd.f32 %v4195, %v4371
        %v4373 = vpop.f32.mrf.mxu0
        %v4374 = vpop.f32.mrf.mxu0
        %v4375 = vadd.f32 %v4198, %v4374
        %v4376 = vpop.f32.mrf.mxu0
        %4377 = vmatprep.mubr.bf16.mxu0 0
        %4378 = vmatmul.mubr.bf16.gmra.mxu0 %v3833
        %v4379 = vpop.f32.mrf.mxu0
        %v4380 = vadd.f32 %v4203, %v4379
        %v4381 = vpop.f32.mrf.mxu0
        %v4382 = vpop.f32.mrf.mxu0
        %v4383 = vadd.f32 %v4206, %v4382
        %v4384 = vpop.f32.mrf.mxu0
        %4385 = vmatprep.mubr.bf16.mxu0 0
        %4386 = vmatmul.mubr.bf16.gmra.mxu0 %v3835
        %v4387 = vpop.f32.mrf.mxu0
        %v4388 = vadd.f32 %v4211, %v4387
        %v4389 = vpop.f32.mrf.mxu0
        %v4390 = vpop.f32.mrf.mxu0
        %v4391 = vadd.f32 %v4214, %v4390
        %v4392 = vpop.f32.mrf.mxu0
        %4393 = vmatprep.mubr.bf16.mxu0 0
        %4394 = vmatmul.mubr.bf16.gmra.mxu0 %v3837
        %v4395 = vpop.f32.mrf.mxu0
        %v4396 = vadd.f32 %v4219, %v4395
        %v4397 = vpop.f32.mrf.mxu0
        %v4398 = vpop.f32.mrf.mxu0
        %v4399 = vadd.f32 %v4222, %v4398
        %v4400 = vpop.f32.mrf.mxu0
        %4401 = vdwg.mxu0
        %s4402 = scalar_lea.vmem [#allocation3], 192
        %v4403 = vld [vmem:[%s4402] sm:$0xf]
        %v4404 = vld [vmem:[%s4402 + $0x4] sm:$0xf]
        %v4405 = vld [vmem:[%s4402 + $0x8] sm:$0xf]
        %v4406 = vld [vmem:[%s4402 + $0xc] sm:$0xf]
        %v4407 = vld [vmem:[%s4402 + $0x10] sm:$0xf]
        %v4408 = vld [vmem:[%s4402 + $0x14] sm:$0xf]
        %v4409 = vld [vmem:[%s4402 + $0x18] sm:$0xf]
        %v4410 = vld [vmem:[%s4402 + $0x1c] sm:$0xf]
        %v4411 = vld [vmem:[%s4402 + $0x20] sm:$0xf]
        %v4412 = vld [vmem:[%s4402 + $0x24] sm:$0xf]
        %v4413 = vld [vmem:[%s4402 + $0x28] sm:$0xf]
        %v4414 = vld [vmem:[%s4402 + $0x2c] sm:$0xf]
        %v4415 = vld [vmem:[%s4402 + $0x30] sm:$0xf]
        %v4416 = vld [vmem:[%s4402 + $0x34] sm:$0xf]
        %v4417 = vld [vmem:[%s4402 + $0x38] sm:$0xf]
        %v4418 = vld [vmem:[%s4402 + $0x3c] sm:$0xf]
        %v4419 = vld [vmem:[%s4402 + $0x40] sm:$0xf]
        %v4420 = vld [vmem:[%s4402 + $0x44] sm:$0xf]
        %v4421 = vld [vmem:[%s4402 + $0x48] sm:$0xf]
        %v4422 = vld [vmem:[%s4402 + $0x4c] sm:$0xf]
        %v4423 = vld [vmem:[%s4402 + $0x50] sm:$0xf]
        %v4424 = vld [vmem:[%s4402 + $0x54] sm:$0xf]
        %v4425 = vld [vmem:[%s4402 + $0x58] sm:$0xf]
        %v4426 = vld [vmem:[%s4402 + $0x5c] sm:$0xf]
        %v4427 = vld [vmem:[%s4402 + $0x60] sm:$0xf]
        %v4428 = vld [vmem:[%s4402 + $0x64] sm:$0xf]
        %v4429 = vld [vmem:[%s4402 + $0x68] sm:$0xf]
        %v4430 = vld [vmem:[%s4402 + $0x6c] sm:$0xf]
        %v4431 = vld [vmem:[%s4402 + $0x70] sm:$0xf]
        %v4432 = vld [vmem:[%s4402 + $0x74] sm:$0xf]
        %v4433 = vld [vmem:[%s4402 + $0x78] sm:$0xf]
        %v4434 = vld [vmem:[%s4402 + $0x7c] sm:$0xf]
        %v4435 = vld [vmem:[%s4402 + $0x80] sm:$0xf]
        %v4436 = vld [vmem:[%s4402 + $0x84] sm:$0xf]
        %v4437 = vld [vmem:[%s4402 + $0x88] sm:$0xf]
        %v4438 = vld [vmem:[%s4402 + $0x8c] sm:$0xf]
        %v4439 = vld [vmem:[%s4402 + $0x90] sm:$0xf]
        %v4440 = vld [vmem:[%s4402 + $0x94] sm:$0xf]
        %v4441 = vld [vmem:[%s4402 + $0x98] sm:$0xf]
        %v4442 = vld [vmem:[%s4402 + $0x9c] sm:$0xf]
        %v4443 = vld [vmem:[%s4402 + $0xa0] sm:$0xf]
        %v4444 = vld [vmem:[%s4402 + $0xa4] sm:$0xf]
        %v4445 = vld [vmem:[%s4402 + $0xa8] sm:$0xf]
        %v4446 = vld [vmem:[%s4402 + $0xac] sm:$0xf]
        %v4447 = vld [vmem:[%s4402 + $0xb0] sm:$0xf]
        %v4448 = vld [vmem:[%s4402 + $0xb4] sm:$0xf]
        %v4449 = vld [vmem:[%s4402 + $0xb8] sm:$0xf]
        %v4450 = vld [vmem:[%s4402 + $0xbc] sm:$0xf]
        %v4499 = vunpack.c.l.b16 %v4403
        %v4500 = vunpack.c.l.b16 %v4404
        %v4501 = vunpack.c.l.b16 %v4405
        %v4502 = vunpack.c.l.b16 %v4406
        %v4503 = vunpack.c.l.b16 %v4407
        %v4504 = vunpack.c.l.b16 %v4408
        %v4505 = vunpack.c.l.b16 %v4409
        %v4506 = vunpack.c.l.b16 %v4410
        %v4507 = vunpack.c.l.b16 %v4411
        %v4508 = vunpack.c.l.b16 %v4412
        %v4509 = vunpack.c.l.b16 %v4413
        %v4510 = vunpack.c.l.b16 %v4414
        %v4511 = vunpack.c.l.b16 %v4415
        %v4512 = vunpack.c.l.b16 %v4416
        %v4513 = vunpack.c.l.b16 %v4417
        %v4514 = vunpack.c.l.b16 %v4418
        %v4515 = vunpack.c.l.b16 %v4419
        %v4516 = vunpack.c.l.b16 %v4420
        %v4517 = vunpack.c.l.b16 %v4421
        %v4518 = vunpack.c.l.b16 %v4422
        %v4519 = vunpack.c.l.b16 %v4423
        %v4520 = vunpack.c.l.b16 %v4424
        %v4521 = vunpack.c.l.b16 %v4425
        %v4522 = vunpack.c.l.b16 %v4426
        %v4523 = vunpack.c.l.b16 %v4427
        %v4524 = vunpack.c.l.b16 %v4428
        %v4525 = vunpack.c.l.b16 %v4429
        %v4526 = vunpack.c.l.b16 %v4430
        %v4527 = vunpack.c.l.b16 %v4431
        %v4528 = vunpack.c.l.b16 %v4432
        %v4529 = vunpack.c.l.b16 %v4433
        %v4530 = vunpack.c.l.b16 %v4434
        %v4531 = vunpack.c.l.b16 %v4435
        %v4532 = vunpack.c.l.b16 %v4436
        %v4533 = vunpack.c.l.b16 %v4437
        %v4534 = vunpack.c.l.b16 %v4438
        %v4535 = vunpack.c.l.b16 %v4439
        %v4536 = vunpack.c.l.b16 %v4440
        %v4537 = vunpack.c.l.b16 %v4441
        %v4538 = vunpack.c.l.b16 %v4442
        %v4539 = vunpack.c.l.b16 %v4443
        %v4540 = vunpack.c.l.b16 %v4444
        %v4541 = vunpack.c.l.b16 %v4445
        %v4542 = vunpack.c.l.b16 %v4446
        %v4543 = vunpack.c.l.b16 %v4447
        %v4544 = vunpack.c.l.b16 %v4448
        %v4545 = vunpack.c.l.b16 %v4449
        %v4546 = vunpack.c.l.b16 %v4450
        %v4547 = vpack.c.b16 %v4500, %v4499
        %v4548 = vpack.c.b16 %v4502, %v4501
        %v4549 = vpack.c.b16 %v4504, %v4503
        %v4550 = vpack.c.b16 %v4506, %v4505
        %v4551 = vpack.c.b16 %v4508, %v4507
        %v4552 = vpack.c.b16 %v4510, %v4509
        %v4553 = vpack.c.b16 %v4512, %v4511
        %v4554 = vpack.c.b16 %v4514, %v4513
        %v4555 = vpack.c.b16 %v4516, %v4515
        %v4556 = vpack.c.b16 %v4518, %v4517
        %v4557 = vpack.c.b16 %v4520, %v4519
        %v4558 = vpack.c.b16 %v4522, %v4521
        %v4559 = vpack.c.b16 %v4524, %v4523
        %v4560 = vpack.c.b16 %v4526, %v4525
        %v4561 = vpack.c.b16 %v4528, %v4527
        %v4562 = vpack.c.b16 %v4530, %v4529
        %v4563 = vpack.c.b16 %v4532, %v4531
        %v4564 = vpack.c.b16 %v4534, %v4533
        %v4565 = vpack.c.b16 %v4536, %v4535
        %v4566 = vpack.c.b16 %v4538, %v4537
        %v4567 = vpack.c.b16 %v4540, %v4539
        %v4568 = vpack.c.b16 %v4542, %v4541
        %v4569 = vpack.c.b16 %v4544, %v4543
        %v4570 = vpack.c.b16 %v4546, %v4545
        %4595 = vmatprep.subr.bf16.mxu0 0
        %4596 = vmatpush1.bf16.msra.mxu0 %v4554
        %4597 = vmatprep.subr.bf16.mxu0 0
        %4598 = vmatpush1.bf16.msra.mxu0 %v4553
        %4599 = vmatprep.subr.bf16.mxu0 0
        %4600 = vmatpush1.bf16.msra.mxu0 %v4552
        %4601 = vmatprep.subr.bf16.mxu0 0
        %4602 = vmatpush1.bf16.msra.mxu0 %v4551
        %4603 = vmatprep.subr.bf16.mxu0 0
        %4604 = vmatpush1.bf16.msra.mxu0 %v4550
        %4605 = vmatprep.subr.bf16.mxu0 0
        %4606 = vmatpush1.bf16.msra.mxu0 %v4549
        %4607 = vmatprep.subr.bf16.mxu0 0
        %4608 = vmatpush1.bf16.msra.mxu0 %v4548
        %4609 = vmatprep.subr.bf16.mxu0 0
        %4610 = vmatpush1.bf16.msra.mxu0 %v4547
        %4611 = vmatprep.subr.bf16.mxu0 0
        %4612 = vmatpush2.bf16.msra.mxu0 %v4562
        %4613 = vmatprep.subr.bf16.mxu0 0
        %4614 = vmatpush2.bf16.msra.mxu0 %v4561
        %4615 = vmatprep.subr.bf16.mxu0 0
        %4616 = vmatpush2.bf16.msra.mxu0 %v4560
        %4617 = vmatprep.subr.bf16.mxu0 0
        %4618 = vmatpush2.bf16.msra.mxu0 %v4559
        %4619 = vmatprep.subr.bf16.mxu0 0
        %4620 = vmatpush2.bf16.msra.mxu0 %v4558
        %4621 = vmatprep.subr.bf16.mxu0 0
        %4622 = vmatpush2.bf16.msra.mxu0 %v4557
        %4623 = vmatprep.subr.bf16.mxu0 0
        %4624 = vmatpush2.bf16.msra.mxu0 %v4556
        %4625 = vmatprep.subr.bf16.mxu0 0
        %4626 = vmatpush2.bf16.msra.mxu0 %v4555
        %4627 = vmatprep.mubr.bf16.mxu0 %v3737
        %4628 = vmatmul.mubr.bf16.gmra.mxu0 %v3688
        %v4629 = vpop.f32.mrf.mxu0
        %v4630 = vadd.f32 0.0, %v4629
        %v4631 = vpop.f32.mrf.mxu0
        %v4632 = vpop.f32.mrf.mxu0
        %v4633 = vadd.f32 0.0, %v4632
        %v4634 = vpop.f32.mrf.mxu0
        %4635 = vmatprep.mubr.bf16.mxu0 %v3739
        %4636 = vmatmul.mubr.bf16.gmra.mxu0 %v3689
        %v4637 = vpop.f32.mrf.mxu0
        %v4638 = vadd.f32 0.0, %v4637
        %v4639 = vpop.f32.mrf.mxu0
        %v4640 = vpop.f32.mrf.mxu0
        %v4641 = vadd.f32 0.0, %v4640
        %v4642 = vpop.f32.mrf.mxu0
        %4643 = vmatprep.mubr.bf16.mxu0 %v3741
        %4644 = vmatmul.mubr.bf16.gmra.mxu0 %v3690
        %v4645 = vpop.f32.mrf.mxu0
        %v4646 = vadd.f32 0.0, %v4645
        %v4647 = vpop.f32.mrf.mxu0
        %v4648 = vpop.f32.mrf.mxu0
        %v4649 = vadd.f32 0.0, %v4648
        %v4650 = vpop.f32.mrf.mxu0
        %4651 = vmatprep.mubr.bf16.mxu0 %v3743
        %4652 = vmatmul.mubr.bf16.gmra.mxu0 %v3691
        %v4653 = vpop.f32.mrf.mxu0
        %v4654 = vadd.f32 0.0, %v4653
        %v4655 = vpop.f32.mrf.mxu0
        %v4656 = vpop.f32.mrf.mxu0
        %v4657 = vadd.f32 0.0, %v4656
        %v4658 = vpop.f32.mrf.mxu0
        %4659 = vmatprep.mubr.bf16.mxu0 %v3745
        %4660 = vmatmul.mubr.bf16.gmra.mxu0 %v3692
        %v4661 = vpop.f32.mrf.mxu0
        %v4662 = vadd.f32 0.0, %v4661
        %v4663 = vpop.f32.mrf.mxu0
        %v4664 = vpop.f32.mrf.mxu0
        %v4665 = vadd.f32 0.0, %v4664
        %v4666 = vpop.f32.mrf.mxu0
        %4667 = vmatprep.mubr.bf16.mxu0 %v3747
        %4668 = vmatmul.mubr.bf16.gmra.mxu0 %v3693
        %v4669 = vpop.f32.mrf.mxu0
        %v4670 = vadd.f32 0.0, %v4669
        %v4671 = vpop.f32.mrf.mxu0
        %v4672 = vpop.f32.mrf.mxu0
        %v4673 = vadd.f32 0.0, %v4672
        %v4674 = vpop.f32.mrf.mxu0
        %4675 = vmatprep.mubr.bf16.mxu0 %v3749
        %4676 = vmatmul.mubr.bf16.gmra.mxu0 %v3694
        %v4677 = vpop.f32.mrf.mxu0
        %v4678 = vadd.f32 0.0, %v4677
        %v4679 = vpop.f32.mrf.mxu0
        %v4680 = vpop.f32.mrf.mxu0
        %v4681 = vadd.f32 0.0, %v4680
        %v4682 = vpop.f32.mrf.mxu0
        %4683 = vmatprep.mubr.bf16.mxu0 %v3751
        %4684 = vmatmul.mubr.bf16.gmra.mxu0 %v3695
        %v4685 = vpop.f32.mrf.mxu0
        %v4686 = vadd.f32 0.0, %v4685
        %v4687 = vpop.f32.mrf.mxu0
        %v4688 = vpop.f32.mrf.mxu0
        %v4689 = vadd.f32 0.0, %v4688
        %v4690 = vpop.f32.mrf.mxu0
        %4691 = vmatprep.mubr.bf16.mxu0 %v3753
        %4692 = vmatmul.mubr.bf16.gmra.mxu0 %v3696
        %v4693 = vpop.f32.mrf.mxu0
        %v4694 = vadd.f32 0.0, %v4693
        %v4695 = vpop.f32.mrf.mxu0
        %v4696 = vpop.f32.mrf.mxu0
        %v4697 = vadd.f32 0.0, %v4696
        %v4698 = vpop.f32.mrf.mxu0
        %4699 = vmatprep.mubr.bf16.mxu0 %v3755
        %4700 = vmatmul.mubr.bf16.gmra.mxu0 %v3697
        %v4701 = vpop.f32.mrf.mxu0
        %v4702 = vadd.f32 0.0, %v4701
        %v4703 = vpop.f32.mrf.mxu0
        %v4704 = vpop.f32.mrf.mxu0
        %v4705 = vadd.f32 0.0, %v4704
        %v4706 = vpop.f32.mrf.mxu0
        %4707 = vmatprep.mubr.bf16.mxu0 %v3757
        %4708 = vmatmul.mubr.bf16.gmra.mxu0 %v3698
        %v4709 = vpop.f32.mrf.mxu0
        %v4710 = vadd.f32 0.0, %v4709
        %v4711 = vpop.f32.mrf.mxu0
        %v4712 = vpop.f32.mrf.mxu0
        %v4713 = vadd.f32 0.0, %v4712
        %v4714 = vpop.f32.mrf.mxu0
        %4715 = vmatprep.mubr.bf16.mxu0 %v3759
        %4716 = vmatmul.mubr.bf16.gmra.mxu0 %v3699
        %v4717 = vpop.f32.mrf.mxu0
        %v4718 = vadd.f32 0.0, %v4717
        %v4719 = vpop.f32.mrf.mxu0
        %v4720 = vpop.f32.mrf.mxu0
        %v4721 = vadd.f32 0.0, %v4720
        %v4722 = vpop.f32.mrf.mxu0
        %4723 = vmatprep.mubr.bf16.mxu0 %v3761
        %4724 = vmatmul.mubr.bf16.gmra.mxu0 %v3700
        %v4725 = vpop.f32.mrf.mxu0
        %v4726 = vadd.f32 0.0, %v4725
        %v4727 = vpop.f32.mrf.mxu0
        %v4728 = vpop.f32.mrf.mxu0
        %v4729 = vadd.f32 0.0, %v4728
        %v4730 = vpop.f32.mrf.mxu0
        %4731 = vmatprep.mubr.bf16.mxu0 %v3763
        %4732 = vmatmul.mubr.bf16.gmra.mxu0 %v3701
        %v4733 = vpop.f32.mrf.mxu0
        %v4734 = vadd.f32 0.0, %v4733
        %v4735 = vpop.f32.mrf.mxu0
        %v4736 = vpop.f32.mrf.mxu0
        %v4737 = vadd.f32 0.0, %v4736
        %v4738 = vpop.f32.mrf.mxu0
        %4739 = vmatprep.mubr.bf16.mxu0 %v3765
        %4740 = vmatmul.mubr.bf16.gmra.mxu0 %v3702
        %v4741 = vpop.f32.mrf.mxu0
        %v4742 = vadd.f32 0.0, %v4741
        %v4743 = vpop.f32.mrf.mxu0
        %v4744 = vpop.f32.mrf.mxu0
        %v4745 = vadd.f32 0.0, %v4744
        %v4746 = vpop.f32.mrf.mxu0
        %4747 = vmatprep.mubr.bf16.mxu0 %v3767
        %4748 = vmatmul.mubr.bf16.gmra.mxu0 %v3703
        %v4749 = vpop.f32.mrf.mxu0
        %v4750 = vadd.f32 0.0, %v4749
        %v4751 = vpop.f32.mrf.mxu0
        %v4752 = vpop.f32.mrf.mxu0
        %v4753 = vadd.f32 0.0, %v4752
        %v4754 = vpop.f32.mrf.mxu0
        %4755 = vmatprep.mubr.bf16.mxu0 %v3769
        %4756 = vmatmul.mubr.bf16.gmra.mxu0 %v3704
        %v4757 = vpop.f32.mrf.mxu0
        %v4758 = vadd.f32 0.0, %v4757
        %v4759 = vpop.f32.mrf.mxu0
        %v4760 = vpop.f32.mrf.mxu0
        %v4761 = vadd.f32 0.0, %v4760
        %v4762 = vpop.f32.mrf.mxu0
        %4763 = vmatprep.mubr.bf16.mxu0 %v3771
        %4764 = vmatmul.mubr.bf16.gmra.mxu0 %v3705
        %v4765 = vpop.f32.mrf.mxu0
        %v4766 = vadd.f32 0.0, %v4765
        %v4767 = vpop.f32.mrf.mxu0
        %v4768 = vpop.f32.mrf.mxu0
        %v4769 = vadd.f32 0.0, %v4768
        %v4770 = vpop.f32.mrf.mxu0
        %4771 = vdwg.mxu0
        %4772 = vmatprep.subr.bf16.mxu0 0
        %4773 = vmatpush1.bf16.msra.mxu0 %v4570
        %4774 = vmatprep.subr.bf16.mxu0 0
        %4775 = vmatpush1.bf16.msra.mxu0 %v4569
        %4776 = vmatprep.subr.bf16.mxu0 0
        %4777 = vmatpush1.bf16.msra.mxu0 %v4568
        %4778 = vmatprep.subr.bf16.mxu0 0
        %4779 = vmatpush1.bf16.msra.mxu0 %v4567
        %4780 = vmatprep.subr.bf16.mxu0 0
        %4781 = vmatpush1.bf16.msra.mxu0 %v4566
        %4782 = vmatprep.subr.bf16.mxu0 0
        %4783 = vmatpush1.bf16.msra.mxu0 %v4565
        %4784 = vmatprep.subr.bf16.mxu0 0
        %4785 = vmatpush1.bf16.msra.mxu0 %v4564
        %4786 = vmatprep.subr.bf16.mxu0 0
        %4787 = vmatpush1.bf16.msra.mxu0 %v4563
        %4788 = vmatprep.subr.bf16.mxu0 0
        %4789 = vmatpush2.bf16.msra.mxu0 0
        %4790 = vmatprep.subr.bf16.mxu0 0
        %4791 = vmatpush2.bf16.msra.mxu0 0
        %4792 = vmatprep.subr.bf16.mxu0 0
        %4793 = vmatpush2.bf16.msra.mxu0 0
        %4794 = vmatprep.subr.bf16.mxu0 0
        %4795 = vmatpush2.bf16.msra.mxu0 0
        %4796 = vmatprep.subr.bf16.mxu0 0
        %4797 = vmatpush2.bf16.msra.mxu0 0
        %4798 = vmatprep.subr.bf16.mxu0 0
        %4799 = vmatpush2.bf16.msra.mxu0 0
        %4800 = vmatprep.subr.bf16.mxu0 0
        %4801 = vmatpush2.bf16.msra.mxu0 0
        %4802 = vmatprep.subr.bf16.mxu0 0
        %4803 = vmatpush2.bf16.msra.mxu0 0
        %4804 = vmatprep.mubr.bf16.mxu0 0
        %4805 = vmatmul.mubr.bf16.gmra.mxu0 %v3803
        %v4806 = vpop.f32.mrf.mxu0
        %v4807 = vadd.f32 %v4630, %v4806
        %v4808 = vpop.f32.mrf.mxu0
        %v4809 = vpop.f32.mrf.mxu0
        %v4810 = vadd.f32 %v4633, %v4809
        %v4811 = vpop.f32.mrf.mxu0
        %4812 = vmatprep.mubr.bf16.mxu0 0
        %4813 = vmatmul.mubr.bf16.gmra.mxu0 %v3805
        %v4814 = vpop.f32.mrf.mxu0
        %v4815 = vadd.f32 %v4638, %v4814
        %v4816 = vpop.f32.mrf.mxu0
        %v4817 = vpop.f32.mrf.mxu0
        %v4818 = vadd.f32 %v4641, %v4817
        %v4819 = vpop.f32.mrf.mxu0
        %4820 = vmatprep.mubr.bf16.mxu0 0
        %4821 = vmatmul.mubr.bf16.gmra.mxu0 %v3807
        %v4822 = vpop.f32.mrf.mxu0
        %v4823 = vadd.f32 %v4646, %v4822
        %v4824 = vpop.f32.mrf.mxu0
        %v4825 = vpop.f32.mrf.mxu0
        %v4826 = vadd.f32 %v4649, %v4825
        %v4827 = vpop.f32.mrf.mxu0
        %4828 = vmatprep.mubr.bf16.mxu0 0
        %4829 = vmatmul.mubr.bf16.gmra.mxu0 %v3809
        %v4830 = vpop.f32.mrf.mxu0
        %v4831 = vadd.f32 %v4654, %v4830
        %v4832 = vpop.f32.mrf.mxu0
        %v4833 = vpop.f32.mrf.mxu0
        %v4834 = vadd.f32 %v4657, %v4833
        %v4835 = vpop.f32.mrf.mxu0
        %4836 = vmatprep.mubr.bf16.mxu0 0
        %4837 = vmatmul.mubr.bf16.gmra.mxu0 %v3811
        %v4838 = vpop.f32.mrf.mxu0
        %v4839 = vadd.f32 %v4662, %v4838
        %v4840 = vpop.f32.mrf.mxu0
        %v4841 = vpop.f32.mrf.mxu0
        %v4842 = vadd.f32 %v4665, %v4841
        %v4843 = vpop.f32.mrf.mxu0
        %4844 = vmatprep.mubr.bf16.mxu0 0
        %4845 = vmatmul.mubr.bf16.gmra.mxu0 %v3813
        %v4846 = vpop.f32.mrf.mxu0
        %v4847 = vadd.f32 %v4670, %v4846
        %v4848 = vpop.f32.mrf.mxu0
        %v4849 = vpop.f32.mrf.mxu0
        %v4850 = vadd.f32 %v4673, %v4849
        %v4851 = vpop.f32.mrf.mxu0
        %4852 = vmatprep.mubr.bf16.mxu0 0
        %4853 = vmatmul.mubr.bf16.gmra.mxu0 %v3815
        %v4854 = vpop.f32.mrf.mxu0
        %v4855 = vadd.f32 %v4678, %v4854
        %v4856 = vpop.f32.mrf.mxu0
        %v4857 = vpop.f32.mrf.mxu0
        %v4858 = vadd.f32 %v4681, %v4857
        %v4859 = vpop.f32.mrf.mxu0
        %4860 = vmatprep.mubr.bf16.mxu0 0
        %4861 = vmatmul.mubr.bf16.gmra.mxu0 %v3817
        %v4862 = vpop.f32.mrf.mxu0
        %v4863 = vadd.f32 %v4686, %v4862
        %v4864 = vpop.f32.mrf.mxu0
        %v4865 = vpop.f32.mrf.mxu0
        %v4866 = vadd.f32 %v4689, %v4865
        %v4867 = vpop.f32.mrf.mxu0
        %4868 = vmatprep.mubr.bf16.mxu0 0
        %4869 = vmatmul.mubr.bf16.gmra.mxu0 %v3819
        %v4870 = vpop.f32.mrf.mxu0
        %v4871 = vadd.f32 %v4694, %v4870
        %v4872 = vpop.f32.mrf.mxu0
        %v4873 = vpop.f32.mrf.mxu0
        %v4874 = vadd.f32 %v4697, %v4873
        %v4875 = vpop.f32.mrf.mxu0
        %4876 = vmatprep.mubr.bf16.mxu0 0
        %4877 = vmatmul.mubr.bf16.gmra.mxu0 %v3821
        %v4878 = vpop.f32.mrf.mxu0
        %v4879 = vadd.f32 %v4702, %v4878
        %v4880 = vpop.f32.mrf.mxu0
        %v4881 = vpop.f32.mrf.mxu0
        %v4882 = vadd.f32 %v4705, %v4881
        %v4883 = vpop.f32.mrf.mxu0
        %4884 = vmatprep.mubr.bf16.mxu0 0
        %4885 = vmatmul.mubr.bf16.gmra.mxu0 %v3823
        %v4886 = vpop.f32.mrf.mxu0
        %v4887 = vadd.f32 %v4710, %v4886
        %v4888 = vpop.f32.mrf.mxu0
        %v4889 = vpop.f32.mrf.mxu0
        %v4890 = vadd.f32 %v4713, %v4889
        %v4891 = vpop.f32.mrf.mxu0
        %4892 = vmatprep.mubr.bf16.mxu0 0
        %4893 = vmatmul.mubr.bf16.gmra.mxu0 %v3825
        %v4894 = vpop.f32.mrf.mxu0
        %v4895 = vadd.f32 %v4718, %v4894
        %v4896 = vpop.f32.mrf.mxu0
        %v4897 = vpop.f32.mrf.mxu0
        %v4898 = vadd.f32 %v4721, %v4897
        %v4899 = vpop.f32.mrf.mxu0
        %4900 = vmatprep.mubr.bf16.mxu0 0
        %4901 = vmatmul.mubr.bf16.gmra.mxu0 %v3827
        %v4902 = vpop.f32.mrf.mxu0
        %v4903 = vadd.f32 %v4726, %v4902
        %v4904 = vpop.f32.mrf.mxu0
        %v4905 = vpop.f32.mrf.mxu0
        %v4906 = vadd.f32 %v4729, %v4905
        %v4907 = vpop.f32.mrf.mxu0
        %4908 = vmatprep.mubr.bf16.mxu0 0
        %4909 = vmatmul.mubr.bf16.gmra.mxu0 %v3829
        %v4910 = vpop.f32.mrf.mxu0
        %v4911 = vadd.f32 %v4734, %v4910
        %v4912 = vpop.f32.mrf.mxu0
        %v4913 = vpop.f32.mrf.mxu0
        %v4914 = vadd.f32 %v4737, %v4913
        %v4915 = vpop.f32.mrf.mxu0
        %4916 = vmatprep.mubr.bf16.mxu0 0
        %4917 = vmatmul.mubr.bf16.gmra.mxu0 %v3831
        %v4918 = vpop.f32.mrf.mxu0
        %v4919 = vadd.f32 %v4742, %v4918
        %v4920 = vpop.f32.mrf.mxu0
        %v4921 = vpop.f32.mrf.mxu0
        %v4922 = vadd.f32 %v4745, %v4921
        %v4923 = vpop.f32.mrf.mxu0
        %4924 = vmatprep.mubr.bf16.mxu0 0
        %4925 = vmatmul.mubr.bf16.gmra.mxu0 %v3833
        %v4926 = vpop.f32.mrf.mxu0
        %v4927 = vadd.f32 %v4750, %v4926
        %v4928 = vpop.f32.mrf.mxu0
        %v4929 = vpop.f32.mrf.mxu0
        %v4930 = vadd.f32 %v4753, %v4929
        %v4931 = vpop.f32.mrf.mxu0
        %4932 = vmatprep.mubr.bf16.mxu0 0
        %4933 = vmatmul.mubr.bf16.gmra.mxu0 %v3835
        %v4934 = vpop.f32.mrf.mxu0
        %v4935 = vadd.f32 %v4758, %v4934
        %v4936 = vpop.f32.mrf.mxu0
        %v4937 = vpop.f32.mrf.mxu0
        %v4938 = vadd.f32 %v4761, %v4937
        %v4939 = vpop.f32.mrf.mxu0
        %4940 = vmatprep.mubr.bf16.mxu0 0
        %4941 = vmatmul.mubr.bf16.gmra.mxu0 %v3837
        %v4942 = vpop.f32.mrf.mxu0
        %v4943 = vadd.f32 %v4766, %v4942
        %v4944 = vpop.f32.mrf.mxu0
        %v4945 = vpop.f32.mrf.mxu0
        %v4946 = vadd.f32 %v4769, %v4945
        %v4947 = vpop.f32.mrf.mxu0
        %4948 = vdwg.mxu0
        %v4985 = vrot.slane %v4807, 1
        %v4986 = vrot.slane %v4810, 1
        %v4987 = vsel %vm1945, %v4985, %v4986
        %v4988 = vrot.slane %v4815, 1
        %v4989 = vsel %vm1945, %v4986, %v4988
        %v4990 = vrot.slane %v4818, 1
        %v4991 = vsel %vm1945, %v4988, %v4990
        %v4992 = vrot.slane %v4823, 1
        %v4993 = vsel %vm1945, %v4990, %v4992
        %v4994 = vrot.slane %v4826, 1
        %v4995 = vsel %vm1945, %v4992, %v4994
        %v4996 = vrot.slane %v4831, 1
        %v4997 = vsel %vm1945, %v4994, %v4996
        %v4998 = vrot.slane %v4834, 1
        %v4999 = vsel %vm1945, %v4996, %v4998
        %v5000 = vrot.slane %v4839, 1
        %v5001 = vsel %vm1945, %v4998, %v5000
        %v5002 = vrot.slane %v4842, 1
        %v5003 = vsel %vm1945, %v5000, %v5002
        %v5004 = vrot.slane %v4847, 1
        %v5005 = vsel %vm1945, %v5002, %v5004
        %v5006 = vrot.slane %v4850, 1
        %v5007 = vsel %vm1945, %v5004, %v5006
        %v5008 = vrot.slane %v4855, 1
        %v5009 = vsel %vm1945, %v5006, %v5008
        %v5010 = vrot.slane %v4858, 1
        %v5011 = vsel %vm1945, %v5008, %v5010
        %v5012 = vrot.slane %v4863, 1
        %v5013 = vsel %vm1945, %v5010, %v5012
        %v5014 = vrot.slane %v4866, 1
        %v5015 = vsel %vm1945, %v5012, %v5014
        %v5016 = vrot.slane %v4871, 1
        %v5017 = vsel %vm1945, %v5014, %v5016
        %v5018 = vrot.slane %v4874, 1
        %v5019 = vsel %vm1945, %v5016, %v5018
        %v5020 = vrot.slane %v4879, 1
        %v5021 = vsel %vm1945, %v5018, %v5020
        %v5022 = vrot.slane %v4882, 1
        %v5023 = vsel %vm1945, %v5020, %v5022
        %v5024 = vrot.slane %v4887, 1
        %v5025 = vsel %vm1945, %v5022, %v5024
        %v5026 = vrot.slane %v4890, 1
        %v5027 = vsel %vm1945, %v5024, %v5026
        %v5028 = vrot.slane %v4895, 1
        %v5029 = vsel %vm1945, %v5026, %v5028
        %v5030 = vrot.slane %v4898, 1
        %v5031 = vsel %vm1945, %v5028, %v5030
        %v5032 = vrot.slane %v4903, 1
        %v5033 = vsel %vm1945, %v5030, %v5032
        %v5034 = vrot.slane %v4906, 1
        %v5035 = vsel %vm1945, %v5032, %v5034
        %v5036 = vrot.slane %v4911, 1
        %v5037 = vsel %vm1945, %v5034, %v5036
        %v5038 = vrot.slane %v4914, 1
        %v5039 = vsel %vm1945, %v5036, %v5038
        %v5040 = vrot.slane %v4919, 1
        %v5041 = vsel %vm1945, %v5038, %v5040
        %v5042 = vrot.slane %v4922, 1
        %v5043 = vsel %vm1945, %v5040, %v5042
        %v5044 = vrot.slane %v4927, 1
        %v5045 = vsel %vm1945, %v5042, %v5044
        %v5046 = vrot.slane %v4930, 1
        %v5047 = vsel %vm1945, %v5044, %v5046
        %v5048 = vrot.slane %v4935, 1
        %v5049 = vsel %vm1945, %v5046, %v5048
        %v5050 = vrot.slane %v4938, 1
        %v5051 = vsel %vm1945, %v5048, %v5050
        %v5052 = vrot.slane %v4943, 1
        %v5053 = vsel %vm1945, %v5050, %v5052
        %v5054 = vrot.slane %v4946, 1
        %v5055 = vsel %vm1945, %v5052, %v5054
        %v5092 = vadd.f32 %v4260, %v4987
        %v5093 = vadd.f32 %v4263, %v4989
        %v5094 = vadd.f32 %v4268, %v4991
        %v5095 = vadd.f32 %v4271, %v4993
        %v5096 = vadd.f32 %v4276, %v4995
        %v5097 = vadd.f32 %v4279, %v4997
        %v5098 = vadd.f32 %v4284, %v4999
        %v5099 = vadd.f32 %v4287, %v5001
        %v5100 = vadd.f32 %v4292, %v5003
        %v5101 = vadd.f32 %v4295, %v5005
        %v5102 = vadd.f32 %v4300, %v5007
        %v5103 = vadd.f32 %v4303, %v5009
        %v5104 = vadd.f32 %v4308, %v5011
        %v5105 = vadd.f32 %v4311, %v5013
        %v5106 = vadd.f32 %v4316, %v5015
        %v5107 = vadd.f32 %v4319, %v5017
        %v5108 = vadd.f32 %v4324, %v5019
        %v5109 = vadd.f32 %v4327, %v5021
        %v5110 = vadd.f32 %v4332, %v5023
        %v5111 = vadd.f32 %v4335, %v5025
        %v5112 = vadd.f32 %v4340, %v5027
        %v5113 = vadd.f32 %v4343, %v5029
        %v5114 = vadd.f32 %v4348, %v5031
        %v5115 = vadd.f32 %v4351, %v5033
        %v5116 = vadd.f32 %v4356, %v5035
        %v5117 = vadd.f32 %v4359, %v5037
        %v5118 = vadd.f32 %v4364, %v5039
        %v5119 = vadd.f32 %v4367, %v5041
        %v5120 = vadd.f32 %v4372, %v5043
        %v5121 = vadd.f32 %v4375, %v5045
        %v5122 = vadd.f32 %v4380, %v5047
        %v5123 = vadd.f32 %v4383, %v5049
        %v5124 = vadd.f32 %v4388, %v5051
        %v5125 = vadd.f32 %v4391, %v5053
        %v5126 = vadd.f32 %v4396, %v5055
        %v5127 = vadd.f32 %v4399, %v5054
        %s5128 = scalar_lea.vmem [#allocation3], 384
        %v5129 = vld [vmem:[%s5128] sm:$0xf]
        %v5130 = vld [vmem:[%s5128 + $0x4] sm:$0xf]
        %v5131 = vld [vmem:[%s5128 + $0x8] sm:$0xf]
        %v5132 = vld [vmem:[%s5128 + $0xc] sm:$0xf]
        %v5133 = vld [vmem:[%s5128 + $0x10] sm:$0xf]
        %v5134 = vld [vmem:[%s5128 + $0x14] sm:$0xf]
        %v5135 = vld [vmem:[%s5128 + $0x18] sm:$0xf]
        %v5136 = vld [vmem:[%s5128 + $0x1c] sm:$0xf]
        %v5137 = vld [vmem:[%s5128 + $0x20] sm:$0xf]
        %v5138 = vld [vmem:[%s5128 + $0x24] sm:$0xf]
        %v5139 = vld [vmem:[%s5128 + $0x28] sm:$0xf]
        %v5140 = vld [vmem:[%s5128 + $0x2c] sm:$0xf]
        %v5141 = vld [vmem:[%s5128 + $0x30] sm:$0xf]
        %v5142 = vld [vmem:[%s5128 + $0x34] sm:$0xf]
        %v5143 = vld [vmem:[%s5128 + $0x38] sm:$0xf]
        %v5144 = vld [vmem:[%s5128 + $0x3c] sm:$0xf]
        %v5145 = vld [vmem:[%s5128 + $0x40] sm:$0xf]
        %v5146 = vld [vmem:[%s5128 + $0x44] sm:$0xf]
        %v5147 = vld [vmem:[%s5128 + $0x48] sm:$0xf]
        %v5148 = vld [vmem:[%s5128 + $0x4c] sm:$0xf]
        %v5149 = vld [vmem:[%s5128 + $0x50] sm:$0xf]
        %v5150 = vld [vmem:[%s5128 + $0x54] sm:$0xf]
        %v5151 = vld [vmem:[%s5128 + $0x58] sm:$0xf]
        %v5152 = vld [vmem:[%s5128 + $0x5c] sm:$0xf]
        %v5153 = vld [vmem:[%s5128 + $0x60] sm:$0xf]
        %v5154 = vld [vmem:[%s5128 + $0x64] sm:$0xf]
        %v5155 = vld [vmem:[%s5128 + $0x68] sm:$0xf]
        %v5156 = vld [vmem:[%s5128 + $0x6c] sm:$0xf]
        %v5157 = vld [vmem:[%s5128 + $0x70] sm:$0xf]
        %v5158 = vld [vmem:[%s5128 + $0x74] sm:$0xf]
        %v5159 = vld [vmem:[%s5128 + $0x78] sm:$0xf]
        %v5160 = vld [vmem:[%s5128 + $0x7c] sm:$0xf]
        %v5161 = vld [vmem:[%s5128 + $0x80] sm:$0xf]
        %v5162 = vld [vmem:[%s5128 + $0x84] sm:$0xf]
        %v5163 = vld [vmem:[%s5128 + $0x88] sm:$0xf]
        %v5164 = vld [vmem:[%s5128 + $0x8c] sm:$0xf]
        %v5165 = vld [vmem:[%s5128 + $0x90] sm:$0xf]
        %v5166 = vld [vmem:[%s5128 + $0x94] sm:$0xf]
        %v5167 = vld [vmem:[%s5128 + $0x98] sm:$0xf]
        %v5168 = vld [vmem:[%s5128 + $0x9c] sm:$0xf]
        %v5169 = vld [vmem:[%s5128 + $0xa0] sm:$0xf]
        %v5170 = vld [vmem:[%s5128 + $0xa4] sm:$0xf]
        %v5171 = vld [vmem:[%s5128 + $0xa8] sm:$0xf]
        %v5172 = vld [vmem:[%s5128 + $0xac] sm:$0xf]
        %v5173 = vld [vmem:[%s5128 + $0xb0] sm:$0xf]
        %v5174 = vld [vmem:[%s5128 + $0xb4] sm:$0xf]
        %v5175 = vld [vmem:[%s5128 + $0xb8] sm:$0xf]
        %v5176 = vld [vmem:[%s5128 + $0xbc] sm:$0xf]
        %v5225 = vunpack.c.l.b16 %v5129
        %v5226 = vunpack.c.l.b16 %v5130
        %v5227 = vunpack.c.l.b16 %v5131
        %v5228 = vunpack.c.l.b16 %v5132
        %v5229 = vunpack.c.l.b16 %v5133
        %v5230 = vunpack.c.l.b16 %v5134
        %v5231 = vunpack.c.l.b16 %v5135
        %v5232 = vunpack.c.l.b16 %v5136
        %v5233 = vunpack.c.l.b16 %v5137
        %v5234 = vunpack.c.l.b16 %v5138
        %v5235 = vunpack.c.l.b16 %v5139
        %v5236 = vunpack.c.l.b16 %v5140
        %v5237 = vunpack.c.l.b16 %v5141
        %v5238 = vunpack.c.l.b16 %v5142
        %v5239 = vunpack.c.l.b16 %v5143
        %v5240 = vunpack.c.l.b16 %v5144
        %v5241 = vunpack.c.l.b16 %v5145
        %v5242 = vunpack.c.l.b16 %v5146
        %v5243 = vunpack.c.l.b16 %v5147
        %v5244 = vunpack.c.l.b16 %v5148
        %v5245 = vunpack.c.l.b16 %v5149
        %v5246 = vunpack.c.l.b16 %v5150
        %v5247 = vunpack.c.l.b16 %v5151
        %v5248 = vunpack.c.l.b16 %v5152
        %v5249 = vunpack.c.l.b16 %v5153
        %v5250 = vunpack.c.l.b16 %v5154
        %v5251 = vunpack.c.l.b16 %v5155
        %v5252 = vunpack.c.l.b16 %v5156
        %v5253 = vunpack.c.l.b16 %v5157
        %v5254 = vunpack.c.l.b16 %v5158
        %v5255 = vunpack.c.l.b16 %v5159
        %v5256 = vunpack.c.l.b16 %v5160
        %v5257 = vunpack.c.l.b16 %v5161
        %v5258 = vunpack.c.l.b16 %v5162
        %v5259 = vunpack.c.l.b16 %v5163
        %v5260 = vunpack.c.l.b16 %v5164
        %v5261 = vunpack.c.l.b16 %v5165
        %v5262 = vunpack.c.l.b16 %v5166
        %v5263 = vunpack.c.l.b16 %v5167
        %v5264 = vunpack.c.l.b16 %v5168
        %v5265 = vunpack.c.l.b16 %v5169
        %v5266 = vunpack.c.l.b16 %v5170
        %v5267 = vunpack.c.l.b16 %v5171
        %v5268 = vunpack.c.l.b16 %v5172
        %v5269 = vunpack.c.l.b16 %v5173
        %v5270 = vunpack.c.l.b16 %v5174
        %v5271 = vunpack.c.l.b16 %v5175
        %v5272 = vunpack.c.l.b16 %v5176
        %v5273 = vpack.c.b16 %v5226, %v5225
        %v5274 = vpack.c.b16 %v5228, %v5227
        %v5275 = vpack.c.b16 %v5230, %v5229
        %v5276 = vpack.c.b16 %v5232, %v5231
        %v5277 = vpack.c.b16 %v5234, %v5233
        %v5278 = vpack.c.b16 %v5236, %v5235
        %v5279 = vpack.c.b16 %v5238, %v5237
        %v5280 = vpack.c.b16 %v5240, %v5239
        %v5281 = vpack.c.b16 %v5242, %v5241
        %v5282 = vpack.c.b16 %v5244, %v5243
        %v5283 = vpack.c.b16 %v5246, %v5245
        %v5284 = vpack.c.b16 %v5248, %v5247
        %v5285 = vpack.c.b16 %v5250, %v5249
        %v5286 = vpack.c.b16 %v5252, %v5251
        %v5287 = vpack.c.b16 %v5254, %v5253
        %v5288 = vpack.c.b16 %v5256, %v5255
        %v5289 = vpack.c.b16 %v5258, %v5257
        %v5290 = vpack.c.b16 %v5260, %v5259
        %v5291 = vpack.c.b16 %v5262, %v5261
        %v5292 = vpack.c.b16 %v5264, %v5263
        %v5293 = vpack.c.b16 %v5266, %v5265
        %v5294 = vpack.c.b16 %v5268, %v5267
        %v5295 = vpack.c.b16 %v5270, %v5269
        %v5296 = vpack.c.b16 %v5272, %v5271
        %5321 = vmatprep.subr.bf16.mxu0 0
        %5322 = vmatpush1.bf16.msra.mxu0 %v5280
        %5323 = vmatprep.subr.bf16.mxu0 0
        %5324 = vmatpush1.bf16.msra.mxu0 %v5279
        %5325 = vmatprep.subr.bf16.mxu0 0
        %5326 = vmatpush1.bf16.msra.mxu0 %v5278
        %5327 = vmatprep.subr.bf16.mxu0 0
        %5328 = vmatpush1.bf16.msra.mxu0 %v5277
        %5329 = vmatprep.subr.bf16.mxu0 0
        %5330 = vmatpush1.bf16.msra.mxu0 %v5276
        %5331 = vmatprep.subr.bf16.mxu0 0
        %5332 = vmatpush1.bf16.msra.mxu0 %v5275
        %5333 = vmatprep.subr.bf16.mxu0 0
        %5334 = vmatpush1.bf16.msra.mxu0 %v5274
        %5335 = vmatprep.subr.bf16.mxu0 0
        %5336 = vmatpush1.bf16.msra.mxu0 %v5273
        %5337 = vmatprep.subr.bf16.mxu0 0
        %5338 = vmatpush2.bf16.msra.mxu0 %v5288
        %5339 = vmatprep.subr.bf16.mxu0 0
        %5340 = vmatpush2.bf16.msra.mxu0 %v5287
        %5341 = vmatprep.subr.bf16.mxu0 0
        %5342 = vmatpush2.bf16.msra.mxu0 %v5286
        %5343 = vmatprep.subr.bf16.mxu0 0
        %5344 = vmatpush2.bf16.msra.mxu0 %v5285
        %5345 = vmatprep.subr.bf16.mxu0 0
        %5346 = vmatpush2.bf16.msra.mxu0 %v5284
        %5347 = vmatprep.subr.bf16.mxu0 0
        %5348 = vmatpush2.bf16.msra.mxu0 %v5283
        %5349 = vmatprep.subr.bf16.mxu0 0
        %5350 = vmatpush2.bf16.msra.mxu0 %v5282
        %5351 = vmatprep.subr.bf16.mxu0 0
        %5352 = vmatpush2.bf16.msra.mxu0 %v5281
        %5353 = vmatprep.mubr.bf16.mxu0 %v3737
        %5354 = vmatmul.mubr.bf16.gmra.mxu0 %v3688
        %v5355 = vpop.f32.mrf.mxu0
        %v5356 = vadd.f32 0.0, %v5355
        %v5357 = vpop.f32.mrf.mxu0
        %v5358 = vpop.f32.mrf.mxu0
        %v5359 = vadd.f32 0.0, %v5358
        %v5360 = vpop.f32.mrf.mxu0
        %5361 = vmatprep.mubr.bf16.mxu0 %v3739
        %5362 = vmatmul.mubr.bf16.gmra.mxu0 %v3689
        %v5363 = vpop.f32.mrf.mxu0
        %v5364 = vadd.f32 0.0, %v5363
        %v5365 = vpop.f32.mrf.mxu0
        %v5366 = vpop.f32.mrf.mxu0
        %v5367 = vadd.f32 0.0, %v5366
        %v5368 = vpop.f32.mrf.mxu0
        %5369 = vmatprep.mubr.bf16.mxu0 %v3741
        %5370 = vmatmul.mubr.bf16.gmra.mxu0 %v3690
        %v5371 = vpop.f32.mrf.mxu0
        %v5372 = vadd.f32 0.0, %v5371
        %v5373 = vpop.f32.mrf.mxu0
        %v5374 = vpop.f32.mrf.mxu0
        %v5375 = vadd.f32 0.0, %v5374
        %v5376 = vpop.f32.mrf.mxu0
        %5377 = vmatprep.mubr.bf16.mxu0 %v3743
        %5378 = vmatmul.mubr.bf16.gmra.mxu0 %v3691
        %v5379 = vpop.f32.mrf.mxu0
        %v5380 = vadd.f32 0.0, %v5379
        %v5381 = vpop.f32.mrf.mxu0
        %v5382 = vpop.f32.mrf.mxu0
        %v5383 = vadd.f32 0.0, %v5382
        %v5384 = vpop.f32.mrf.mxu0
        %5385 = vmatprep.mubr.bf16.mxu0 %v3745
        %5386 = vmatmul.mubr.bf16.gmra.mxu0 %v3692
        %v5387 = vpop.f32.mrf.mxu0
        %v5388 = vadd.f32 0.0, %v5387
        %v5389 = vpop.f32.mrf.mxu0
        %v5390 = vpop.f32.mrf.mxu0
        %v5391 = vadd.f32 0.0, %v5390
        %v5392 = vpop.f32.mrf.mxu0
        %5393 = vmatprep.mubr.bf16.mxu0 %v3747
        %5394 = vmatmul.mubr.bf16.gmra.mxu0 %v3693
        %v5395 = vpop.f32.mrf.mxu0
        %v5396 = vadd.f32 0.0, %v5395
        %v5397 = vpop.f32.mrf.mxu0
        %v5398 = vpop.f32.mrf.mxu0
        %v5399 = vadd.f32 0.0, %v5398
        %v5400 = vpop.f32.mrf.mxu0
        %5401 = vmatprep.mubr.bf16.mxu0 %v3749
        %5402 = vmatmul.mubr.bf16.gmra.mxu0 %v3694
        %v5403 = vpop.f32.mrf.mxu0
        %v5404 = vadd.f32 0.0, %v5403
        %v5405 = vpop.f32.mrf.mxu0
        %v5406 = vpop.f32.mrf.mxu0
        %v5407 = vadd.f32 0.0, %v5406
        %v5408 = vpop.f32.mrf.mxu0
        %5409 = vmatprep.mubr.bf16.mxu0 %v3751
        %5410 = vmatmul.mubr.bf16.gmra.mxu0 %v3695
        %v5411 = vpop.f32.mrf.mxu0
        %v5412 = vadd.f32 0.0, %v5411
        %v5413 = vpop.f32.mrf.mxu0
        %v5414 = vpop.f32.mrf.mxu0
        %v5415 = vadd.f32 0.0, %v5414
        %v5416 = vpop.f32.mrf.mxu0
        %5417 = vmatprep.mubr.bf16.mxu0 %v3753
        %5418 = vmatmul.mubr.bf16.gmra.mxu0 %v3696
        %v5419 = vpop.f32.mrf.mxu0
        %v5420 = vadd.f32 0.0, %v5419
        %v5421 = vpop.f32.mrf.mxu0
        %v5422 = vpop.f32.mrf.mxu0
        %v5423 = vadd.f32 0.0, %v5422
        %v5424 = vpop.f32.mrf.mxu0
        %5425 = vmatprep.mubr.bf16.mxu0 %v3755
        %5426 = vmatmul.mubr.bf16.gmra.mxu0 %v3697
        %v5427 = vpop.f32.mrf.mxu0
        %v5428 = vadd.f32 0.0, %v5427
        %v5429 = vpop.f32.mrf.mxu0
        %v5430 = vpop.f32.mrf.mxu0
        %v5431 = vadd.f32 0.0, %v5430
        %v5432 = vpop.f32.mrf.mxu0
        %5433 = vmatprep.mubr.bf16.mxu0 %v3757
        %5434 = vmatmul.mubr.bf16.gmra.mxu0 %v3698
        %v5435 = vpop.f32.mrf.mxu0
        %v5436 = vadd.f32 0.0, %v5435
        %v5437 = vpop.f32.mrf.mxu0
        %v5438 = vpop.f32.mrf.mxu0
        %v5439 = vadd.f32 0.0, %v5438
        %v5440 = vpop.f32.mrf.mxu0
        %5441 = vmatprep.mubr.bf16.mxu0 %v3759
        %5442 = vmatmul.mubr.bf16.gmra.mxu0 %v3699
        %v5443 = vpop.f32.mrf.mxu0
        %v5444 = vadd.f32 0.0, %v5443
        %v5445 = vpop.f32.mrf.mxu0
        %v5446 = vpop.f32.mrf.mxu0
        %v5447 = vadd.f32 0.0, %v5446
        %v5448 = vpop.f32.mrf.mxu0
        %5449 = vmatprep.mubr.bf16.mxu0 %v3761
        %5450 = vmatmul.mubr.bf16.gmra.mxu0 %v3700
        %v5451 = vpop.f32.mrf.mxu0
        %v5452 = vadd.f32 0.0, %v5451
        %v5453 = vpop.f32.mrf.mxu0
        %v5454 = vpop.f32.mrf.mxu0
        %v5455 = vadd.f32 0.0, %v5454
        %v5456 = vpop.f32.mrf.mxu0
        %5457 = vmatprep.mubr.bf16.mxu0 %v3763
        %5458 = vmatmul.mubr.bf16.gmra.mxu0 %v3701
        %v5459 = vpop.f32.mrf.mxu0
        %v5460 = vadd.f32 0.0, %v5459
        %v5461 = vpop.f32.mrf.mxu0
        %v5462 = vpop.f32.mrf.mxu0
        %v5463 = vadd.f32 0.0, %v5462
        %v5464 = vpop.f32.mrf.mxu0
        %5465 = vmatprep.mubr.bf16.mxu0 %v3765
        %5466 = vmatmul.mubr.bf16.gmra.mxu0 %v3702
        %v5467 = vpop.f32.mrf.mxu0
        %v5468 = vadd.f32 0.0, %v5467
        %v5469 = vpop.f32.mrf.mxu0
        %v5470 = vpop.f32.mrf.mxu0
        %v5471 = vadd.f32 0.0, %v5470
        %v5472 = vpop.f32.mrf.mxu0
        %5473 = vmatprep.mubr.bf16.mxu0 %v3767
        %5474 = vmatmul.mubr.bf16.gmra.mxu0 %v3703
        %v5475 = vpop.f32.mrf.mxu0
        %v5476 = vadd.f32 0.0, %v5475
        %v5477 = vpop.f32.mrf.mxu0
        %v5478 = vpop.f32.mrf.mxu0
        %v5479 = vadd.f32 0.0, %v5478
        %v5480 = vpop.f32.mrf.mxu0
        %5481 = vmatprep.mubr.bf16.mxu0 %v3769
        %5482 = vmatmul.mubr.bf16.gmra.mxu0 %v3704
        %v5483 = vpop.f32.mrf.mxu0
        %v5484 = vadd.f32 0.0, %v5483
        %v5485 = vpop.f32.mrf.mxu0
        %v5486 = vpop.f32.mrf.mxu0
        %v5487 = vadd.f32 0.0, %v5486
        %v5488 = vpop.f32.mrf.mxu0
        %5489 = vmatprep.mubr.bf16.mxu0 %v3771
        %5490 = vmatmul.mubr.bf16.gmra.mxu0 %v3705
        %v5491 = vpop.f32.mrf.mxu0
        %v5492 = vadd.f32 0.0, %v5491
        %v5493 = vpop.f32.mrf.mxu0
        %v5494 = vpop.f32.mrf.mxu0
        %v5495 = vadd.f32 0.0, %v5494
        %v5496 = vpop.f32.mrf.mxu0
        %5497 = vdwg.mxu0
        %5498 = vmatprep.subr.bf16.mxu0 0
        %5499 = vmatpush1.bf16.msra.mxu0 %v5296
        %5500 = vmatprep.subr.bf16.mxu0 0
        %5501 = vmatpush1.bf16.msra.mxu0 %v5295
        %5502 = vmatprep.subr.bf16.mxu0 0
        %5503 = vmatpush1.bf16.msra.mxu0 %v5294
        %5504 = vmatprep.subr.bf16.mxu0 0
        %5505 = vmatpush1.bf16.msra.mxu0 %v5293
        %5506 = vmatprep.subr.bf16.mxu0 0
        %5507 = vmatpush1.bf16.msra.mxu0 %v5292
        %5508 = vmatprep.subr.bf16.mxu0 0
        %5509 = vmatpush1.bf16.msra.mxu0 %v5291
        %5510 = vmatprep.subr.bf16.mxu0 0
        %5511 = vmatpush1.bf16.msra.mxu0 %v5290
        %5512 = vmatprep.subr.bf16.mxu0 0
        %5513 = vmatpush1.bf16.msra.mxu0 %v5289
        %5514 = vmatprep.subr.bf16.mxu0 0
        %5515 = vmatpush2.bf16.msra.mxu0 0
        %5516 = vmatprep.subr.bf16.mxu0 0
        %5517 = vmatpush2.bf16.msra.mxu0 0
        %5518 = vmatprep.subr.bf16.mxu0 0
        %5519 = vmatpush2.bf16.msra.mxu0 0
        %5520 = vmatprep.subr.bf16.mxu0 0
        %5521 = vmatpush2.bf16.msra.mxu0 0
        %5522 = vmatprep.subr.bf16.mxu0 0
        %5523 = vmatpush2.bf16.msra.mxu0 0
        %5524 = vmatprep.subr.bf16.mxu0 0
        %5525 = vmatpush2.bf16.msra.mxu0 0
        %5526 = vmatprep.subr.bf16.mxu0 0
        %5527 = vmatpush2.bf16.msra.mxu0 0
        %5528 = vmatprep.subr.bf16.mxu0 0
        %5529 = vmatpush2.bf16.msra.mxu0 0
        %5530 = vmatprep.mubr.bf16.mxu0 0
        %5531 = vmatmul.mubr.bf16.gmra.mxu0 %v3803
        %v5532 = vpop.f32.mrf.mxu0
        %v5533 = vadd.f32 %v5356, %v5532
        %v5534 = vpop.f32.mrf.mxu0
        %v5535 = vpop.f32.mrf.mxu0
        %v5536 = vadd.f32 %v5359, %v5535
        %v5537 = vpop.f32.mrf.mxu0
        %5538 = vmatprep.mubr.bf16.mxu0 0
        %5539 = vmatmul.mubr.bf16.gmra.mxu0 %v3805
        %v5540 = vpop.f32.mrf.mxu0
        %v5541 = vadd.f32 %v5364, %v5540
        %v5542 = vpop.f32.mrf.mxu0
        %v5543 = vpop.f32.mrf.mxu0
        %v5544 = vadd.f32 %v5367, %v5543
        %v5545 = vpop.f32.mrf.mxu0
        %5546 = vmatprep.mubr.bf16.mxu0 0
        %5547 = vmatmul.mubr.bf16.gmra.mxu0 %v3807
        %v5548 = vpop.f32.mrf.mxu0
        %v5549 = vadd.f32 %v5372, %v5548
        %v5550 = vpop.f32.mrf.mxu0
        %v5551 = vpop.f32.mrf.mxu0
        %v5552 = vadd.f32 %v5375, %v5551
        %v5553 = vpop.f32.mrf.mxu0
        %5554 = vmatprep.mubr.bf16.mxu0 0
        %5555 = vmatmul.mubr.bf16.gmra.mxu0 %v3809
        %v5556 = vpop.f32.mrf.mxu0
        %v5557 = vadd.f32 %v5380, %v5556
        %v5558 = vpop.f32.mrf.mxu0
        %v5559 = vpop.f32.mrf.mxu0
        %v5560 = vadd.f32 %v5383, %v5559
        %v5561 = vpop.f32.mrf.mxu0
        %5562 = vmatprep.mubr.bf16.mxu0 0
        %5563 = vmatmul.mubr.bf16.gmra.mxu0 %v3811
        %v5564 = vpop.f32.mrf.mxu0
        %v5565 = vadd.f32 %v5388, %v5564
        %v5566 = vpop.f32.mrf.mxu0
        %v5567 = vpop.f32.mrf.mxu0
        %v5568 = vadd.f32 %v5391, %v5567
        %v5569 = vpop.f32.mrf.mxu0
        %5570 = vmatprep.mubr.bf16.mxu0 0
        %5571 = vmatmul.mubr.bf16.gmra.mxu0 %v3813
        %v5572 = vpop.f32.mrf.mxu0
        %v5573 = vadd.f32 %v5396, %v5572
        %v5574 = vpop.f32.mrf.mxu0
        %v5575 = vpop.f32.mrf.mxu0
        %v5576 = vadd.f32 %v5399, %v5575
        %v5577 = vpop.f32.mrf.mxu0
        %5578 = vmatprep.mubr.bf16.mxu0 0
        %5579 = vmatmul.mubr.bf16.gmra.mxu0 %v3815
        %v5580 = vpop.f32.mrf.mxu0
        %v5581 = vadd.f32 %v5404, %v5580
        %v5582 = vpop.f32.mrf.mxu0
        %v5583 = vpop.f32.mrf.mxu0
        %v5584 = vadd.f32 %v5407, %v5583
        %v5585 = vpop.f32.mrf.mxu0
        %5586 = vmatprep.mubr.bf16.mxu0 0
        %5587 = vmatmul.mubr.bf16.gmra.mxu0 %v3817
        %v5588 = vpop.f32.mrf.mxu0
        %v5589 = vadd.f32 %v5412, %v5588
        %v5590 = vpop.f32.mrf.mxu0
        %v5591 = vpop.f32.mrf.mxu0
        %v5592 = vadd.f32 %v5415, %v5591
        %v5593 = vpop.f32.mrf.mxu0
        %5594 = vmatprep.mubr.bf16.mxu0 0
        %5595 = vmatmul.mubr.bf16.gmra.mxu0 %v3819
        %v5596 = vpop.f32.mrf.mxu0
        %v5597 = vadd.f32 %v5420, %v5596
        %v5598 = vpop.f32.mrf.mxu0
        %v5599 = vpop.f32.mrf.mxu0
        %v5600 = vadd.f32 %v5423, %v5599
        %v5601 = vpop.f32.mrf.mxu0
        %5602 = vmatprep.mubr.bf16.mxu0 0
        %5603 = vmatmul.mubr.bf16.gmra.mxu0 %v3821
        %v5604 = vpop.f32.mrf.mxu0
        %v5605 = vadd.f32 %v5428, %v5604
        %v5606 = vpop.f32.mrf.mxu0
        %v5607 = vpop.f32.mrf.mxu0
        %v5608 = vadd.f32 %v5431, %v5607
        %v5609 = vpop.f32.mrf.mxu0
        %5610 = vmatprep.mubr.bf16.mxu0 0
        %5611 = vmatmul.mubr.bf16.gmra.mxu0 %v3823
        %v5612 = vpop.f32.mrf.mxu0
        %v5613 = vadd.f32 %v5436, %v5612
        %v5614 = vpop.f32.mrf.mxu0
        %v5615 = vpop.f32.mrf.mxu0
        %v5616 = vadd.f32 %v5439, %v5615
        %v5617 = vpop.f32.mrf.mxu0
        %5618 = vmatprep.mubr.bf16.mxu0 0
        %5619 = vmatmul.mubr.bf16.gmra.mxu0 %v3825
        %v5620 = vpop.f32.mrf.mxu0
        %v5621 = vadd.f32 %v5444, %v5620
        %v5622 = vpop.f32.mrf.mxu0
        %v5623 = vpop.f32.mrf.mxu0
        %v5624 = vadd.f32 %v5447, %v5623
        %v5625 = vpop.f32.mrf.mxu0
        %5626 = vmatprep.mubr.bf16.mxu0 0
        %5627 = vmatmul.mubr.bf16.gmra.mxu0 %v3827
        %v5628 = vpop.f32.mrf.mxu0
        %v5629 = vadd.f32 %v5452, %v5628
        %v5630 = vpop.f32.mrf.mxu0
        %v5631 = vpop.f32.mrf.mxu0
        %v5632 = vadd.f32 %v5455, %v5631
        %v5633 = vpop.f32.mrf.mxu0
        %5634 = vmatprep.mubr.bf16.mxu0 0
        %5635 = vmatmul.mubr.bf16.gmra.mxu0 %v3829
        %v5636 = vpop.f32.mrf.mxu0
        %v5637 = vadd.f32 %v5460, %v5636
        %v5638 = vpop.f32.mrf.mxu0
        %v5639 = vpop.f32.mrf.mxu0
        %v5640 = vadd.f32 %v5463, %v5639
        %v5641 = vpop.f32.mrf.mxu0
        %5642 = vmatprep.mubr.bf16.mxu0 0
        %5643 = vmatmul.mubr.bf16.gmra.mxu0 %v3831
        %v5644 = vpop.f32.mrf.mxu0
        %v5645 = vadd.f32 %v5468, %v5644
        %v5646 = vpop.f32.mrf.mxu0
        %v5647 = vpop.f32.mrf.mxu0
        %v5648 = vadd.f32 %v5471, %v5647
        %v5649 = vpop.f32.mrf.mxu0
        %5650 = vmatprep.mubr.bf16.mxu0 0
        %5651 = vmatmul.mubr.bf16.gmra.mxu0 %v3833
        %v5652 = vpop.f32.mrf.mxu0
        %v5653 = vadd.f32 %v5476, %v5652
        %v5654 = vpop.f32.mrf.mxu0
        %v5655 = vpop.f32.mrf.mxu0
        %v5656 = vadd.f32 %v5479, %v5655
        %v5657 = vpop.f32.mrf.mxu0
        %5658 = vmatprep.mubr.bf16.mxu0 0
        %5659 = vmatmul.mubr.bf16.gmra.mxu0 %v3835
        %v5660 = vpop.f32.mrf.mxu0
        %v5661 = vadd.f32 %v5484, %v5660
        %v5662 = vpop.f32.mrf.mxu0
        %v5663 = vpop.f32.mrf.mxu0
        %v5664 = vadd.f32 %v5487, %v5663
        %v5665 = vpop.f32.mrf.mxu0
        %5666 = vmatprep.mubr.bf16.mxu0 0
        %5667 = vmatmul.mubr.bf16.gmra.mxu0 %v3837
        %v5668 = vpop.f32.mrf.mxu0
        %v5669 = vadd.f32 %v5492, %v5668
        %v5670 = vpop.f32.mrf.mxu0
        %v5671 = vpop.f32.mrf.mxu0
        %v5672 = vadd.f32 %v5495, %v5671
        %v5673 = vpop.f32.mrf.mxu0
        %5674 = vdwg.mxu0
        %v5711 = vrot.slane %v5533, 2
        %v5712 = vrot.slane %v5536, 2
        %v5713 = vsel %vm2672, %v5711, %v5712
        %v5714 = vrot.slane %v5541, 2
        %v5715 = vsel %vm2672, %v5712, %v5714
        %v5716 = vrot.slane %v5544, 2
        %v5717 = vsel %vm2672, %v5714, %v5716
        %v5718 = vrot.slane %v5549, 2
        %v5719 = vsel %vm2672, %v5716, %v5718
        %v5720 = vrot.slane %v5552, 2
        %v5721 = vsel %vm2672, %v5718, %v5720
        %v5722 = vrot.slane %v5557, 2
        %v5723 = vsel %vm2672, %v5720, %v5722
        %v5724 = vrot.slane %v5560, 2
        %v5725 = vsel %vm2672, %v5722, %v5724
        %v5726 = vrot.slane %v5565, 2
        %v5727 = vsel %vm2672, %v5724, %v5726
        %v5728 = vrot.slane %v5568, 2
        %v5729 = vsel %vm2672, %v5726, %v5728
        %v5730 = vrot.slane %v5573, 2
        %v5731 = vsel %vm2672, %v5728, %v5730
        %v5732 = vrot.slane %v5576, 2
        %v5733 = vsel %vm2672, %v5730, %v5732
        %v5734 = vrot.slane %v5581, 2
        %v5735 = vsel %vm2672, %v5732, %v5734
        %v5736 = vrot.slane %v5584, 2
        %v5737 = vsel %vm2672, %v5734, %v5736
        %v5738 = vrot.slane %v5589, 2
        %v5739 = vsel %vm2672, %v5736, %v5738
        %v5740 = vrot.slane %v5592, 2
        %v5741 = vsel %vm2672, %v5738, %v5740
        %v5742 = vrot.slane %v5597, 2
        %v5743 = vsel %vm2672, %v5740, %v5742
        %v5744 = vrot.slane %v5600, 2
        %v5745 = vsel %vm2672, %v5742, %v5744
        %v5746 = vrot.slane %v5605, 2
        %v5747 = vsel %vm2672, %v5744, %v5746
        %v5748 = vrot.slane %v5608, 2
        %v5749 = vsel %vm2672, %v5746, %v5748
        %v5750 = vrot.slane %v5613, 2
        %v5751 = vsel %vm2672, %v5748, %v5750
        %v5752 = vrot.slane %v5616, 2
        %v5753 = vsel %vm2672, %v5750, %v5752
        %v5754 = vrot.slane %v5621, 2
        %v5755 = vsel %vm2672, %v5752, %v5754
        %v5756 = vrot.slane %v5624, 2
        %v5757 = vsel %vm2672, %v5754, %v5756
        %v5758 = vrot.slane %v5629, 2
        %v5759 = vsel %vm2672, %v5756, %v5758
        %v5760 = vrot.slane %v5632, 2
        %v5761 = vsel %vm2672, %v5758, %v5760
        %v5762 = vrot.slane %v5637, 2
        %v5763 = vsel %vm2672, %v5760, %v5762
        %v5764 = vrot.slane %v5640, 2
        %v5765 = vsel %vm2672, %v5762, %v5764
        %v5766 = vrot.slane %v5645, 2
        %v5767 = vsel %vm2672, %v5764, %v5766
        %v5768 = vrot.slane %v5648, 2
        %v5769 = vsel %vm2672, %v5766, %v5768
        %v5770 = vrot.slane %v5653, 2
        %v5771 = vsel %vm2672, %v5768, %v5770
        %v5772 = vrot.slane %v5656, 2
        %v5773 = vsel %vm2672, %v5770, %v5772
        %v5774 = vrot.slane %v5661, 2
        %v5775 = vsel %vm2672, %v5772, %v5774
        %v5776 = vrot.slane %v5664, 2
        %v5777 = vsel %vm2672, %v5774, %v5776
        %v5778 = vrot.slane %v5669, 2
        %v5779 = vsel %vm2672, %v5776, %v5778
        %v5780 = vrot.slane %v5672, 2
        %v5781 = vsel %vm2672, %v5778, %v5780
        %v5818 = vadd.f32 %v5092, %v5713
        %v5819 = vadd.f32 %v5093, %v5715
        %v5820 = vadd.f32 %v5094, %v5717
        %v5821 = vadd.f32 %v5095, %v5719
        %v5822 = vadd.f32 %v5096, %v5721
        %v5823 = vadd.f32 %v5097, %v5723
        %v5824 = vadd.f32 %v5098, %v5725
        %v5825 = vadd.f32 %v5099, %v5727
        %v5826 = vadd.f32 %v5100, %v5729
        %v5827 = vadd.f32 %v5101, %v5731
        %v5828 = vadd.f32 %v5102, %v5733
        %v5829 = vadd.f32 %v5103, %v5735
        %v5830 = vadd.f32 %v5104, %v5737
        %v5831 = vadd.f32 %v5105, %v5739
        %v5832 = vadd.f32 %v5106, %v5741
        %v5833 = vadd.f32 %v5107, %v5743
        %v5834 = vadd.f32 %v5108, %v5745
        %v5835 = vadd.f32 %v5109, %v5747
        %v5836 = vadd.f32 %v5110, %v5749
        %v5837 = vadd.f32 %v5111, %v5751
        %v5838 = vadd.f32 %v5112, %v5753
        %v5839 = vadd.f32 %v5113, %v5755
        %v5840 = vadd.f32 %v5114, %v5757
        %v5841 = vadd.f32 %v5115, %v5759
        %v5842 = vadd.f32 %v5116, %v5761
        %v5843 = vadd.f32 %v5117, %v5763
        %v5844 = vadd.f32 %v5118, %v5765
        %v5845 = vadd.f32 %v5119, %v5767
        %v5846 = vadd.f32 %v5120, %v5769
        %v5847 = vadd.f32 %v5121, %v5771
        %v5848 = vadd.f32 %v5122, %v5773
        %v5849 = vadd.f32 %v5123, %v5775
        %v5850 = vadd.f32 %v5124, %v5777
        %v5851 = vadd.f32 %v5125, %v5779
        %v5852 = vadd.f32 %v5126, %v5781
        %v5853 = vadd.f32 %v5127, %v5780
        %v5854 = vld [vmem:[%s234 + $0x8] sm:$0xe]
        %v5855 = vld [vmem:[%s234 + $0xc] sm:$0xf]
        %v5856 = vld [vmem:[%s234 + $0x10] sm:$0xf]
        %v5857 = vld [vmem:[%s234 + $0x14] sm:$0xf]
        %v5858 = vld [vmem:[%s234 + $0x18] sm:$0xf]
        %v5859 = vld [vmem:[%s234 + $0x1c] sm:$0xf]
        %v5860 = vld [vmem:[%s234 + $0x20] sm:$0xf]
        %v5861 = vld [vmem:[%s234 + $0x24] sm:$0xf]
        %v5862 = vld [vmem:[%s234 + $0x28] sm:$0xf]
        %v5863 = vld [vmem:[%s234 + $0x2c] sm:$0xf]
        %v5864 = vld [vmem:[%s234 + $0x30] sm:$0xf]
        %v5865 = vld [vmem:[%s234 + $0x34] sm:$0xf]
        %v5866 = vld [vmem:[%s234 + $0x38] sm:$0xf]
        %v5867 = vld [vmem:[%s234 + $0x3c] sm:$0xf]
        %v5868 = vld [vmem:[%s234 + $0x40] sm:$0xf]
        %v5869 = vld [vmem:[%s234 + $0x44] sm:$0xf]
        %v5870 = vld [vmem:[%s234 + $0x48] sm:$0xf]
        %v5871 = vld [vmem:[%s234 + $0x4c] sm:$0xf]
        %v5872 = vld [vmem:[%s234 + $0x50] sm:$0xf]
        %v5873 = vld [vmem:[%s234 + $0x54] sm:$0xf]
        %v5874 = vld [vmem:[%s234 + $0x58] sm:$0xf]
        %v5875 = vld [vmem:[%s234 + $0x5c] sm:$0xf]
        %v5876 = vld [vmem:[%s234 + $0x60] sm:$0xf]
        %v5877 = vld [vmem:[%s234 + $0x64] sm:$0xf]
        %v5878 = vld [vmem:[%s234 + $0x68] sm:$0xf]
        %v5879 = vld [vmem:[%s234 + $0x6c] sm:$0xf]
        %v5880 = vld [vmem:[%s234 + $0x70] sm:$0xf]
        %v5881 = vld [vmem:[%s234 + $0x74] sm:$0xf]
        %v5882 = vld [vmem:[%s234 + $0x78] sm:$0xf]
        %v5883 = vld [vmem:[%s234 + $0x7c] sm:$0xf]
        %v5884 = vld [vmem:[%s234 + $0x80] sm:$0xf]
        %v5885 = vld [vmem:[%s234 + $0x84] sm:$0xf]
        %v5886 = vld [vmem:[%s234 + $0x88] sm:$0xf]
        %v5887 = vld [vmem:[%s234 + $0x8c] sm:$0xf]
        %v5888 = vld [vmem:[%s234 + $0x90] sm:$0xf]
        %v5889 = vld [vmem:[%s234 + $0x94] sm:$0xf]
        %v5890 = vld [vmem:[%s234 + $0x98] sm:$0x1]
        %v5891 = vunpack.c.l.bf16 %v5854
        %v5892 = vunpack.c.l.bf16 %v5855
        %v5893 = vunpack.c.l.bf16 %v5856
        %v5894 = vunpack.c.l.bf16 %v5857
        %v5895 = vunpack.c.l.bf16 %v5858
        %v5896 = vunpack.c.l.bf16 %v5859
        %v5897 = vunpack.c.l.bf16 %v5860
        %v5898 = vunpack.c.l.bf16 %v5861
        %v5899 = vunpack.c.l.bf16 %v5862
        %v5900 = vunpack.c.l.bf16 %v5863
        %v5901 = vunpack.c.l.bf16 %v5864
        %v5902 = vunpack.c.l.bf16 %v5865
        %v5903 = vunpack.c.l.bf16 %v5866
        %v5904 = vunpack.c.l.bf16 %v5867
        %v5905 = vunpack.c.l.bf16 %v5868
        %v5906 = vunpack.c.l.bf16 %v5869
        %v5907 = vunpack.c.l.bf16 %v5870
        %v5908 = vunpack.c.l.bf16 %v5871
        %v5909 = vunpack.c.l.bf16 %v5872
        %v5910 = vunpack.c.l.bf16 %v5873
        %v5911 = vunpack.c.l.bf16 %v5874
        %v5912 = vunpack.c.l.bf16 %v5875
        %v5913 = vunpack.c.l.bf16 %v5876
        %v5914 = vunpack.c.l.bf16 %v5877
        %v5915 = vunpack.c.l.bf16 %v5878
        %v5916 = vunpack.c.l.bf16 %v5879
        %v5917 = vunpack.c.l.bf16 %v5880
        %v5918 = vunpack.c.l.bf16 %v5881
        %v5919 = vunpack.c.l.bf16 %v5882
        %v5920 = vunpack.c.l.bf16 %v5883
        %v5921 = vunpack.c.l.bf16 %v5884
        %v5922 = vunpack.c.l.bf16 %v5885
        %v5923 = vunpack.c.l.bf16 %v5886
        %v5924 = vunpack.c.l.bf16 %v5887
        %v5925 = vunpack.c.l.bf16 %v5888
        %v5926 = vunpack.c.l.bf16 %v5889
        %v5927 = vunpack.c.l.bf16 %v5890
        %v5928 = vld [vmem:[%s4] sm:$0x1]
        %v5930 = vlaneseq
        %v5931 = vshrl.u32 %v5930, 7
        %v5932 = vsub.s32 0, %v5931
        %v5933 = vrot.slane %v5928, %v5932
        %v5935 = vadd.f32 %v5818, %v5933
        %v5936 = vadd.f32 %v5819, %v5933
        %v5937 = vadd.f32 %v5820, %v5933
        %v5938 = vadd.f32 %v5821, %v5933
        %v5939 = vadd.f32 %v5822, %v5933
        %v5940 = vadd.f32 %v5823, %v5933
        %v5941 = vadd.f32 %v5824, %v5933
        %v5942 = vadd.f32 %v5825, %v5933
        %v5943 = vadd.f32 %v5826, %v5933
        %v5944 = vadd.f32 %v5827, %v5933
        %v5945 = vadd.f32 %v5828, %v5933
        %v5946 = vadd.f32 %v5829, %v5933
        %v5947 = vadd.f32 %v5830, %v5933
        %v5948 = vadd.f32 %v5831, %v5933
        %v5949 = vadd.f32 %v5832, %v5933
        %v5950 = vadd.f32 %v5833, %v5933
        %v5951 = vadd.f32 %v5834, %v5933
        %v5952 = vadd.f32 %v5835, %v5933
        %v5953 = vadd.f32 %v5836, %v5933
        %v5954 = vadd.f32 %v5837, %v5933
        %v5955 = vadd.f32 %v5838, %v5933
        %v5956 = vadd.f32 %v5839, %v5933
        %v5957 = vadd.f32 %v5840, %v5933
        %v5958 = vadd.f32 %v5841, %v5933
        %v5959 = vadd.f32 %v5842, %v5933
        %v5960 = vadd.f32 %v5843, %v5933
        %v5961 = vadd.f32 %v5844, %v5933
        %v5962 = vadd.f32 %v5845, %v5933
        %v5963 = vadd.f32 %v5846, %v5933
        %v5964 = vadd.f32 %v5847, %v5933
        %v5965 = vadd.f32 %v5848, %v5933
        %v5966 = vadd.f32 %v5849, %v5933
        %v5967 = vadd.f32 %v5850, %v5933
        %v5968 = vadd.f32 %v5851, %v5933
        %v5969 = vadd.f32 %v5852, %v5933
        %v5970 = vadd.f32 %v5853, %v5933
        %vm6008 = vcmask 1044480
        %v6009 = vrot.slane %v5891, 3
        %v6010 = vrot.slane %v5892, 3
        %v6011 = vsel %vm6008, %v6009, %v6010
        %v6012 = vrot.slane %v5893, 3
        %v6013 = vsel %vm6008, %v6010, %v6012
        %v6014 = vrot.slane %v5894, 3
        %v6015 = vsel %vm6008, %v6012, %v6014
        %v6016 = vrot.slane %v5895, 3
        %v6017 = vsel %vm6008, %v6014, %v6016
        %v6018 = vrot.slane %v5896, 3
        %v6019 = vsel %vm6008, %v6016, %v6018
        %v6020 = vrot.slane %v5897, 3
        %v6021 = vsel %vm6008, %v6018, %v6020
        %v6022 = vrot.slane %v5898, 3
        %v6023 = vsel %vm6008, %v6020, %v6022
        %v6024 = vrot.slane %v5899, 3
        %v6025 = vsel %vm6008, %v6022, %v6024
        %v6026 = vrot.slane %v5900, 3
        %v6027 = vsel %vm6008, %v6024, %v6026
        %v6028 = vrot.slane %v5901, 3
        %v6029 = vsel %vm6008, %v6026, %v6028
        %v6030 = vrot.slane %v5902, 3
        %v6031 = vsel %vm6008, %v6028, %v6030
        %v6032 = vrot.slane %v5903, 3
        %v6033 = vsel %vm6008, %v6030, %v6032
        %v6034 = vrot.slane %v5904, 3
        %v6035 = vsel %vm6008, %v6032, %v6034
        %v6036 = vrot.slane %v5905, 3
        %v6037 = vsel %vm6008, %v6034, %v6036
        %v6038 = vrot.slane %v5906, 3
        %v6039 = vsel %vm6008, %v6036, %v6038
        %v6040 = vrot.slane %v5907, 3
        %v6041 = vsel %vm6008, %v6038, %v6040
        %v6042 = vrot.slane %v5908, 3
        %v6043 = vsel %vm6008, %v6040, %v6042
        %v6044 = vrot.slane %v5909, 3
        %v6045 = vsel %vm6008, %v6042, %v6044
        %v6046 = vrot.slane %v5910, 3
        %v6047 = vsel %vm6008, %v6044, %v6046
        %v6048 = vrot.slane %v5911, 3
        %v6049 = vsel %vm6008, %v6046, %v6048
        %v6050 = vrot.slane %v5912, 3
        %v6051 = vsel %vm6008, %v6048, %v6050
        %v6052 = vrot.slane %v5913, 3
        %v6053 = vsel %vm6008, %v6050, %v6052
        %v6054 = vrot.slane %v5914, 3
        %v6055 = vsel %vm6008, %v6052, %v6054
        %v6056 = vrot.slane %v5915, 3
        %v6057 = vsel %vm6008, %v6054, %v6056
        %v6058 = vrot.slane %v5916, 3
        %v6059 = vsel %vm6008, %v6056, %v6058
        %v6060 = vrot.slane %v5917, 3
        %v6061 = vsel %vm6008, %v6058, %v6060
        %v6062 = vrot.slane %v5918, 3
        %v6063 = vsel %vm6008, %v6060, %v6062
        %v6064 = vrot.slane %v5919, 3
        %v6065 = vsel %vm6008, %v6062, %v6064
        %v6066 = vrot.slane %v5920, 3
        %v6067 = vsel %vm6008, %v6064, %v6066
        %v6068 = vrot.slane %v5921, 3
        %v6069 = vsel %vm6008, %v6066, %v6068
        %v6070 = vrot.slane %v5922, 3
        %v6071 = vsel %vm6008, %v6068, %v6070
        %v6072 = vrot.slane %v5923, 3
        %v6073 = vsel %vm6008, %v6070, %v6072
        %v6074 = vrot.slane %v5924, 3
        %v6075 = vsel %vm6008, %v6072, %v6074
        %v6076 = vrot.slane %v5925, 3
        %v6077 = vsel %vm6008, %v6074, %v6076
        %v6078 = vrot.slane %v5926, 3
        %v6079 = vsel %vm6008, %v6076, %v6078
        %v6080 = vrot.slane %v5927, 3
        %v6081 = vsel %vm6008, %v6078, %v6080
        %v6118 = vadd.f32 %v5935, %v6011
        %v6119 = vadd.f32 %v5936, %v6013
        %v6120 = vadd.f32 %v5937, %v6015
        %v6121 = vadd.f32 %v5938, %v6017
        %v6122 = vadd.f32 %v5939, %v6019
        %v6123 = vadd.f32 %v5940, %v6021
        %v6124 = vadd.f32 %v5941, %v6023
        %v6125 = vadd.f32 %v5942, %v6025
        %v6126 = vadd.f32 %v5943, %v6027
        %v6127 = vadd.f32 %v5944, %v6029
        %v6128 = vadd.f32 %v5945, %v6031
        %v6129 = vadd.f32 %v5946, %v6033
        %v6130 = vadd.f32 %v5947, %v6035
        %v6131 = vadd.f32 %v5948, %v6037
        %v6132 = vadd.f32 %v5949, %v6039
        %v6133 = vadd.f32 %v5950, %v6041
        %v6134 = vadd.f32 %v5951, %v6043
        %v6135 = vadd.f32 %v5952, %v6045
        %v6136 = vadd.f32 %v5953, %v6047
        %v6137 = vadd.f32 %v5954, %v6049
        %v6138 = vadd.f32 %v5955, %v6051
        %v6139 = vadd.f32 %v5956, %v6053
        %v6140 = vadd.f32 %v5957, %v6055
        %v6141 = vadd.f32 %v5958, %v6057
        %v6142 = vadd.f32 %v5959, %v6059
        %v6143 = vadd.f32 %v5960, %v6061
        %v6144 = vadd.f32 %v5961, %v6063
        %v6145 = vadd.f32 %v5962, %v6065
        %v6146 = vadd.f32 %v5963, %v6067
        %v6147 = vadd.f32 %v5964, %v6069
        %v6148 = vadd.f32 %v5965, %v6071
        %v6149 = vadd.f32 %v5966, %v6073
        %v6150 = vadd.f32 %v5967, %v6075
        %v6151 = vadd.f32 %v5968, %v6077
        %v6152 = vadd.f32 %v5969, %v6079
        %v6153 = vadd.f32 %v5970, %v6081
        %v6154 = vmax.f32 %v6118, 0.0
        %v6155 = vmax.f32 %v6119, 0.0
        %v6156 = vmax.f32 %v6120, 0.0
        %v6157 = vmax.f32 %v6121, 0.0
        %v6158 = vmax.f32 %v6122, 0.0
        %v6159 = vmax.f32 %v6123, 0.0
        %v6160 = vmax.f32 %v6124, 0.0
        %v6161 = vmax.f32 %v6125, 0.0
        %v6162 = vmax.f32 %v6126, 0.0
        %v6163 = vmax.f32 %v6127, 0.0
        %v6164 = vmax.f32 %v6128, 0.0
        %v6165 = vmax.f32 %v6129, 0.0
        %v6166 = vmax.f32 %v6130, 0.0
        %v6167 = vmax.f32 %v6131, 0.0
        %v6168 = vmax.f32 %v6132, 0.0
        %v6169 = vmax.f32 %v6133, 0.0
        %v6170 = vmax.f32 %v6134, 0.0
        %v6171 = vmax.f32 %v6135, 0.0
        %v6172 = vmax.f32 %v6136, 0.0
        %v6173 = vmax.f32 %v6137, 0.0
        %v6174 = vmax.f32 %v6138, 0.0
        %v6175 = vmax.f32 %v6139, 0.0
        %v6176 = vmax.f32 %v6140, 0.0
        %v6177 = vmax.f32 %v6141, 0.0
        %v6178 = vmax.f32 %v6142, 0.0
        %v6179 = vmax.f32 %v6143, 0.0
        %v6180 = vmax.f32 %v6144, 0.0
        %v6181 = vmax.f32 %v6145, 0.0
        %v6182 = vmax.f32 %v6146, 0.0
        %v6183 = vmax.f32 %v6147, 0.0
        %v6184 = vmax.f32 %v6148, 0.0
        %v6185 = vmax.f32 %v6149, 0.0
        %v6186 = vmax.f32 %v6150, 0.0
        %v6187 = vmax.f32 %v6151, 0.0
        %v6188 = vmax.f32 %v6152, 0.0
        %v6189 = vmax.f32 %v6153, 0.0
        %6190 = vst [vmem:[%s239] sm:$0xf] 0
        %6191 = vst [vmem:[%s239 + $0x4] sm:$0xf] 0
        %v6192 = vld [vmem:[%s239 + $0x8] sm:$0x3]
        %v6193 = vsel %vm2899, 0, %v6192
        %6194 = vst [vmem:[%s239 + $0x8] sm:$0x3] %v6193
        %v6195 = vld [vmem:[%s239 + $0x98] sm:$0xf]
        %v6196 = vsel %vm2905, 0, %v6195
        %6197 = vst [vmem:[%s239 + $0x98] sm:$0xf] %v6196
        %6198 = vst [vmem:[%s239 + $0x9c] sm:$0xf] 0
        %6199 = vst [vmem:[%s239 + $0xa0] sm:$0x3] 0
        %v6200 = vsel %vm2947, %v6154, 0.0
        %v6201 = vsel %vm2948, %v6155, 0.0
        %v6202 = vsel %vm2949, %v6156, 0.0
        %v6203 = vsel %vm2950, %v6157, 0.0
        %v6204 = vsel %vm2951, %v6158, 0.0
        %v6205 = vsel %vm2952, %v6159, 0.0
        %v6206 = vsel %vm2953, %v6160, 0.0
        %v6207 = vsel %vm2954, %v6161, 0.0
        %v6208 = vsel %vm2955, %v6162, 0.0
        %v6209 = vsel %vm2956, %v6163, 0.0
        %v6210 = vsel %vm2957, %v6164, 0.0
        %v6211 = vsel %vm2958, %v6165, 0.0
        %v6212 = vsel %vm2959, %v6166, 0.0
        %v6213 = vsel %vm2960, %v6167, 0.0
        %v6214 = vsel %vm2961, %v6168, 0.0
        %v6215 = vsel %vm2962, %v6169, 0.0
        %v6216 = vsel %vm2963, %v6170, 0.0
        %v6217 = vsel %vm2964, %v6171, 0.0
        %v6218 = vsel %vm2965, %v6172, 0.0
        %v6219 = vsel %vm2966, %v6173, 0.0
        %v6220 = vsel %vm2967, %v6174, 0.0
        %v6221 = vsel %vm2968, %v6175, 0.0
        %v6222 = vsel %vm2969, %v6176, 0.0
        %v6223 = vsel %vm2970, %v6177, 0.0
        %v6224 = vsel %vm2971, %v6178, 0.0
        %v6225 = vsel %vm2972, %v6179, 0.0
        %v6226 = vsel %vm2973, %v6180, 0.0
        %v6227 = vsel %vm2974, %v6181, 0.0
        %v6228 = vsel %vm2975, %v6182, 0.0
        %v6229 = vsel %vm2976, %v6183, 0.0
        %v6230 = vsel %vm2977, %v6184, 0.0
        %v6231 = vsel %vm2978, %v6185, 0.0
        %v6232 = vsel %vm2979, %v6186, 0.0
        %v6233 = vsel %vm2980, %v6187, 0.0
        %v6234 = vsel %vm2981, %v6188, 0.0
        %v6235 = vsel %vm2982, %v6189, 0.0
        %v6236 = vpack.c.bf16 %v6201, %v6200
        %v6237 = vpack.c.bf16 %v6203, %v6202
        %v6238 = vpack.c.bf16 %v6205, %v6204
        %v6239 = vpack.c.bf16 %v6207, %v6206
        %v6240 = vpack.c.bf16 %v6209, %v6208
        %v6241 = vpack.c.bf16 %v6211, %v6210
        %v6242 = vpack.c.bf16 %v6213, %v6212
        %v6243 = vpack.c.bf16 %v6215, %v6214
        %v6244 = vpack.c.bf16 %v6217, %v6216
        %v6245 = vpack.c.bf16 %v6219, %v6218
        %v6246 = vpack.c.bf16 %v6221, %v6220
        %v6247 = vpack.c.bf16 %v6223, %v6222
        %v6248 = vpack.c.bf16 %v6225, %v6224
        %v6249 = vpack.c.bf16 %v6227, %v6226
        %v6250 = vpack.c.bf16 %v6229, %v6228
        %v6251 = vpack.c.bf16 %v6231, %v6230
        %v6252 = vpack.c.bf16 %v6233, %v6232
        %v6253 = vpack.c.bf16 %v6235, %v6234
        %v6272 = vunpack.c.l.b16 %v6236
        %v6273 = vunpack.c.h.b16 %v6236
        %v6274 = vunpack.c.l.b16 %v6237
        %v6275 = vunpack.c.h.b16 %v6237
        %v6276 = vunpack.c.l.b16 %v6238
        %v6277 = vunpack.c.h.b16 %v6238
        %v6278 = vunpack.c.l.b16 %v6239
        %v6279 = vunpack.c.h.b16 %v6239
        %v6280 = vunpack.c.l.b16 %v6240
        %v6281 = vunpack.c.h.b16 %v6240
        %v6282 = vunpack.c.l.b16 %v6241
        %v6283 = vunpack.c.h.b16 %v6241
        %v6284 = vunpack.c.l.b16 %v6242
        %v6285 = vunpack.c.h.b16 %v6242
        %v6286 = vunpack.c.l.b16 %v6243
        %v6287 = vunpack.c.h.b16 %v6243
        %v6288 = vunpack.c.l.b16 %v6244
        %v6289 = vunpack.c.h.b16 %v6244
        %v6290 = vunpack.c.l.b16 %v6245
        %v6291 = vunpack.c.h.b16 %v6245
        %v6292 = vunpack.c.l.b16 %v6246
        %v6293 = vunpack.c.h.b16 %v6246
        %v6294 = vunpack.c.l.b16 %v6247
        %v6295 = vunpack.c.h.b16 %v6247
        %v6296 = vunpack.c.l.b16 %v6248
        %v6297 = vunpack.c.h.b16 %v6248
        %v6298 = vunpack.c.l.b16 %v6249
        %v6299 = vunpack.c.h.b16 %v6249
        %v6300 = vunpack.c.l.b16 %v6250
        %v6301 = vunpack.c.h.b16 %v6250
        %v6302 = vunpack.c.l.b16 %v6251
        %v6303 = vunpack.c.h.b16 %v6251
        %v6304 = vunpack.c.l.b16 %v6252
        %v6305 = vunpack.c.h.b16 %v6252
        %v6306 = vunpack.c.l.b16 %v6253
        %v6307 = vunpack.c.h.b16 %v6253
        %v6308 = vpack.c.b16 %v6272, %v6272
        %v6309 = vpack.c.b16 %v6273, %v6273
        %v6310 = vpack.c.b16 %v6274, %v6274
        %v6311 = vpack.c.b16 %v6275, %v6275
        %v6312 = vpack.c.b16 %v6276, %v6276
        %v6313 = vpack.c.b16 %v6277, %v6277
        %v6314 = vpack.c.b16 %v6278, %v6278
        %v6315 = vpack.c.b16 %v6279, %v6279
        %v6316 = vpack.c.b16 %v6280, %v6280
        %v6317 = vpack.c.b16 %v6281, %v6281
        %v6318 = vpack.c.b16 %v6282, %v6282
        %v6319 = vpack.c.b16 %v6283, %v6283
        %v6320 = vpack.c.b16 %v6284, %v6284
        %v6321 = vpack.c.b16 %v6285, %v6285
        %v6322 = vpack.c.b16 %v6286, %v6286
        %v6323 = vpack.c.b16 %v6287, %v6287
        %v6324 = vpack.c.b16 %v6288, %v6288
        %v6325 = vpack.c.b16 %v6289, %v6289
        %v6326 = vpack.c.b16 %v6290, %v6290
        %v6327 = vpack.c.b16 %v6291, %v6291
        %v6328 = vpack.c.b16 %v6292, %v6292
        %v6329 = vpack.c.b16 %v6293, %v6293
        %v6330 = vpack.c.b16 %v6294, %v6294
        %v6331 = vpack.c.b16 %v6295, %v6295
        %v6332 = vpack.c.b16 %v6296, %v6296
        %v6333 = vpack.c.b16 %v6297, %v6297
        %v6334 = vpack.c.b16 %v6298, %v6298
        %v6335 = vpack.c.b16 %v6299, %v6299
        %v6336 = vpack.c.b16 %v6300, %v6300
        %v6337 = vpack.c.b16 %v6301, %v6301
        %v6338 = vpack.c.b16 %v6302, %v6302
        %v6339 = vpack.c.b16 %v6303, %v6303
        %v6340 = vpack.c.b16 %v6304, %v6304
        %v6341 = vpack.c.b16 %v6305, %v6305
        %v6342 = vpack.c.b16 %v6306, %v6306
        %v6343 = vpack.c.b16 %v6307, %v6307
        %v6345 = vshrl.u32 %v6308, 16
        %v6347 = vrot.slane %v6345, 6
        %v6348 = vshll.u32 %v6308, 16
        %v6350 = vrot.slane %v6348, 7
        %v6351 = vor.u32 %v6347, %v6350
        %v6352 = vrot.slane %v6351, 4
        %v6354 = vshrl.u32 %v6309, 16
        %v6356 = vrot.slane %v6354, 6
        %v6357 = vshll.u32 %v6309, 16
        %v6359 = vrot.slane %v6357, 7
        %v6360 = vor.u32 %v6356, %v6359
        %v6361 = vsel %vm3128, %v6352, %v6360
        %v6362 = vrot.slane %v6360, 4
        %v6364 = vshrl.u32 %v6310, 16
        %v6366 = vrot.slane %v6364, 6
        %v6367 = vshll.u32 %v6310, 16
        %v6369 = vrot.slane %v6367, 7
        %v6370 = vor.u32 %v6366, %v6369
        %v6371 = vsel %vm3128, %v6362, %v6370
        %v6372 = vrot.slane %v6370, 4
        %v6374 = vshrl.u32 %v6311, 16
        %v6376 = vrot.slane %v6374, 6
        %v6377 = vshll.u32 %v6311, 16
        %v6379 = vrot.slane %v6377, 7
        %v6380 = vor.u32 %v6376, %v6379
        %v6381 = vsel %vm3128, %v6372, %v6380
        %v6382 = vrot.slane %v6380, 4
        %v6384 = vshrl.u32 %v6312, 16
        %v6386 = vrot.slane %v6384, 6
        %v6387 = vshll.u32 %v6312, 16
        %v6389 = vrot.slane %v6387, 7
        %v6390 = vor.u32 %v6386, %v6389
        %v6391 = vsel %vm3128, %v6382, %v6390
        %v6392 = vrot.slane %v6390, 4
        %v6394 = vshrl.u32 %v6313, 16
        %v6396 = vrot.slane %v6394, 6
        %v6397 = vshll.u32 %v6313, 16
        %v6399 = vrot.slane %v6397, 7
        %v6400 = vor.u32 %v6396, %v6399
        %v6401 = vsel %vm3128, %v6392, %v6400
        %v6402 = vrot.slane %v6400, 4
        %v6404 = vshrl.u32 %v6314, 16
        %v6406 = vrot.slane %v6404, 6
        %v6407 = vshll.u32 %v6314, 16
        %v6409 = vrot.slane %v6407, 7
        %v6410 = vor.u32 %v6406, %v6409
        %v6411 = vsel %vm3128, %v6402, %v6410
        %v6412 = vrot.slane %v6410, 4
        %v6414 = vshrl.u32 %v6315, 16
        %v6416 = vrot.slane %v6414, 6
        %v6417 = vshll.u32 %v6315, 16
        %v6419 = vrot.slane %v6417, 7
        %v6420 = vor.u32 %v6416, %v6419
        %v6421 = vsel %vm3128, %v6412, %v6420
        %v6422 = vrot.slane %v6420, 4
        %v6424 = vshrl.u32 %v6316, 16
        %v6426 = vrot.slane %v6424, 6
        %v6427 = vshll.u32 %v6316, 16
        %v6429 = vrot.slane %v6427, 7
        %v6430 = vor.u32 %v6426, %v6429
        %v6431 = vsel %vm3128, %v6422, %v6430
        %v6432 = vrot.slane %v6430, 4
        %v6434 = vshrl.u32 %v6317, 16
        %v6436 = vrot.slane %v6434, 6
        %v6437 = vshll.u32 %v6317, 16
        %v6439 = vrot.slane %v6437, 7
        %v6440 = vor.u32 %v6436, %v6439
        %v6441 = vsel %vm3128, %v6432, %v6440
        %v6442 = vrot.slane %v6440, 4
        %v6444 = vshrl.u32 %v6318, 16
        %v6446 = vrot.slane %v6444, 6
        %v6447 = vshll.u32 %v6318, 16
        %v6449 = vrot.slane %v6447, 7
        %v6450 = vor.u32 %v6446, %v6449
        %v6451 = vsel %vm3128, %v6442, %v6450
        %v6452 = vrot.slane %v6450, 4
        %v6454 = vshrl.u32 %v6319, 16
        %v6456 = vrot.slane %v6454, 6
        %v6457 = vshll.u32 %v6319, 16
        %v6459 = vrot.slane %v6457, 7
        %v6460 = vor.u32 %v6456, %v6459
        %v6461 = vsel %vm3128, %v6452, %v6460
        %v6462 = vrot.slane %v6460, 4
        %v6464 = vshrl.u32 %v6320, 16
        %v6466 = vrot.slane %v6464, 6
        %v6467 = vshll.u32 %v6320, 16
        %v6469 = vrot.slane %v6467, 7
        %v6470 = vor.u32 %v6466, %v6469
        %v6471 = vsel %vm3128, %v6462, %v6470
        %v6472 = vrot.slane %v6470, 4
        %v6474 = vshrl.u32 %v6321, 16
        %v6476 = vrot.slane %v6474, 6
        %v6477 = vshll.u32 %v6321, 16
        %v6479 = vrot.slane %v6477, 7
        %v6480 = vor.u32 %v6476, %v6479
        %v6481 = vsel %vm3128, %v6472, %v6480
        %v6482 = vrot.slane %v6480, 4
        %v6484 = vshrl.u32 %v6322, 16
        %v6486 = vrot.slane %v6484, 6
        %v6487 = vshll.u32 %v6322, 16
        %v6489 = vrot.slane %v6487, 7
        %v6490 = vor.u32 %v6486, %v6489
        %v6491 = vsel %vm3128, %v6482, %v6490
        %v6492 = vrot.slane %v6490, 4
        %v6494 = vshrl.u32 %v6323, 16
        %v6496 = vrot.slane %v6494, 6
        %v6497 = vshll.u32 %v6323, 16
        %v6499 = vrot.slane %v6497, 7
        %v6500 = vor.u32 %v6496, %v6499
        %v6501 = vsel %vm3128, %v6492, %v6500
        %v6502 = vrot.slane %v6500, 4
        %v6504 = vshrl.u32 %v6324, 16
        %v6506 = vrot.slane %v6504, 6
        %v6507 = vshll.u32 %v6324, 16
        %v6509 = vrot.slane %v6507, 7
        %v6510 = vor.u32 %v6506, %v6509
        %v6511 = vsel %vm3128, %v6502, %v6510
        %v6512 = vrot.slane %v6510, 4
        %v6514 = vshrl.u32 %v6325, 16
        %v6516 = vrot.slane %v6514, 6
        %v6517 = vshll.u32 %v6325, 16
        %v6519 = vrot.slane %v6517, 7
        %v6520 = vor.u32 %v6516, %v6519
        %v6521 = vsel %vm3128, %v6512, %v6520
        %v6522 = vrot.slane %v6520, 4
        %v6524 = vshrl.u32 %v6326, 16
        %v6526 = vrot.slane %v6524, 6
        %v6527 = vshll.u32 %v6326, 16
        %v6529 = vrot.slane %v6527, 7
        %v6530 = vor.u32 %v6526, %v6529
        %v6531 = vsel %vm3128, %v6522, %v6530
        %v6532 = vrot.slane %v6530, 4
        %v6534 = vshrl.u32 %v6327, 16
        %v6536 = vrot.slane %v6534, 6
        %v6537 = vshll.u32 %v6327, 16
        %v6539 = vrot.slane %v6537, 7
        %v6540 = vor.u32 %v6536, %v6539
        %v6541 = vsel %vm3128, %v6532, %v6540
        %v6542 = vrot.slane %v6540, 4
        %v6544 = vshrl.u32 %v6328, 16
        %v6546 = vrot.slane %v6544, 6
        %v6547 = vshll.u32 %v6328, 16
        %v6549 = vrot.slane %v6547, 7
        %v6550 = vor.u32 %v6546, %v6549
        %v6551 = vsel %vm3128, %v6542, %v6550
        %v6552 = vrot.slane %v6550, 4
        %v6554 = vshrl.u32 %v6329, 16
        %v6556 = vrot.slane %v6554, 6
        %v6557 = vshll.u32 %v6329, 16
        %v6559 = vrot.slane %v6557, 7
        %v6560 = vor.u32 %v6556, %v6559
        %v6561 = vsel %vm3128, %v6552, %v6560
        %v6562 = vrot.slane %v6560, 4
        %v6564 = vshrl.u32 %v6330, 16
        %v6566 = vrot.slane %v6564, 6
        %v6567 = vshll.u32 %v6330, 16
        %v6569 = vrot.slane %v6567, 7
        %v6570 = vor.u32 %v6566, %v6569
        %v6571 = vsel %vm3128, %v6562, %v6570
        %v6572 = vrot.slane %v6570, 4
        %v6574 = vshrl.u32 %v6331, 16
        %v6576 = vrot.slane %v6574, 6
        %v6577 = vshll.u32 %v6331, 16
        %v6579 = vrot.slane %v6577, 7
        %v6580 = vor.u32 %v6576, %v6579
        %v6581 = vsel %vm3128, %v6572, %v6580
        %v6582 = vrot.slane %v6580, 4
        %v6584 = vshrl.u32 %v6332, 16
        %v6586 = vrot.slane %v6584, 6
        %v6587 = vshll.u32 %v6332, 16
        %v6589 = vrot.slane %v6587, 7
        %v6590 = vor.u32 %v6586, %v6589
        %v6591 = vsel %vm3128, %v6582, %v6590
        %v6592 = vrot.slane %v6590, 4
        %v6594 = vshrl.u32 %v6333, 16
        %v6596 = vrot.slane %v6594, 6
        %v6597 = vshll.u32 %v6333, 16
        %v6599 = vrot.slane %v6597, 7
        %v6600 = vor.u32 %v6596, %v6599
        %v6601 = vsel %vm3128, %v6592, %v6600
        %v6602 = vrot.slane %v6600, 4
        %v6604 = vshrl.u32 %v6334, 16
        %v6606 = vrot.slane %v6604, 6
        %v6607 = vshll.u32 %v6334, 16
        %v6609 = vrot.slane %v6607, 7
        %v6610 = vor.u32 %v6606, %v6609
        %v6611 = vsel %vm3128, %v6602, %v6610
        %v6612 = vrot.slane %v6610, 4
        %v6614 = vshrl.u32 %v6335, 16
        %v6616 = vrot.slane %v6614, 6
        %v6617 = vshll.u32 %v6335, 16
        %v6619 = vrot.slane %v6617, 7
        %v6620 = vor.u32 %v6616, %v6619
        %v6621 = vsel %vm3128, %v6612, %v6620
        %v6622 = vrot.slane %v6620, 4
        %v6624 = vshrl.u32 %v6336, 16
        %v6626 = vrot.slane %v6624, 6
        %v6627 = vshll.u32 %v6336, 16
        %v6629 = vrot.slane %v6627, 7
        %v6630 = vor.u32 %v6626, %v6629
        %v6631 = vsel %vm3128, %v6622, %v6630
        %v6632 = vrot.slane %v6630, 4
        %v6634 = vshrl.u32 %v6337, 16
        %v6636 = vrot.slane %v6634, 6
        %v6637 = vshll.u32 %v6337, 16
        %v6639 = vrot.slane %v6637, 7
        %v6640 = vor.u32 %v6636, %v6639
        %v6641 = vsel %vm3128, %v6632, %v6640
        %v6642 = vrot.slane %v6640, 4
        %v6644 = vshrl.u32 %v6338, 16
        %v6646 = vrot.slane %v6644, 6
        %v6647 = vshll.u32 %v6338, 16
        %v6649 = vrot.slane %v6647, 7
        %v6650 = vor.u32 %v6646, %v6649
        %v6651 = vsel %vm3128, %v6642, %v6650
        %v6652 = vrot.slane %v6650, 4
        %v6654 = vshrl.u32 %v6339, 16
        %v6656 = vrot.slane %v6654, 6
        %v6657 = vshll.u32 %v6339, 16
        %v6659 = vrot.slane %v6657, 7
        %v6660 = vor.u32 %v6656, %v6659
        %v6661 = vsel %vm3128, %v6652, %v6660
        %v6662 = vrot.slane %v6660, 4
        %v6664 = vshrl.u32 %v6340, 16
        %v6666 = vrot.slane %v6664, 6
        %v6667 = vshll.u32 %v6340, 16
        %v6669 = vrot.slane %v6667, 7
        %v6670 = vor.u32 %v6666, %v6669
        %v6671 = vsel %vm3128, %v6662, %v6670
        %v6672 = vrot.slane %v6670, 4
        %v6674 = vshrl.u32 %v6341, 16
        %v6676 = vrot.slane %v6674, 6
        %v6677 = vshll.u32 %v6341, 16
        %v6679 = vrot.slane %v6677, 7
        %v6680 = vor.u32 %v6676, %v6679
        %v6681 = vsel %vm3128, %v6672, %v6680
        %v6682 = vrot.slane %v6680, 4
        %v6684 = vshrl.u32 %v6342, 16
        %v6686 = vrot.slane %v6684, 6
        %v6687 = vshll.u32 %v6342, 16
        %v6689 = vrot.slane %v6687, 7
        %v6690 = vor.u32 %v6686, %v6689
        %v6691 = vsel %vm3128, %v6682, %v6690
        %v6692 = vrot.slane %v6690, 4
        %v6694 = vshrl.u32 %v6343, 16
        %v6696 = vrot.slane %v6694, 6
        %v6697 = vshll.u32 %v6343, 16
        %v6699 = vrot.slane %v6697, 7
        %v6700 = vor.u32 %v6696, %v6699
        %v6701 = vsel %vm3128, %v6692, %v6700
        %v6702 = vrot.slane %v6696, 4
        %v6740 = vld [vmem:[%s239 + $0x8] sm:$0xe]
        %v6741 = vsel %vm3527, %v6351, %v6740
        %6742 = vst [vmem:[%s239 + $0x8] sm:$0xe] %v6741
        %6743 = vst [vmem:[%s239 + $0xc] sm:$0xf] %v6361
        %6744 = vst [vmem:[%s239 + $0x10] sm:$0xf] %v6371
        %6745 = vst [vmem:[%s239 + $0x14] sm:$0xf] %v6381
        %6746 = vst [vmem:[%s239 + $0x18] sm:$0xf] %v6391
        %6747 = vst [vmem:[%s239 + $0x1c] sm:$0xf] %v6401
        %6748 = vst [vmem:[%s239 + $0x20] sm:$0xf] %v6411
        %6749 = vst [vmem:[%s239 + $0x24] sm:$0xf] %v6421
        %6750 = vst [vmem:[%s239 + $0x28] sm:$0xf] %v6431
        %6751 = vst [vmem:[%s239 + $0x2c] sm:$0xf] %v6441
        %6752 = vst [vmem:[%s239 + $0x30] sm:$0xf] %v6451
        %6753 = vst [vmem:[%s239 + $0x34] sm:$0xf] %v6461
        %6754 = vst [vmem:[%s239 + $0x38] sm:$0xf] %v6471
        %6755 = vst [vmem:[%s239 + $0x3c] sm:$0xf] %v6481
        %6756 = vst [vmem:[%s239 + $0x40] sm:$0xf] %v6491
        %6757 = vst [vmem:[%s239 + $0x44] sm:$0xf] %v6501
        %6758 = vst [vmem:[%s239 + $0x48] sm:$0xf] %v6511
        %6759 = vst [vmem:[%s239 + $0x4c] sm:$0xf] %v6521
        %6760 = vst [vmem:[%s239 + $0x50] sm:$0xf] %v6531
        %6761 = vst [vmem:[%s239 + $0x54] sm:$0xf] %v6541
        %6762 = vst [vmem:[%s239 + $0x58] sm:$0xf] %v6551
        %6763 = vst [vmem:[%s239 + $0x5c] sm:$0xf] %v6561
        %6764 = vst [vmem:[%s239 + $0x60] sm:$0xf] %v6571
        %6765 = vst [vmem:[%s239 + $0x64] sm:$0xf] %v6581
        %6766 = vst [vmem:[%s239 + $0x68] sm:$0xf] %v6591
        %6767 = vst [vmem:[%s239 + $0x6c] sm:$0xf] %v6601
        %6768 = vst [vmem:[%s239 + $0x70] sm:$0xf] %v6611
        %6769 = vst [vmem:[%s239 + $0x74] sm:$0xf] %v6621
        %6770 = vst [vmem:[%s239 + $0x78] sm:$0xf] %v6631
        %6771 = vst [vmem:[%s239 + $0x7c] sm:$0xf] %v6641
        %6772 = vst [vmem:[%s239 + $0x80] sm:$0xf] %v6651
        %6773 = vst [vmem:[%s239 + $0x84] sm:$0xf] %v6661
        %6774 = vst [vmem:[%s239 + $0x88] sm:$0xf] %v6671
        %6775 = vst [vmem:[%s239 + $0x8c] sm:$0xf] %v6681
        %6776 = vst [vmem:[%s239 + $0x90] sm:$0xf] %v6691
        %6777 = vst [vmem:[%s239 + $0x94] sm:$0xf] %v6701
        %v6778 = vld [vmem:[%s239 + $0x98] sm:$0x1]
        %v6779 = vsel %vm3568, %v6702, %v6778
        %6780 = vst [vmem:[%s239 + $0x98] sm:$0x1] %v6779
        %p6781 = scmp.lt.s32.totalorder %s17, 1
        %s6782 = scalar_select %p6781, %s17, 1
        %s6783 = smul.addr %s6782, 41
        %s6784 = smul.addr %s6783, 4
        %s6785 = scalar_lea.vmem %s5, %s6784
        // Predicated region
        $region45: #{tpu_custom_call.1} parent=39 // pred_check
          %p6786 = pneg %p145
        $region46: #{tpu_custom_call.1} parent=39 // pred_check_branch
          %6788 = sbr.rel (%p6786) target = $region48
        $region47: #{tpu_custom_call.1} parent=39 // pred_region
          _
        $region48: #{tpu_custom_call.1} parent=39 // pred_fallthru
          _
      $region40: #{tpu_custom_call.1} parent=5 // pred_fallthru
        _
      %p6789 = scmp.le.s32.totalorder 2, %s12
      // Predicated region
      $region49: #{tpu_custom_call.1} parent=5 // pred_check
        %p6790 = pneg %p6789
      $region50: #{tpu_custom_call.1} parent=5 // pred_check_branch
        %6792 = sbr.rel (%p6790) target = $region52
      $region51: #{tpu_custom_call.1} parent=5 // pred_region
        %s6793 = ssub.s32 %s12, 2
        // Predicated region
        $region53: #{tpu_custom_call.1} parent=51 // pred_check
          %p6794 = pneg %p151
        $region54: #{tpu_custom_call.1} parent=51 // pred_check_branch
          %6796 = sbr.rel (%p6794) target = $region56
        $region55: #{tpu_custom_call.1} parent=51 // pred_region
          %p6797 = scmp.lt.s32.totalorder %s18, 1
          %s6798 = scalar_select %p6797, %s18, 1
          %s6799 = smul.addr %s6798, 41
          %s6800 = smul.addr %s6799, 4
          %s6801 = scalar_lea.vmem %s5, %s6800
        $region56: #{tpu_custom_call.1} parent=51 // pred_fallthru
          _
      $region52: #{tpu_custom_call.1} parent=5 // pred_fallthru
        _
    $region6: #{tpu_custom_call.1} parent=1 // loop_footer
      %s16 = sadd.s32 1, %s12
    $region7: #{tpu_custom_call.1} parent=1 // loop_footer_branch
      %11 = sbr.rel target = $region3
    $region8: #{tpu_custom_call.1} parent=1 // loop_exit
      _
    %6802 = vsyncpa [#allocation4], 1
    %s6803 = scalar_lea.sflag [#allocation4], 1
    %6804 = vsyncpa %s6803, 1

</llo_original>
